<compile_context>
chip_gen: v7x
topology: tpu7x:2x2x1
jax: 0.10.0
libtpu: 0.0.40
codegen_flags: <defaults>
</compile_context>

<pallas_src>
import math
import numpy as np
import jax
import jax.numpy as jnp
from jax.experimental import pallas as pl
from jax.experimental.pallas import tpu as pltpu

VMEM = pltpu.MemorySpace.VMEM


def _specs(n):
    return [pl.BlockSpec(memory_space=VMEM) for _ in range(n)]


# --------------------------- fused Pallas forward ---------------------------

def make_fused_forward(batch_size, neg_samples):
    """SAMixer.forward_fully_connected + EdgePredictor_per_node as ONE Pallas kernel."""
    E = batch_size // (neg_samples + 2)

    def kernel(feats_ref, ts_ref, freqs_ref, wf_ref, wt_ref, bf_ref,
               wqkvs_ref, bqkvs_ref, bi_row_ref, bi_col_ref,
               ln_w_ref, ln_b_ref, w_head_ref, b_head_ref,
               ep_wsd_ref, ep_bsd_ref, ep_wo_ref, ep_bo_ref,
               logits_ref):
        N = feats_ref.shape[0]

        # ---- FeatEncode: cos time encoding + linear (bias of time enc fixed to 0) ----
        tfeat = jnp.cos(ts_ref[...] * freqs_ref[...])                       # [N, T]
        x = jnp.dot(feats_ref[...], wf_ref[...], preferred_element_type=jnp.float32)
        x = x + jnp.dot(tfeat, wt_ref[...], preferred_element_type=jnp.float32)
        x = x + bf_ref[...]                                                 # [N, H]
        H = x.shape[1]
        scale = 1.0 / math.sqrt(H)                                          # heads=1

        # within-group fully-connected (incl. self-loop) mask, built in-kernel
        same_group = bi_col_ref[...] == bi_row_ref[...]                     # [N, N] bool

        # ---- MixerBlock layers: x = x + TransformerConv(x, adj) ----
        for l in range(wqkvs_ref.shape[0]):
            qkvs = jnp.dot(x, wqkvs_ref[l], preferred_element_type=jnp.float32)
            qkvs = qkvs + bqkvs_ref[l]                                      # [N, 4H]
            q = qkvs[:, 0 * H:1 * H] * scale
            k = qkvs[:, 1 * H:2 * H]
            v = qkvs[:, 2 * H:3 * H]
            skip = qkvs[:, 3 * H:4 * H]
            scores = jax.lax.dot_general(q, k, (((1,), (1,)), ((), ())),
                                         preferred_element_type=jnp.float32)
            scores = jnp.where(same_group, scores, jnp.float32(-1e30))
            scores = scores - jnp.max(scores, axis=-1, keepdims=True)
            p = jnp.exp(scores)
            p = p * pl.reciprocal(jnp.sum(p, axis=-1, keepdims=True), approx=True)
            attn = jnp.dot(p, v, preferred_element_type=jnp.float32)
            x = x + attn + skip

        # ---- LayerNorm -> per-group mean (scatter_mean) -> mlp_head ----
        mu = jnp.mean(x, axis=-1, keepdims=True)
        var = jnp.mean((x - mu) ** 2, axis=-1, keepdims=True)
        ln = (x - mu) * jax.lax.rsqrt(var + 1e-5) * ln_w_ref[...] + ln_b_ref[...]

        onehot = (jax.lax.broadcasted_iota(jnp.int32, (batch_size, N), 0)
                  == bi_row_ref[...]).astype(jnp.float32)                   # [B, N]
        cnt = jnp.sum(onehot, axis=-1, keepdims=True)                       # [B, 1]
        summed = jnp.dot(onehot, ln, preferred_element_type=jnp.float32)    # [B, H]
        meang = summed * pl.reciprocal(jnp.maximum(cnt, 1.0), approx=True)
        z = jnp.dot(meang, w_head_ref[...], preferred_element_type=jnp.float32) + b_head_ref[...]
        z = jnp.where(cnt > 0.0, z, 0.0)       # rows with no members stay exactly 0

        # ---- EdgePredictor_per_node (src/dst linears fused; hidden zero-padded) ----
        ep_pad = ep_wo_ref.shape[0]
        proj = jnp.dot(z, ep_wsd_ref[...], preferred_element_type=jnp.float32) + ep_bsd_ref[...]
        src_p = proj[:E, :ep_pad]                                           # src -> src_fc
        pos_p = proj[E:2 * E, ep_pad:]                                      # pos -> dst_fc
        neg_p = proj[2 * E:, ep_pad:]                                       # neg -> dst_fc
        pos_e = jnp.maximum(src_p + pos_p, 0.0)
        if neg_samples == 1:
            neg_e = jnp.maximum(src_p + neg_p, 0.0)
        else:
            # negatives laid out as NEG contiguous blocks of E rows (torch .tile(neg, 1))
            neg_e = jnp.maximum(src_p[None, :, :]
                                + neg_p.reshape(neg_samples, E, ep_pad), 0.0)
            neg_e = neg_e.reshape(neg_samples * E, ep_pad)
        edges = jnp.concatenate([pos_e, neg_e], axis=0)                     # [(1+NEG)E, pad]
        logits_ref[...] = (jnp.dot(edges, ep_wo_ref[...],
                                   preferred_element_type=jnp.float32) + ep_bo_ref[...])

    def run(a, edge_feats, edge_ts, bi_row, bi_col):
        return pl.pallas_call(
            kernel,
            out_shape=jax.ShapeDtypeStruct(((1 + neg_samples) * E, 1), jnp.float32),
            in_specs=_specs(18),
            out_specs=pl.BlockSpec(memory_space=VMEM),
        )(edge_feats, edge_ts, a["time_freqs"], a["w_feat"], a["w_time"], a["b_feat"],
          a["wqkvs"], a["bqkvs"], bi_row, bi_col,
          a["ln_w"], a["ln_b"], a["w_head"], a["b_head"],
          a["ep_wsd"], a["ep_bsd"], a["ep_wo"], a["ep_bo"])

    return run


# ------------------------------ model glue ----------------------------------

def pos_neg_mask(mask, neg_samples):
    num_edge = len(mask) // (neg_samples + 2)
    src_mask = mask[:num_edge]
    pos_dst_mask = mask[num_edge:2 * num_edge]
    neg_dst_mask = mask[2 * num_edge:]
    pos = [i and j for i, j in zip(src_mask, pos_dst_mask)]
    neg = [i and j for i, j in zip(src_mask * neg_samples, neg_dst_mask)]
    return pos, neg


def average_precision(y_true, y_score):
    # TODO(synk): host-side replacement for sklearn.average_precision_score
    order = np.argsort(-y_score, kind="stable")
    y = y_true[order]
    tp = np.cumsum(y)
    prec = tp / np.arange(1, len(y) + 1)
    return float(np.sum(prec * y) / max(np.sum(y), 1.0))


def roc_auc(y_true, y_score):
    # TODO(synk): host-side replacement for sklearn.roc_auc_score
    pos = y_score[y_true == 1]
    neg = y_score[y_true == 0]
    diff = pos[:, None] - neg[None, :]
    return float((np.sum(diff > 0) + 0.5 * np.sum(diff == 0)) / (len(pos) * len(neg)))


def mixer_per_node_forward(p, model_inputs, has_temporal_neighbors, neg_samples, node_feats):
    edge_feats, edge_ts, batch_size, inds = model_inputs
    E = batch_size // (neg_samples + 2)
    pos_m_l, neg_m_l = pos_neg_mask(has_temporal_neighbors, neg_samples)

    if node_feats is not None:
        # TODO(synk): node_feats_dim > 0 branch (concat before predictor) not implemented.
        raise NotImplementedError("node_feats_dim > 0 branch not implemented")

    # group id per kept edge row (host precompute once; device constants thereafter)
    inds_np = np.asarray(inds)
    batch_inds = np.repeat(np.arange(batch_size), p["per_graph_size"])[inds_np].astype(np.int32)
    bi_row = jnp.asarray(batch_inds[None, :])
    bi_col = jnp.asarray(batch_inds[:, None])
    pos_m = jnp.asarray(np.array(pos_m_l, dtype=np.float32))[:, None]
    neg_m = jnp.asarray(np.array(neg_m_l, dtype=np.float32))[:, None]

    fused = p["fused_forward"]

    @jax.jit
    def device_step(a, ef, et, br, bc, pm, nm):
        logits = fused(a, ef, et, br, bc)
        pred_pos = logits[:E]
        pred_neg = logits[E:]
        # BCEWithLogits: target 1 -> softplus(-x); target 0 -> softplus(x); masked mean
        loss_pos = jnp.sum(jax.nn.softplus(-pred_pos) * pm) / jnp.maximum(jnp.sum(pm), 1.0)
        loss_neg = jnp.sum(jax.nn.softplus(pred_neg) * nm) / jnp.maximum(jnp.sum(nm), 1.0)
        probs = jax.nn.sigmoid(jnp.concatenate([pred_pos, pred_neg], axis=0))
        return loss_pos + loss_neg, pred_pos, pred_neg, probs

    loss, pred_pos, pred_neg, probs = device_step(
        p["arrays"], edge_feats, edge_ts, bi_row, bi_col, pos_m, neg_m)

    # host-side metrics (after all device work is queued; single D2H pull)
    y_pred = np.asarray(probs).ravel()
    y_true = np.concatenate([np.ones(E), np.zeros(E * neg_samples)])
    acc = average_precision(y_true, y_pred)
    if neg_samples > 1:
        cnt = jnp.sum(jnp.squeeze(pred_pos)
                      < jnp.reshape(jnp.squeeze(pred_neg), (neg_samples, -1)), axis=0)
        auc = 1.0 / (cnt + 1)
    else:
        auc = roc_auc(y_true, y_pred)
    return loss, acc, auc


# --------------------------------- main --------------------------------------

if __name__ == "__main__":
    # config (small, consistent with the module)
    NUM_EDGE = 4
    NEG_SAMPLES = 1
    BATCH = NUM_EDGE * (NEG_SAMPLES + 2)          # 12 nodes total (src/pos/neg)
    PER_GRAPH = 8
    F_IN = 8                                      # edge feature dim (input_channels)
    T_DIM = 16                                    # time_channels
    HID = 32                                      # hidden_channels
    OUT = 24                                      # out_channels == dim_in_time
    LAYERS = 2
    D_PRED = OUT                                  # dim_in_time + dim_in_node(=0)
    EP_HID = 100                                  # EdgePredictor hidden (module default)
    EP_PAD = 128                                  # zero-padded lane-aligned width

    key = jax.random.PRNGKey(0)
    ks = list(jax.random.split(key, 40))

    def nrm(k, shape, scale=0.1):
        return (jax.random.normal(k, shape) * scale).astype(jnp.float32)

    # per-layer q/k/v/skip weights, fused into one (HID, 4*HID) matmul per layer
    layer_ps = []
    for l in range(LAYERS):
        base = 12 + 8 * l
        layer_ps.append({
            "wq": nrm(ks[base + 0], (HID, HID)), "bq": nrm(ks[base + 1], (1, HID)),
            "wk": nrm(ks[base + 2], (HID, HID)), "bk": nrm(ks[base + 3], (1, HID)),
            "wv": nrm(ks[base + 4], (HID, HID)), "bv": nrm(ks[base + 5], (1, HID)),
            "ws": nrm(ks[base + 6], (HID, HID)), "bs": nrm(ks[base + 7], (1, HID)),
        })
    wqkvs = jnp.stack([jnp.concatenate([lp["wq"], lp["wk"], lp["wv"], lp["ws"]], axis=1)
                       for lp in layer_ps])                       # [L, HID, 4*HID]
    bqkvs = jnp.stack([jnp.concatenate([lp["bq"], lp["bk"], lp["bv"], lp["bs"]], axis=1)
                       for lp in layer_ps])                       # [L, 1, 4*HID]

    # edge predictor weights (hidden zero-padded 100 -> 128; math is bit-identical)
    ep_ws, ep_bs = nrm(ks[5], (D_PRED, EP_HID)), nrm(ks[6], (1, EP_HID))
    ep_wd, ep_bd = nrm(ks[7], (D_PRED, EP_HID)), nrm(ks[8], (1, EP_HID))
    ep_wo, ep_bo = nrm(ks[9], (EP_HID, 1)), nrm(ks[10], (1, 1))
    pad_c = EP_PAD - EP_HID
    ep_ws_p = jnp.pad(ep_ws, ((0, 0), (0, pad_c)))
    ep_bs_p = jnp.pad(ep_bs, ((0, 0), (0, pad_c)))
    ep_wd_p = jnp.pad(ep_wd, ((0, 0), (0, pad_c)))
    ep_bd_p = jnp.pad(ep_bd, ((0, 0), (0, pad_c)))
    ep_wo_p = jnp.pad(ep_wo, ((0, pad_c), (0, 0)))

    arrays = {
        "time_freqs": (1.0 / 10.0 ** jnp.linspace(0.0, 9.0, T_DIM)).astype(jnp.float32)[None, :],
        "w_feat": nrm(ks[0], (F_IN, HID)),
        "w_time": nrm(ks[1], (T_DIM, HID)),
        "b_feat": nrm(ks[2], (1, HID)),
        "wqkvs": wqkvs,
        "bqkvs": bqkvs,
        "ln_w": jnp.ones((1, HID), jnp.float32),
        "ln_b": jnp.zeros((1, HID), jnp.float32),
        "w_head": nrm(ks[3], (HID, OUT)),
        "b_head": nrm(ks[4], (1, OUT)),
        "ep_wsd": jnp.concatenate([ep_ws_p, ep_wd_p], axis=1),    # [OUT, 2*EP_PAD]
        "ep_bsd": jnp.concatenate([ep_bs_p, ep_bd_p], axis=1),    # [1, 2*EP_PAD]
        "ep_wo": ep_wo_p,                                         # [EP_PAD, 1]
        "ep_bo": ep_bo,                                           # [1, 1]
    }

    params = {
        "per_graph_size": PER_GRAPH,
        "arrays": arrays,
        "fused_forward": make_fused_forward(BATCH, NEG_SAMPLES),
    }

    # inputs: each of the 12 nodes keeps 6 of its 8 temporal-neighbor slots
    inds = np.array([b * PER_GRAPH + j for b in range(BATCH) for j in range(6)], dtype=np.int32)
    N = len(inds)                                  # 72
    edge_feats = jax.random.normal(ks[30], (N, F_IN)).astype(jnp.float32)
    edge_ts = (jnp.abs(jax.random.normal(ks[31], (N, 1))) * 10.0).astype(jnp.float32)
    has_temporal_neighbors = [True] * BATCH
    node_feats = None                              # node_feats_dim == 0 branch

    model_inputs = (edge_feats, edge_ts, BATCH, inds)
    loss, acc, auc = mixer_per_node_forward(params, model_inputs,
                                            has_temporal_neighbors, NEG_SAMPLES, node_feats)
    jax.block_until_ready(loss)
    _ = float(loss), float(acc), float(auc)
    print("KERNEL_OK")
</pallas_src>

<mosaic_0001>
module attributes {stable_mosaic.version = 11 : i64} {
  func.func @kernel(%arg0: memref<72x8xf32, #tpu.memory_space<vmem>>, %arg1: memref<72x1xf32, #tpu.memory_space<vmem>>, %arg2: memref<1x16xf32, #tpu.memory_space<vmem>>, %arg3: memref<8x32xf32, #tpu.memory_space<vmem>>, %arg4: memref<16x32xf32, #tpu.memory_space<vmem>>, %arg5: memref<1x32xf32, #tpu.memory_space<vmem>>, %arg6: memref<2x32x128xf32, #tpu.memory_space<vmem>>, %arg7: memref<2x1x128xf32, #tpu.memory_space<vmem>>, %arg8: memref<1x72xi32, #tpu.memory_space<vmem>>, %arg9: memref<72x1xi32, #tpu.memory_space<vmem>>, %arg10: memref<1x32xf32, #tpu.memory_space<vmem>>, %arg11: memref<1x32xf32, #tpu.memory_space<vmem>>, %arg12: memref<32x24xf32, #tpu.memory_space<vmem>>, %arg13: memref<1x24xf32, #tpu.memory_space<vmem>>, %arg14: memref<24x256xf32, #tpu.memory_space<vmem>>, %arg15: memref<1x256xf32, #tpu.memory_space<vmem>>, %arg16: memref<128x1xf32, #tpu.memory_space<vmem>>, %arg17: memref<1x1xf32, #tpu.memory_space<vmem>>, %arg18: memref<8x1xf32, #tpu.memory_space<vmem>>) attributes {dimension_semantics = [], scalar_prefetch = 0 : i64, scratch_operands = 0 : i64, tpu.core_type = #tpu.core_type<tc>} {
    %c0 = arith.constant 0 : index
    %c0_0 = arith.constant 0 : index
    %0 = vector.load %arg1[%c0, %c0_0] : memref<72x1xf32, #tpu.memory_space<vmem>>, vector<72x1xf32>
    %c0_1 = arith.constant 0 : index
    %c0_2 = arith.constant 0 : index
    %1 = vector.load %arg2[%c0_1, %c0_2] : memref<1x16xf32, #tpu.memory_space<vmem>>, vector<1x16xf32>
    %2 = vector.broadcast %0 : vector<72x1xf32> to vector<72x16xf32>
    %3 = vector.broadcast %1 : vector<1x16xf32> to vector<72x16xf32>
    %4 = arith.mulf %2, %3 : vector<72x16xf32>
    %5 = math.cos %4 : vector<72x16xf32>
    %c0_3 = arith.constant 0 : index
    %c0_4 = arith.constant 0 : index
    %6 = vector.load %arg0[%c0_3, %c0_4] : memref<72x8xf32, #tpu.memory_space<vmem>>, vector<72x8xf32>
    %c0_5 = arith.constant 0 : index
    %c0_6 = arith.constant 0 : index
    %7 = vector.load %arg3[%c0_5, %c0_6] : memref<8x32xf32, #tpu.memory_space<vmem>>, vector<8x32xf32>
    %cst = arith.constant dense<0.000000e+00> : vector<72x32xf32>
    %8 = tpu.matmul %6, %7, %cst {dimension_numbers = #tpu.dot_dimension_numbers<[1], [0], [0], [1], [0, 0, 1, 1], [], []>} : vector<72x8xf32>, vector<8x32xf32>, vector<72x32xf32> -> vector<72x32xf32>
    %c0_7 = arith.constant 0 : index
    %c0_8 = arith.constant 0 : index
    %9 = vector.load %arg4[%c0_7, %c0_8] : memref<16x32xf32, #tpu.memory_space<vmem>>, vector<16x32xf32>
    %cst_9 = arith.constant dense<0.000000e+00> : vector<72x32xf32>
    %10 = tpu.matmul %5, %9, %cst_9 {dimension_numbers = #tpu.dot_dimension_numbers<[1], [0], [0], [1], [0, 0, 1, 1], [], []>} : vector<72x16xf32>, vector<16x32xf32>, vector<72x32xf32> -> vector<72x32xf32>
    %11 = arith.addf %8, %10 : vector<72x32xf32>
    %c0_10 = arith.constant 0 : index
    %c0_11 = arith.constant 0 : index
    %12 = vector.load %arg5[%c0_10, %c0_11] : memref<1x32xf32, #tpu.memory_space<vmem>>, vector<1x32xf32>
    %13 = vector.broadcast %12 : vector<1x32xf32> to vector<72x32xf32>
    %14 = arith.addf %11, %13 : vector<72x32xf32>
    %c0_12 = arith.constant 0 : index
    %c0_13 = arith.constant 0 : index
    %15 = vector.load %arg9[%c0_12, %c0_13] : memref<72x1xi32, #tpu.memory_space<vmem>>, vector<72x1xi32>
    %c0_14 = arith.constant 0 : index
    %c0_15 = arith.constant 0 : index
    %16 = vector.load %arg8[%c0_14, %c0_15] : memref<1x72xi32, #tpu.memory_space<vmem>>, vector<1x72xi32>
    %17 = vector.broadcast %15 : vector<72x1xi32> to vector<72x72xi32>
    %18 = vector.broadcast %16 : vector<1x72xi32> to vector<72x72xi32>
    %19 = arith.cmpi eq, %17, %18 : vector<72x72xi32>
    %c0_16 = arith.constant 0 : index
    %c0_17 = arith.constant 0 : index
    %c0_18 = arith.constant 0 : index
    %20 = vector.load %arg6[%c0_16, %c0_17, %c0_18] : memref<2x32x128xf32, #tpu.memory_space<vmem>>, vector<1x32x128xf32>
    %21 = vector.shape_cast %20 : vector<1x32x128xf32> to vector<32x128xf32>
    %cst_19 = arith.constant dense<0.000000e+00> : vector<72x128xf32>
    %22 = tpu.matmul %14, %21, %cst_19 {dimension_numbers = #tpu.dot_dimension_numbers<[1], [0], [0], [1], [0, 0, 1, 1], [], []>} : vector<72x32xf32>, vector<32x128xf32>, vector<72x128xf32> -> vector<72x128xf32>
    %c0_20 = arith.constant 0 : index
    %c0_21 = arith.constant 0 : index
    %c0_22 = arith.constant 0 : index
    %23 = vector.load %arg7[%c0_20, %c0_21, %c0_22] : memref<2x1x128xf32, #tpu.memory_space<vmem>>, vector<1x1x128xf32>
    %24 = vector.shape_cast %23 : vector<1x1x128xf32> to vector<1x128xf32>
    %25 = vector.broadcast %24 : vector<1x128xf32> to vector<72x128xf32>
    %26 = arith.addf %22, %25 : vector<72x128xf32>
    %27 = vector.extract_strided_slice %26 {offsets = [0, 0], sizes = [72, 32], strides = [1, 1]} : vector<72x128xf32> to vector<72x32xf32>
    %cst_23 = arith.constant 0.176776692 : f32
    %28 = vector.broadcast %cst_23 : f32 to vector<72x32xf32>
    %29 = arith.mulf %27, %28 : vector<72x32xf32>
    %30 = vector.extract_strided_slice %26 {offsets = [0, 32], sizes = [72, 32], strides = [1, 1]} : vector<72x128xf32> to vector<72x32xf32>
    %31 = vector.extract_strided_slice %26 {offsets = [0, 64], sizes = [72, 32], strides = [1, 1]} : vector<72x128xf32> to vector<72x32xf32>
    %32 = vector.extract_strided_slice %26 {offsets = [0, 96], sizes = [72, 32], strides = [1, 1]} : vector<72x128xf32> to vector<72x32xf32>
    %cst_24 = arith.constant dense<0.000000e+00> : vector<72x72xf32>
    %33 = tpu.matmul %29, %30, %cst_24 {dimension_numbers = #tpu.dot_dimension_numbers<[1], [1], [0], [0], [0, 0, 1, 0], [], []>} : vector<72x32xf32>, vector<72x32xf32>, vector<72x72xf32> -> vector<72x72xf32>
    %cst_25 = arith.constant -1.000000e+30 : f32
    %34 = vector.broadcast %cst_25 : f32 to vector<72x72xf32>
    %35 = arith.select %19, %33, %34 : vector<72x72xi1>, vector<72x72xf32>
    %cst_26 = arith.constant dense<0xFF800000> : vector<72xf32>
    %36 = vector.multi_reduction <maximumf>, %35, %cst_26 [1] : vector<72x72xf32> to vector<72xf32>
    %37 = vector.shape_cast %36 : vector<72xf32> to vector<72x1xf32>
    %38 = vector.broadcast %37 : vector<72x1xf32> to vector<72x72xf32>
    %39 = arith.subf %35, %38 : vector<72x72xf32>
    %40 = math.exp %39 : vector<72x72xf32>
    %cst_27 = arith.constant dense<0.000000e+00> : vector<72xf32>
    %41 = vector.multi_reduction <add>, %40, %cst_27 [1] : vector<72x72xf32> to vector<72xf32>
    %42 = vector.shape_cast %41 : vector<72xf32> to vector<72x1xf32>
    %43 = tpu.reciprocal %42 {approx = true} : vector<72x1xf32> -> vector<72x1xf32>
    %44 = vector.broadcast %43 : vector<72x1xf32> to vector<72x72xf32>
    %45 = arith.mulf %40, %44 : vector<72x72xf32>
    %cst_28 = arith.constant dense<0.000000e+00> : vector<72x32xf32>
    %46 = tpu.matmul %45, %31, %cst_28 {dimension_numbers = #tpu.dot_dimension_numbers<[1], [0], [0], [1], [0, 0, 1, 1], [], []>} : vector<72x72xf32>, vector<72x32xf32>, vector<72x32xf32> -> vector<72x32xf32>
    %47 = arith.addf %14, %46 : vector<72x32xf32>
    %48 = arith.addf %47, %32 : vector<72x32xf32>
    %c1 = arith.constant 1 : index
    %c0_29 = arith.constant 0 : index
    %c0_30 = arith.constant 0 : index
    %49 = vector.load %arg6[%c1, %c0_29, %c0_30] : memref<2x32x128xf32, #tpu.memory_space<vmem>>, vector<1x32x128xf32>
    %50 = vector.shape_cast %49 : vector<1x32x128xf32> to vector<32x128xf32>
    %cst_31 = arith.constant dense<0.000000e+00> : vector<72x128xf32>
    %51 = tpu.matmul %48, %50, %cst_31 {dimension_numbers = #tpu.dot_dimension_numbers<[1], [0], [0], [1], [0, 0, 1, 1], [], []>} : vector<72x32xf32>, vector<32x128xf32>, vector<72x128xf32> -> vector<72x128xf32>
    %c1_32 = arith.constant 1 : index
    %c0_33 = arith.constant 0 : index
    %c0_34 = arith.constant 0 : index
    %52 = vector.load %arg7[%c1_32, %c0_33, %c0_34] : memref<2x1x128xf32, #tpu.memory_space<vmem>>, vector<1x1x128xf32>
    %53 = vector.shape_cast %52 : vector<1x1x128xf32> to vector<1x128xf32>
    %54 = vector.broadcast %53 : vector<1x128xf32> to vector<72x128xf32>
    %55 = arith.addf %51, %54 : vector<72x128xf32>
    %56 = vector.extract_strided_slice %55 {offsets = [0, 0], sizes = [72, 32], strides = [1, 1]} : vector<72x128xf32> to vector<72x32xf32>
    %cst_35 = arith.constant 0.176776692 : f32
    %57 = vector.broadcast %cst_35 : f32 to vector<72x32xf32>
    %58 = arith.mulf %56, %57 : vector<72x32xf32>
    %59 = vector.extract_strided_slice %55 {offsets = [0, 32], sizes = [72, 32], strides = [1, 1]} : vector<72x128xf32> to vector<72x32xf32>
    %60 = vector.extract_strided_slice %55 {offsets = [0, 64], sizes = [72, 32], strides = [1, 1]} : vector<72x128xf32> to vector<72x32xf32>
    %61 = vector.extract_strided_slice %55 {offsets = [0, 96], sizes = [72, 32], strides = [1, 1]} : vector<72x128xf32> to vector<72x32xf32>
    %cst_36 = arith.constant dense<0.000000e+00> : vector<72x72xf32>
    %62 = tpu.matmul %58, %59, %cst_36 {dimension_numbers = #tpu.dot_dimension_numbers<[1], [1], [0], [0], [0, 0, 1, 0], [], []>} : vector<72x32xf32>, vector<72x32xf32>, vector<72x72xf32> -> vector<72x72xf32>
    %cst_37 = arith.constant -1.000000e+30 : f32
    %63 = vector.broadcast %cst_37 : f32 to vector<72x72xf32>
    %64 = arith.select %19, %62, %63 : vector<72x72xi1>, vector<72x72xf32>
    %cst_38 = arith.constant dense<0xFF800000> : vector<72xf32>
    %65 = vector.multi_reduction <maximumf>, %64, %cst_38 [1] : vector<72x72xf32> to vector<72xf32>
    %66 = vector.shape_cast %65 : vector<72xf32> to vector<72x1xf32>
    %67 = vector.broadcast %66 : vector<72x1xf32> to vector<72x72xf32>
    %68 = arith.subf %64, %67 : vector<72x72xf32>
    %69 = math.exp %68 : vector<72x72xf32>
    %cst_39 = arith.constant dense<0.000000e+00> : vector<72xf32>
    %70 = vector.multi_reduction <add>, %69, %cst_39 [1] : vector<72x72xf32> to vector<72xf32>
    %71 = vector.shape_cast %70 : vector<72xf32> to vector<72x1xf32>
    %72 = tpu.reciprocal %71 {approx = true} : vector<72x1xf32> -> vector<72x1xf32>
    %73 = vector.broadcast %72 : vector<72x1xf32> to vector<72x72xf32>
    %74 = arith.mulf %69, %73 : vector<72x72xf32>
    %cst_40 = arith.constant dense<0.000000e+00> : vector<72x32xf32>
    %75 = tpu.matmul %74, %60, %cst_40 {dimension_numbers = #tpu.dot_dimension_numbers<[1], [0], [0], [1], [0, 0, 1, 1], [], []>} : vector<72x72xf32>, vector<72x32xf32>, vector<72x32xf32> -> vector<72x32xf32>
    %76 = arith.addf %48, %75 : vector<72x32xf32>
    %77 = arith.addf %76, %61 : vector<72x32xf32>
    %cst_41 = arith.constant dense<0.000000e+00> : vector<72xf32>
    %78 = vector.multi_reduction <add>, %77, %cst_41 [1] : vector<72x32xf32> to vector<72xf32>
    %79 = vector.shape_cast %78 : vector<72xf32> to vector<72x1xf32>
    %cst_42 = arith.constant 3.200000e+01 : f32
    %80 = vector.broadcast %cst_42 : f32 to vector<72x1xf32>
    %81 = arith.divf %79, %80 : vector<72x1xf32>
    %82 = vector.broadcast %81 : vector<72x1xf32> to vector<72x32xf32>
    %83 = arith.subf %77, %82 : vector<72x32xf32>
    %84 = arith.mulf %83, %83 : vector<72x32xf32>
    %cst_43 = arith.constant dense<0.000000e+00> : vector<72xf32>
    %85 = vector.multi_reduction <add>, %84, %cst_43 [1] : vector<72x32xf32> to vector<72xf32>
    %86 = vector.shape_cast %85 : vector<72xf32> to vector<72x1xf32>
    %cst_44 = arith.constant 3.200000e+01 : f32
    %87 = vector.broadcast %cst_44 : f32 to vector<72x1xf32>
    %88 = arith.divf %86, %87 : vector<72x1xf32>
    %89 = vector.broadcast %81 : vector<72x1xf32> to vector<72x32xf32>
    %90 = arith.subf %77, %89 : vector<72x32xf32>
    %cst_45 = arith.constant 9.99999974E-6 : f32
    %91 = vector.broadcast %cst_45 : f32 to vector<72x1xf32>
    %92 = arith.addf %88, %91 : vector<72x1xf32>
    %93 = math.rsqrt %92 : vector<72x1xf32>
    %94 = vector.broadcast %93 : vector<72x1xf32> to vector<72x32xf32>
    %95 = arith.mulf %90, %94 : vector<72x32xf32>
    %c0_46 = arith.constant 0 : index
    %c0_47 = arith.constant 0 : index
    %96 = vector.load %arg10[%c0_46, %c0_47] : memref<1x32xf32, #tpu.memory_space<vmem>>, vector<1x32xf32>
    %97 = vector.broadcast %96 : vector<1x32xf32> to vector<72x32xf32>
    %98 = arith.mulf %95, %97 : vector<72x32xf32>
    %c0_48 = arith.constant 0 : index
    %c0_49 = arith.constant 0 : index
    %99 = vector.load %arg11[%c0_48, %c0_49] : memref<1x32xf32, #tpu.memory_space<vmem>>, vector<1x32xf32>
    %100 = vector.broadcast %99 : vector<1x32xf32> to vector<72x32xf32>
    %101 = arith.addf %98, %100 : vector<72x32xf32>
    %102 = tpu.iota {dimensions = array<i32: 0>} : vector<12x72xi32>
    %c0_50 = arith.constant 0 : index
    %c0_51 = arith.constant 0 : index
    %103 = vector.load %arg8[%c0_50, %c0_51] : memref<1x72xi32, #tpu.memory_space<vmem>>, vector<1x72xi32>
    %104 = vector.broadcast %103 : vector<1x72xi32> to vector<12x72xi32>
    %105 = arith.cmpi eq, %102, %104 : vector<12x72xi32>
    %106 = arith.extui %105 : vector<12x72xi1> to vector<12x72xi32>
    %107 = arith.sitofp %106 : vector<12x72xi32> to vector<12x72xf32>
    %cst_52 = arith.constant dense<0.000000e+00> : vector<12xf32>
    %108 = vector.multi_reduction <add>, %107, %cst_52 [1] : vector<12x72xf32> to vector<12xf32>
    %109 = vector.shape_cast %108 : vector<12xf32> to vector<12x1xf32>
    %cst_53 = arith.constant dense<0.000000e+00> : vector<12x32xf32>
    %110 = tpu.matmul %107, %101, %cst_53 {dimension_numbers = #tpu.dot_dimension_numbers<[1], [0], [0], [1], [0, 0, 1, 1], [], []>} : vector<12x72xf32>, vector<72x32xf32>, vector<12x32xf32> -> vector<12x32xf32>
    %cst_54 = arith.constant 1.000000e+00 : f32
    %111 = vector.broadcast %cst_54 : f32 to vector<12x1xf32>
    %112 = arith.maximumf %109, %111 : vector<12x1xf32>
    %113 = tpu.reciprocal %112 {approx = true} : vector<12x1xf32> -> vector<12x1xf32>
    %114 = vector.broadcast %113 : vector<12x1xf32> to vector<12x32xf32>
    %115 = arith.mulf %110, %114 : vector<12x32xf32>
    %c0_55 = arith.constant 0 : index
    %c0_56 = arith.constant 0 : index
    %116 = vector.load %arg12[%c0_55, %c0_56] : memref<32x24xf32, #tpu.memory_space<vmem>>, vector<32x24xf32>
    %cst_57 = arith.constant dense<0.000000e+00> : vector<12x24xf32>
    %117 = tpu.matmul %115, %116, %cst_57 {dimension_numbers = #tpu.dot_dimension_numbers<[1], [0], [0], [1], [0, 0, 1, 1], [], []>} : vector<12x32xf32>, vector<32x24xf32>, vector<12x24xf32> -> vector<12x24xf32>
    %c0_58 = arith.constant 0 : index
    %c0_59 = arith.constant 0 : index
    %118 = vector.load %arg13[%c0_58, %c0_59] : memref<1x24xf32, #tpu.memory_space<vmem>>, vector<1x24xf32>
    %119 = vector.broadcast %118 : vector<1x24xf32> to vector<12x24xf32>
    %120 = arith.addf %117, %119 : vector<12x24xf32>
    %cst_60 = arith.constant 0.000000e+00 : f32
    %121 = vector.broadcast %cst_60 : f32 to vector<12x1xf32>
    %122 = arith.cmpf ogt, %109, %121 : vector<12x1xf32>
    %cst_61 = arith.constant 0.000000e+00 : f32
    %123 = vector.shape_cast %122 : vector<12x1xi1> to vector<12x1xi1>
    %124 = vector.broadcast %123 : vector<12x1xi1> to vector<12x24xi1>
    %125 = vector.broadcast %cst_61 : f32 to vector<12x24xf32>
    %126 = arith.select %124, %120, %125 : vector<12x24xi1>, vector<12x24xf32>
    %c0_62 = arith.constant 0 : index
    %c0_63 = arith.constant 0 : index
    %127 = vector.load %arg14[%c0_62, %c0_63] : memref<24x256xf32, #tpu.memory_space<vmem>>, vector<24x256xf32>
    %cst_64 = arith.constant dense<0.000000e+00> : vector<12x256xf32>
    %128 = tpu.matmul %126, %127, %cst_64 {dimension_numbers = #tpu.dot_dimension_numbers<[1], [0], [0], [1], [0, 0, 1, 1], [], []>} : vector<12x24xf32>, vector<24x256xf32>, vector<12x256xf32> -> vector<12x256xf32>
    %c0_65 = arith.constant 0 : index
    %c0_66 = arith.constant 0 : index
    %129 = vector.load %arg15[%c0_65, %c0_66] : memref<1x256xf32, #tpu.memory_space<vmem>>, vector<1x256xf32>
    %130 = vector.broadcast %129 : vector<1x256xf32> to vector<12x256xf32>
    %131 = arith.addf %128, %130 : vector<12x256xf32>
    %132 = vector.extract_strided_slice %131 {offsets = [0, 0], sizes = [4, 128], strides = [1, 1]} : vector<12x256xf32> to vector<4x128xf32>
    %133 = vector.extract_strided_slice %131 {offsets = [4, 128], sizes = [4, 128], strides = [1, 1]} : vector<12x256xf32> to vector<4x128xf32>
    %134 = vector.extract_strided_slice %131 {offsets = [8, 128], sizes = [4, 128], strides = [1, 1]} : vector<12x256xf32> to vector<4x128xf32>
    %135 = arith.addf %132, %133 : vector<4x128xf32>
    %cst_67 = arith.constant 0.000000e+00 : f32
    %136 = vector.broadcast %cst_67 : f32 to vector<4x128xf32>
    %137 = arith.maximumf %135, %136 : vector<4x128xf32>
    %138 = arith.addf %132, %134 : vector<4x128xf32>
    %cst_68 = arith.constant 0.000000e+00 : f32
    %139 = vector.broadcast %cst_68 : f32 to vector<4x128xf32>
    %140 = arith.maximumf %138, %139 : vector<4x128xf32>
    %141 = tpu.concatenate %137, %140 in 0 : vector<4x128xf32>, vector<4x128xf32> -> vector<8x128xf32>
    %c0_69 = arith.constant 0 : index
    %c0_70 = arith.constant 0 : index
    %142 = vector.load %arg16[%c0_69, %c0_70] : memref<128x1xf32, #tpu.memory_space<vmem>>, vector<128x1xf32>
    %cst_71 = arith.constant dense<0.000000e+00> : vector<8x1xf32>
    %143 = tpu.matmul %141, %142, %cst_71 {dimension_numbers = #tpu.dot_dimension_numbers<[1], [0], [0], [1], [0, 0, 1, 1], [], []>} : vector<8x128xf32>, vector<128x1xf32>, vector<8x1xf32> -> vector<8x1xf32>
    %c0_72 = arith.constant 0 : index
    %c0_73 = arith.constant 0 : index
    %144 = vector.load %arg17[%c0_72, %c0_73] : memref<1x1xf32, #tpu.memory_space<vmem>>, vector<1x1xf32>
    %145 = vector.broadcast %144 : vector<1x1xf32> to vector<8x1xf32>
    %146 = arith.addf %143, %145 : vector<8x1xf32>
    %c0_74 = arith.constant 0 : index
    %c0_75 = arith.constant 0 : index
    %147 = vector.load %arg18[%c0_74, %c0_75] : memref<8x1xf32, #tpu.memory_space<vmem>>, vector<8x1xf32>
    tpu.vector_store %arg18[%c0_74, %c0_75], %146 {strides = array<i32>} : memref<8x1xf32, #tpu.memory_space<vmem>>, vector<8x1xf32>,
    return
  }
}

</mosaic_0001>

<llo_original>
// kernel: device_step.1
$region0: #{device_step.1}
  #allocation0 [shape = 'u32[]', space=smem, size = 0x4, offset = 0x4, fixed_abs, tag = 'smem constant byte address 0x4 - core index']
  #allocation1 [shape = 'u32[144,128]{1,0:T(1,128)}', space=vmem, size = 0x12000, scoped, tag = 'internal scratch']
  #allocation2 [shape = 'f32[1,1]{1,0:T(1,128)S(1)}', space=vmem, size = 0x200, scoped, tag = 'scoped memory for device_step.1']
  %s0 = inlined_call_operand.vmem [shape: f32[72,8], index: 0, kind: input, shape index: {}]
  %s1 = inlined_call_operand.vmem [shape: f32[72,1], index: 1, kind: input, shape index: {}]
  %s2 = inlined_call_operand.vmem [shape: f32[1,16], index: 2, kind: input, shape index: {}]
  %s3 = inlined_call_operand.vmem [shape: f32[8,32], index: 3, kind: input, shape index: {}]
  %s4 = inlined_call_operand.vmem [shape: f32[16,32], index: 4, kind: input, shape index: {}]
  %s5 = inlined_call_operand.vmem [shape: f32[1,32], index: 5, kind: input, shape index: {}]
  %s6 = inlined_call_operand.vmem [shape: f32[2,32,128], index: 6, kind: input, shape index: {}]
  %s7 = inlined_call_operand.vmem [shape: f32[2,1,128], index: 7, kind: input, shape index: {}]
  %s8 = inlined_call_operand.vmem [shape: s32[1,72], index: 8, kind: input, shape index: {}]
  %s9 = inlined_call_operand.vmem [shape: s32[72,1], index: 9, kind: input, shape index: {}]
  %s10 = inlined_call_operand.vmem [shape: f32[1,32], index: 10, kind: input, shape index: {}]
  %s11 = inlined_call_operand.vmem [shape: f32[1,32], index: 11, kind: input, shape index: {}]
  %s12 = inlined_call_operand.vmem [shape: f32[32,24], index: 12, kind: input, shape index: {}]
  %s13 = inlined_call_operand.vmem [shape: f32[1,24], index: 13, kind: input, shape index: {}]
  %s14 = inlined_call_operand.vmem [shape: f32[24,256], index: 14, kind: input, shape index: {}]
  %s15 = inlined_call_operand.vmem [shape: f32[1,256], index: 15, kind: input, shape index: {}]
  %s16 = inlined_call_operand.vmem [shape: f32[128,1], index: 16, kind: input, shape index: {}]
  %s17 = inlined_call_operand.<no memory space> [shape: f32[1,1], index: 17, kind: input, shape index: {}]
  %s18 = inlined_call_operand.vmem [shape: f32[8,1], index: 18, kind: output, shape index: {}]
  %s19 = sld [smem:[#allocation0]]
  $region82: #{device_step.1} parent=0
    _
  %s21 = ssub.s32 1, %s19
  %s22 = scalar_select 0, %s21, %s19
  %v23 = vstv %s17
  %24 = vst [vmem:[#allocation2] sm:$0x1] %v23
  // Predicated region
  $region2: #{device_step.1} parent=0 // pred_check
    _
  $region3: #{device_step.1} parent=0 // pred_check_branch
    %26 = sbr.rel (0) target = $region5
  $region4: #{device_step.1} parent=0 // pred_region
    _
  $region5: #{device_step.1} parent=0 // pred_fallthru
    _
  // Predicated region
  $region6: #{device_step.1} parent=0 // pred_check
    _
  $region7: #{device_step.1} parent=0 // pred_check_branch
    %28 = sbr.rel (0) target = $region9
  $region8: #{device_step.1} parent=0 // pred_region
    _
  $region9: #{device_step.1} parent=0 // pred_fallthru
    _
  // Predicated region
  $region10: #{device_step.1} parent=0 // pred_check
    _
  $region11: #{device_step.1} parent=0 // pred_check_branch
    %30 = sbr.rel (0) target = $region13
  $region12: #{device_step.1} parent=0 // pred_region
    _
  $region13: #{device_step.1} parent=0 // pred_fallthru
    _
  // Predicated region
  $region14: #{device_step.1} parent=0 // pred_check
    _
  $region15: #{device_step.1} parent=0 // pred_check_branch
    %32 = sbr.rel (0) target = $region17
  $region16: #{device_step.1} parent=0 // pred_region
    _
  $region17: #{device_step.1} parent=0 // pred_fallthru
    _
  // Predicated region
  $region18: #{device_step.1} parent=0 // pred_check
    _
  $region19: #{device_step.1} parent=0 // pred_check_branch
    %34 = sbr.rel (0) target = $region21
  $region20: #{device_step.1} parent=0 // pred_region
    _
  $region21: #{device_step.1} parent=0 // pred_fallthru
    _
  // Predicated region
  $region22: #{device_step.1} parent=0 // pred_check
    _
  $region23: #{device_step.1} parent=0 // pred_check_branch
    %36 = sbr.rel (0) target = $region25
  $region24: #{device_step.1} parent=0 // pred_region
    _
  $region25: #{device_step.1} parent=0 // pred_fallthru
    _
  // Predicated region
  $region26: #{device_step.1} parent=0 // pred_check
    _
  $region27: #{device_step.1} parent=0 // pred_check_branch
    %38 = sbr.rel (0) target = $region29
  $region28: #{device_step.1} parent=0 // pred_region
    _
  $region29: #{device_step.1} parent=0 // pred_fallthru
    _
  // Predicated region
  $region30: #{device_step.1} parent=0 // pred_check
    _
  $region31: #{device_step.1} parent=0 // pred_check_branch
    %40 = sbr.rel (0) target = $region33
  $region32: #{device_step.1} parent=0 // pred_region
    _
  $region33: #{device_step.1} parent=0 // pred_fallthru
    _
  // Predicated region
  $region34: #{device_step.1} parent=0 // pred_check
    _
  $region35: #{device_step.1} parent=0 // pred_check_branch
    %42 = sbr.rel (0) target = $region37
  $region36: #{device_step.1} parent=0 // pred_region
    _
  $region37: #{device_step.1} parent=0 // pred_fallthru
    _
  // Predicated region
  $region38: #{device_step.1} parent=0 // pred_check
    _
  $region39: #{device_step.1} parent=0 // pred_check_branch
    %44 = sbr.rel (0) target = $region41
  $region40: #{device_step.1} parent=0 // pred_region
    _
  $region41: #{device_step.1} parent=0 // pred_fallthru
    _
  // Predicated region
  $region42: #{device_step.1} parent=0 // pred_check
    _
  $region43: #{device_step.1} parent=0 // pred_check_branch
    %46 = sbr.rel (0) target = $region45
  $region44: #{device_step.1} parent=0 // pred_region
    _
  $region45: #{device_step.1} parent=0 // pred_fallthru
    _
  // Predicated region
  $region46: #{device_step.1} parent=0 // pred_check
    _
  $region47: #{device_step.1} parent=0 // pred_check_branch
    %48 = sbr.rel (0) target = $region49
  $region48: #{device_step.1} parent=0 // pred_region
    _
  $region49: #{device_step.1} parent=0 // pred_fallthru
    _
  // Predicated region
  $region50: #{device_step.1} parent=0 // pred_check
    _
  $region51: #{device_step.1} parent=0 // pred_check_branch
    %50 = sbr.rel (0) target = $region53
  $region52: #{device_step.1} parent=0 // pred_region
    _
  $region53: #{device_step.1} parent=0 // pred_fallthru
    _
  // Predicated region
  $region54: #{device_step.1} parent=0 // pred_check
    _
  $region55: #{device_step.1} parent=0 // pred_check_branch
    %52 = sbr.rel (0) target = $region57
  $region56: #{device_step.1} parent=0 // pred_region
    _
  $region57: #{device_step.1} parent=0 // pred_fallthru
    _
  // Predicated region
  $region58: #{device_step.1} parent=0 // pred_check
    _
  $region59: #{device_step.1} parent=0 // pred_check_branch
    %54 = sbr.rel (0) target = $region61
  $region60: #{device_step.1} parent=0 // pred_region
    _
  $region61: #{device_step.1} parent=0 // pred_fallthru
    _
  // Predicated region
  $region62: #{device_step.1} parent=0 // pred_check
    _
  $region63: #{device_step.1} parent=0 // pred_check_branch
    %56 = sbr.rel (0) target = $region65
  $region64: #{device_step.1} parent=0 // pred_region
    _
  $region65: #{device_step.1} parent=0 // pred_fallthru
    _
  // Predicated region
  $region66: #{device_step.1} parent=0 // pred_check
    _
  $region67: #{device_step.1} parent=0 // pred_check_branch
    %58 = sbr.rel (0) target = $region69
  $region68: #{device_step.1} parent=0 // pred_region
    _
  $region69: #{device_step.1} parent=0 // pred_fallthru
    _
  // Predicated region
  $region70: #{device_step.1} parent=0 // pred_check
    _
  $region71: #{device_step.1} parent=0 // pred_check_branch
    %60 = sbr.rel (0) target = $region73
  $region72: #{device_step.1} parent=0 // pred_region
    _
  $region73: #{device_step.1} parent=0 // pred_fallthru
    _
  %v61 = vld [vmem:[%s1] sm:$0xff]
  %v62 = vld [vmem:[%s1 + $0x8] sm:$0xff]
  %v63 = vld [vmem:[%s1 + $0x10] sm:$0xff]
  %v64 = vld [vmem:[%s1 + $0x18] sm:$0xff]
  %v65 = vld [vmem:[%s1 + $0x20] sm:$0xff]
  %v66 = vld [vmem:[%s1 + $0x28] sm:$0xff]
  %v67 = vld [vmem:[%s1 + $0x30] sm:$0xff]
  %v68 = vld [vmem:[%s1 + $0x38] sm:$0xff]
  %v69 = vld [vmem:[%s1 + $0x40] sm:$0xff]
  %v70 = vld [vmem:[%s2] sm:$0x1]
  %72 = vset.pattern.permute.xlu0 0
  %73 = vperm.xlu0 %72, %v61
  %v74 = vpop.permute.xlu0 %73
  %77 = vset.pattern.permute.xlu0 0
  %78 = vperm.xlu0 %77, %v62
  %v79 = vpop.permute.xlu0 %78
  %82 = vset.pattern.permute.xlu0 0
  %83 = vperm.xlu0 %82, %v63
  %v84 = vpop.permute.xlu0 %83
  %87 = vset.pattern.permute.xlu0 0
  %88 = vperm.xlu0 %87, %v64
  %v89 = vpop.permute.xlu0 %88
  %92 = vset.pattern.permute.xlu0 0
  %93 = vperm.xlu0 %92, %v65
  %v94 = vpop.permute.xlu0 %93
  %97 = vset.pattern.permute.xlu0 0
  %98 = vperm.xlu0 %97, %v66
  %v99 = vpop.permute.xlu0 %98
  %102 = vset.pattern.permute.xlu0 0
  %103 = vperm.xlu0 %102, %v67
  %v104 = vpop.permute.xlu0 %103
  %107 = vset.pattern.permute.xlu0 0
  %108 = vperm.xlu0 %107, %v68
  %v109 = vpop.permute.xlu0 %108
  %112 = vset.pattern.permute.xlu0 0
  %113 = vperm.xlu0 %112, %v69
  %v114 = vpop.permute.xlu0 %113
  %v117 = vlaneseq
  %v118 = vshrl.u32 %v117, 7
  %v119 = vsub.s32 0, %v118
  %v120 = vrot.slane %v70, %v119
  %v122 = vmul.f32 %v74, %v120
  %v123 = vmul.f32 %v79, %v120
  %v124 = vmul.f32 %v84, %v120
  %v125 = vmul.f32 %v89, %v120
  %v126 = vmul.f32 %v94, %v120
  %v127 = vmul.f32 %v99, %v120
  %v128 = vmul.f32 %v104, %v120
  %v129 = vmul.f32 %v109, %v120
  %v130 = vmul.f32 %v114, %v120
  %v131 = vand.u32 2147483647, %v122
  %vm132 = vcmp.le.f32.partialorder %v131, 0.7853982
  %vm133 = vcmp.lt.s32.totalorder %v122, 0
  %v134 = vand.u32 %v122, 2139095040
  %v135 = vshrl.u32 %v134, 23
  %v136 = vsub.s32 %v135, 127
  %v137 = vand.u32 2147483647, %v122
  %v138 = vand.u32 %v137, 8388607
  %v139 = vor.u32 %v138, 8388608
  %v140 = vsub.s32 0, %v139
  %v141 = vadd.s32 %v136, 1
  %vm142 = vcmp.gt.s32.totalorder %v141, 0
  %v143 = vsel %vm142, %v141, 0
  %v144 = vshrl.u32 %v143, 5
  %v145 = vand.u32 %v143, 31
  %v146 = vsub.s32 32, %v145
  %v147 = vshrl.u32 683565275, %v146
  %v148 = vshll.u32 683565275, %v145
  %v149 = vshrl.u32 2475754826, %v146
  %v150 = vor.u32 %v148, %v149
  %v151 = vshll.u32 2475754826, %v145
  %v152 = vshrl.u32 2131351028, %v146
  %v153 = vor.u32 %v151, %v152
  %v154 = vshll.u32 2131351028, %v145
  %v155 = vshrl.u32 2102212464, %v146
  %v156 = vor.u32 %v154, %v155
  %v157 = vshll.u32 2102212464, %v145
  %v158 = vshrl.u32 920167782, %v146
  %v159 = vor.u32 %v157, %v158
  %v160 = vshll.u32 920167782, %v145
  %v161 = vshrl.u32 1326507024, %v146
  %v162 = vor.u32 %v160, %v161
  %vm163 = vcmp.lt.s32.totalorder %v144, 1
  %vm164 = vcmp.lt.s32.totalorder %v144, 2
  %vm165 = vcmp.lt.s32.totalorder %v144, 3
  %vm166 = vcmp.lt.s32.totalorder %v144, 4
  %v167 = vsel %vm163, %v147, %v150
  %v168 = vsel %vm166, %v156, 2102212464
  %v169 = vsel %vm165, %v153, %v168
  %v170 = vsel %vm164, %v167, %v169
  %v171 = vsel %vm163, %v150, %v153
  %v172 = vsel %vm166, %v159, 920167782
  %v173 = vsel %vm165, %v156, %v172
  %v174 = vsel %vm164, %v171, %v173
  %v175 = vsel %vm163, %v153, %v156
  %v176 = vsel %vm166, %v162, 1326507024
  %v177 = vsel %vm165, %v159, %v176
  %v178 = vsel %vm164, %v175, %v177
  %v179 = vshll.u32 %v139, 8
  %v180 = vmul.u32.u64.compose %v179, %v178
  %v181 = vextract.low.u32 %v180
  %v182 = vextract.high.u32 %v180
  %v183 = vmul.u32.u64.compose %v179, %v174
  %v184 = vextract.low.u32 %v183
  %v185 = vextract.high.u32 %v183
  %v186 = vmul.u32 %v179, %v170
  %v187 = vadd.s32 %v182, %v184
  %vm188 = vc.u32 %v182, %v184
  %v189 = vadd.s32 %v185, 1
  %v190 = vsel %vm188, %v189, %v185
  %v191 = vadd.s32 %v186, %v190
  %v192 = vadd.s32 %v191, 536870912
  %v193 = vshrl.u32 %v192, 30
  %v194 = vshll.u32 %v193, 30
  %v195 = vsub.s32 %v191, %v194
  %vm196 = vcmp.lt.s32.totalorder %v195, 0
  %v197 = vsub.s32 0, %v195
  %v198 = vsel %vm196, %v197, %v195
  %v199 = vclz %v198
  %v200 = vsub.s32 %v199, 2
  %vm201 = vcmp.gt.s32.totalorder 0, %v200
  %v202 = vsel %vm201, 0, %v200
  %v203 = vsub.s32 32, %v202
  %v204 = vshll.u32 %v195, %v202
  %v205 = vshrl.u32 %v187, %v203
  %v206 = vor.u32 %v204, %v205
  %v207 = vsub.s32 4294967266, %v202
  %v208 = vadd.s32 %v207, 127
  %v209 = vshll.u32 %v208, 23
  %v210 = vor.u32 4788187, %v209
  %v211 = vand.u32 2147483647, %v210
  %v213 = vcvt.s32.f32 %v206
  %v214 = vmul.f32 %v213, %v211
  %v215 = vxor.u32 %v214, 2147483648
  %v216 = vsel %vm133, %v215, %v214
  %v217 = vsub.s32 4, %v193
  %v218 = vsel %vm133, %v217, %v193
  %v219 = vsel %vm132, %v122, %v216
  %v220 = vsel %vm132, 0, %v218
  %v221 = vcosq.f32.pop %v219
  %v222 = vsinq.f32.pop %v219
  %vm223 = vweird.f32 %v122
  %v224 = vand.u32 %v220, 3
  %vm225 = vcmp.lt.s32.totalorder %v224, 2
  %vm226 = vcmp.eq.s32.totalorder %v224, 0
  %v227 = vxor.u32 %v222, 2147483648
  %v228 = vsel %vm226, %v221, %v227
  %vm229 = vcmp.eq.s32.totalorder %v224, 2
  %v230 = vxor.u32 %v221, 2147483648
  %v231 = vsel %vm229, %v230, %v222
  %v232 = vsel %vm225, %v228, %v231
  %v233 = vsel %vm223, nan, %v232
  %v234 = vand.u32 2147483647, %v123
  %vm235 = vcmp.le.f32.partialorder %v234, 0.7853982
  %vm236 = vcmp.lt.s32.totalorder %v123, 0
  %v237 = vand.u32 %v123, 2139095040
  %v238 = vshrl.u32 %v237, 23
  %v239 = vsub.s32 %v238, 127
  %v240 = vand.u32 2147483647, %v123
  %v241 = vand.u32 %v240, 8388607
  %v242 = vor.u32 %v241, 8388608
  %v243 = vsub.s32 0, %v242
  %v244 = vadd.s32 %v239, 1
  %vm245 = vcmp.gt.s32.totalorder %v244, 0
  %v246 = vsel %vm245, %v244, 0
  %v247 = vshrl.u32 %v246, 5
  %v248 = vand.u32 %v246, 31
  %v249 = vsub.s32 32, %v248
  %v250 = vshrl.u32 683565275, %v249
  %v251 = vshll.u32 683565275, %v248
  %v252 = vshrl.u32 2475754826, %v249
  %v253 = vor.u32 %v251, %v252
  %v254 = vshll.u32 2475754826, %v248
  %v255 = vshrl.u32 2131351028, %v249
  %v256 = vor.u32 %v254, %v255
  %v257 = vshll.u32 2131351028, %v248
  %v258 = vshrl.u32 2102212464, %v249
  %v259 = vor.u32 %v257, %v258
  %v260 = vshll.u32 2102212464, %v248
  %v261 = vshrl.u32 920167782, %v249
  %v262 = vor.u32 %v260, %v261
  %v263 = vshll.u32 920167782, %v248
  %v264 = vshrl.u32 1326507024, %v249
  %v265 = vor.u32 %v263, %v264
  %vm266 = vcmp.lt.s32.totalorder %v247, 1
  %vm267 = vcmp.lt.s32.totalorder %v247, 2
  %vm268 = vcmp.lt.s32.totalorder %v247, 3
  %vm269 = vcmp.lt.s32.totalorder %v247, 4
  %v270 = vsel %vm266, %v250, %v253
  %v271 = vsel %vm269, %v259, 2102212464
  %v272 = vsel %vm268, %v256, %v271
  %v273 = vsel %vm267, %v270, %v272
  %v274 = vsel %vm266, %v253, %v256
  %v275 = vsel %vm269, %v262, 920167782
  %v276 = vsel %vm268, %v259, %v275
  %v277 = vsel %vm267, %v274, %v276
  %v278 = vsel %vm266, %v256, %v259
  %v279 = vsel %vm269, %v265, 1326507024
  %v280 = vsel %vm268, %v262, %v279
  %v281 = vsel %vm267, %v278, %v280
  %v282 = vshll.u32 %v242, 8
  %v283 = vmul.u32.u64.compose %v282, %v281
  %v284 = vextract.low.u32 %v283
  %v285 = vextract.high.u32 %v283
  %v286 = vmul.u32.u64.compose %v282, %v277
  %v287 = vextract.low.u32 %v286
  %v288 = vextract.high.u32 %v286
  %v289 = vmul.u32 %v282, %v273
  %v290 = vadd.s32 %v285, %v287
  %vm291 = vc.u32 %v285, %v287
  %v292 = vadd.s32 %v288, 1
  %v293 = vsel %vm291, %v292, %v288
  %v294 = vadd.s32 %v289, %v293
  %v295 = vadd.s32 %v294, 536870912
  %v296 = vshrl.u32 %v295, 30
  %v297 = vshll.u32 %v296, 30
  %v298 = vsub.s32 %v294, %v297
  %vm299 = vcmp.lt.s32.totalorder %v298, 0
  %v300 = vsub.s32 0, %v298
  %v301 = vsel %vm299, %v300, %v298
  %v302 = vclz %v301
  %v303 = vsub.s32 %v302, 2
  %vm304 = vcmp.gt.s32.totalorder 0, %v303
  %v305 = vsel %vm304, 0, %v303
  %v306 = vsub.s32 32, %v305
  %v307 = vshll.u32 %v298, %v305
  %v308 = vshrl.u32 %v290, %v306
  %v309 = vor.u32 %v307, %v308
  %v310 = vsub.s32 4294967266, %v305
  %v311 = vadd.s32 %v310, 127
  %v312 = vshll.u32 %v311, 23
  %v313 = vor.u32 4788187, %v312
  %v314 = vand.u32 2147483647, %v313
  %v316 = vcvt.s32.f32 %v309
  %v317 = vmul.f32 %v316, %v314
  %v318 = vxor.u32 %v317, 2147483648
  %v319 = vsel %vm236, %v318, %v317
  %v320 = vsub.s32 4, %v296
  %v321 = vsel %vm236, %v320, %v296
  %v322 = vsel %vm235, %v123, %v319
  %v323 = vsel %vm235, 0, %v321
  %v324 = vcosq.f32.pop %v322
  %v325 = vsinq.f32.pop %v322
  %vm326 = vweird.f32 %v123
  %v327 = vand.u32 %v323, 3
  %vm328 = vcmp.lt.s32.totalorder %v327, 2
  %vm329 = vcmp.eq.s32.totalorder %v327, 0
  %v330 = vxor.u32 %v325, 2147483648
  %v331 = vsel %vm329, %v324, %v330
  %vm332 = vcmp.eq.s32.totalorder %v327, 2
  %v333 = vxor.u32 %v324, 2147483648
  %v334 = vsel %vm332, %v333, %v325
  %v335 = vsel %vm328, %v331, %v334
  %v336 = vsel %vm326, nan, %v335
  %v337 = vand.u32 2147483647, %v124
  %vm338 = vcmp.le.f32.partialorder %v337, 0.7853982
  %vm339 = vcmp.lt.s32.totalorder %v124, 0
  %v340 = vand.u32 %v124, 2139095040
  %v341 = vshrl.u32 %v340, 23
  %v342 = vsub.s32 %v341, 127
  %v343 = vand.u32 2147483647, %v124
  %v344 = vand.u32 %v343, 8388607
  %v345 = vor.u32 %v344, 8388608
  %v346 = vsub.s32 0, %v345
  %v347 = vadd.s32 %v342, 1
  %vm348 = vcmp.gt.s32.totalorder %v347, 0
  %v349 = vsel %vm348, %v347, 0
  %v350 = vshrl.u32 %v349, 5
  %v351 = vand.u32 %v349, 31
  %v352 = vsub.s32 32, %v351
  %v353 = vshrl.u32 683565275, %v352
  %v354 = vshll.u32 683565275, %v351
  %v355 = vshrl.u32 2475754826, %v352
  %v356 = vor.u32 %v354, %v355
  %v357 = vshll.u32 2475754826, %v351
  %v358 = vshrl.u32 2131351028, %v352
  %v359 = vor.u32 %v357, %v358
  %v360 = vshll.u32 2131351028, %v351
  %v361 = vshrl.u32 2102212464, %v352
  %v362 = vor.u32 %v360, %v361
  %v363 = vshll.u32 2102212464, %v351
  %v364 = vshrl.u32 920167782, %v352
  %v365 = vor.u32 %v363, %v364
  %v366 = vshll.u32 920167782, %v351
  %v367 = vshrl.u32 1326507024, %v352
  %v368 = vor.u32 %v366, %v367
  %vm369 = vcmp.lt.s32.totalorder %v350, 1
  %vm370 = vcmp.lt.s32.totalorder %v350, 2
  %vm371 = vcmp.lt.s32.totalorder %v350, 3
  %vm372 = vcmp.lt.s32.totalorder %v350, 4
  %v373 = vsel %vm369, %v353, %v356
  %v374 = vsel %vm372, %v362, 2102212464
  %v375 = vsel %vm371, %v359, %v374
  %v376 = vsel %vm370, %v373, %v375
  %v377 = vsel %vm369, %v356, %v359
  %v378 = vsel %vm372, %v365, 920167782
  %v379 = vsel %vm371, %v362, %v378
  %v380 = vsel %vm370, %v377, %v379
  %v381 = vsel %vm369, %v359, %v362
  %v382 = vsel %vm372, %v368, 1326507024
  %v383 = vsel %vm371, %v365, %v382
  %v384 = vsel %vm370, %v381, %v383
  %v385 = vshll.u32 %v345, 8
  %v386 = vmul.u32.u64.compose %v385, %v384
  %v387 = vextract.low.u32 %v386
  %v388 = vextract.high.u32 %v386
  %v389 = vmul.u32.u64.compose %v385, %v380
  %v390 = vextract.low.u32 %v389
  %v391 = vextract.high.u32 %v389
  %v392 = vmul.u32 %v385, %v376
  %v393 = vadd.s32 %v388, %v390
  %vm394 = vc.u32 %v388, %v390
  %v395 = vadd.s32 %v391, 1
  %v396 = vsel %vm394, %v395, %v391
  %v397 = vadd.s32 %v392, %v396
  %v398 = vadd.s32 %v397, 536870912
  %v399 = vshrl.u32 %v398, 30
  %v400 = vshll.u32 %v399, 30
  %v401 = vsub.s32 %v397, %v400
  %vm402 = vcmp.lt.s32.totalorder %v401, 0
  %v403 = vsub.s32 0, %v401
  %v404 = vsel %vm402, %v403, %v401
  %v405 = vclz %v404
  %v406 = vsub.s32 %v405, 2
  %vm407 = vcmp.gt.s32.totalorder 0, %v406
  %v408 = vsel %vm407, 0, %v406
  %v409 = vsub.s32 32, %v408
  %v410 = vshll.u32 %v401, %v408
  %v411 = vshrl.u32 %v393, %v409
  %v412 = vor.u32 %v410, %v411
  %v413 = vsub.s32 4294967266, %v408
  %v414 = vadd.s32 %v413, 127
  %v415 = vshll.u32 %v414, 23
  %v416 = vor.u32 4788187, %v415
  %v417 = vand.u32 2147483647, %v416
  %v419 = vcvt.s32.f32 %v412
  %v420 = vmul.f32 %v419, %v417
  %v421 = vxor.u32 %v420, 2147483648
  %v422 = vsel %vm339, %v421, %v420
  %v423 = vsub.s32 4, %v399
  %v424 = vsel %vm339, %v423, %v399
  %v425 = vsel %vm338, %v124, %v422
  %v426 = vsel %vm338, 0, %v424
  %v427 = vcosq.f32.pop %v425
  %v428 = vsinq.f32.pop %v425
  %vm429 = vweird.f32 %v124
  %v430 = vand.u32 %v426, 3
  %vm431 = vcmp.lt.s32.totalorder %v430, 2
  %vm432 = vcmp.eq.s32.totalorder %v430, 0
  %v433 = vxor.u32 %v428, 2147483648
  %v434 = vsel %vm432, %v427, %v433
  %vm435 = vcmp.eq.s32.totalorder %v430, 2
  %v436 = vxor.u32 %v427, 2147483648
  %v437 = vsel %vm435, %v436, %v428
  %v438 = vsel %vm431, %v434, %v437
  %v439 = vsel %vm429, nan, %v438
  %v440 = vand.u32 2147483647, %v125
  %vm441 = vcmp.le.f32.partialorder %v440, 0.7853982
  %vm442 = vcmp.lt.s32.totalorder %v125, 0
  %v443 = vand.u32 %v125, 2139095040
  %v444 = vshrl.u32 %v443, 23
  %v445 = vsub.s32 %v444, 127
  %v446 = vand.u32 2147483647, %v125
  %v447 = vand.u32 %v446, 8388607
  %v448 = vor.u32 %v447, 8388608
  %v449 = vsub.s32 0, %v448
  %v450 = vadd.s32 %v445, 1
  %vm451 = vcmp.gt.s32.totalorder %v450, 0
  %v452 = vsel %vm451, %v450, 0
  %v453 = vshrl.u32 %v452, 5
  %v454 = vand.u32 %v452, 31
  %v455 = vsub.s32 32, %v454
  %v456 = vshrl.u32 683565275, %v455
  %v457 = vshll.u32 683565275, %v454
  %v458 = vshrl.u32 2475754826, %v455
  %v459 = vor.u32 %v457, %v458
  %v460 = vshll.u32 2475754826, %v454
  %v461 = vshrl.u32 2131351028, %v455
  %v462 = vor.u32 %v460, %v461
  %v463 = vshll.u32 2131351028, %v454
  %v464 = vshrl.u32 2102212464, %v455
  %v465 = vor.u32 %v463, %v464
  %v466 = vshll.u32 2102212464, %v454
  %v467 = vshrl.u32 920167782, %v455
  %v468 = vor.u32 %v466, %v467
  %v469 = vshll.u32 920167782, %v454
  %v470 = vshrl.u32 1326507024, %v455
  %v471 = vor.u32 %v469, %v470
  %vm472 = vcmp.lt.s32.totalorder %v453, 1
  %vm473 = vcmp.lt.s32.totalorder %v453, 2
  %vm474 = vcmp.lt.s32.totalorder %v453, 3
  %vm475 = vcmp.lt.s32.totalorder %v453, 4
  %v476 = vsel %vm472, %v456, %v459
  %v477 = vsel %vm475, %v465, 2102212464
  %v478 = vsel %vm474, %v462, %v477
  %v479 = vsel %vm473, %v476, %v478
  %v480 = vsel %vm472, %v459, %v462
  %v481 = vsel %vm475, %v468, 920167782
  %v482 = vsel %vm474, %v465, %v481
  %v483 = vsel %vm473, %v480, %v482
  %v484 = vsel %vm472, %v462, %v465
  %v485 = vsel %vm475, %v471, 1326507024
  %v486 = vsel %vm474, %v468, %v485
  %v487 = vsel %vm473, %v484, %v486
  %v488 = vshll.u32 %v448, 8
  %v489 = vmul.u32.u64.compose %v488, %v487
  %v490 = vextract.low.u32 %v489
  %v491 = vextract.high.u32 %v489
  %v492 = vmul.u32.u64.compose %v488, %v483
  %v493 = vextract.low.u32 %v492
  %v494 = vextract.high.u32 %v492
  %v495 = vmul.u32 %v488, %v479
  %v496 = vadd.s32 %v491, %v493
  %vm497 = vc.u32 %v491, %v493
  %v498 = vadd.s32 %v494, 1
  %v499 = vsel %vm497, %v498, %v494
  %v500 = vadd.s32 %v495, %v499
  %v501 = vadd.s32 %v500, 536870912
  %v502 = vshrl.u32 %v501, 30
  %v503 = vshll.u32 %v502, 30
  %v504 = vsub.s32 %v500, %v503
  %vm505 = vcmp.lt.s32.totalorder %v504, 0
  %v506 = vsub.s32 0, %v504
  %v507 = vsel %vm505, %v506, %v504
  %v508 = vclz %v507
  %v509 = vsub.s32 %v508, 2
  %vm510 = vcmp.gt.s32.totalorder 0, %v509
  %v511 = vsel %vm510, 0, %v509
  %v512 = vsub.s32 32, %v511
  %v513 = vshll.u32 %v504, %v511
  %v514 = vshrl.u32 %v496, %v512
  %v515 = vor.u32 %v513, %v514
  %v516 = vsub.s32 4294967266, %v511
  %v517 = vadd.s32 %v516, 127
  %v518 = vshll.u32 %v517, 23
  %v519 = vor.u32 4788187, %v518
  %v520 = vand.u32 2147483647, %v519
  %v522 = vcvt.s32.f32 %v515
  %v523 = vmul.f32 %v522, %v520
  %v524 = vxor.u32 %v523, 2147483648
  %v525 = vsel %vm442, %v524, %v523
  %v526 = vsub.s32 4, %v502
  %v527 = vsel %vm442, %v526, %v502
  %v528 = vsel %vm441, %v125, %v525
  %v529 = vsel %vm441, 0, %v527
  %v530 = vcosq.f32.pop %v528
  %v531 = vsinq.f32.pop %v528
  %vm532 = vweird.f32 %v125
  %v533 = vand.u32 %v529, 3
  %vm534 = vcmp.lt.s32.totalorder %v533, 2
  %vm535 = vcmp.eq.s32.totalorder %v533, 0
  %v536 = vxor.u32 %v531, 2147483648
  %v537 = vsel %vm535, %v530, %v536
  %vm538 = vcmp.eq.s32.totalorder %v533, 2
  %v539 = vxor.u32 %v530, 2147483648
  %v540 = vsel %vm538, %v539, %v531
  %v541 = vsel %vm534, %v537, %v540
  %v542 = vsel %vm532, nan, %v541
  %v543 = vand.u32 2147483647, %v126
  %vm544 = vcmp.le.f32.partialorder %v543, 0.7853982
  %vm545 = vcmp.lt.s32.totalorder %v126, 0
  %v546 = vand.u32 %v126, 2139095040
  %v547 = vshrl.u32 %v546, 23
  %v548 = vsub.s32 %v547, 127
  %v549 = vand.u32 2147483647, %v126
  %v550 = vand.u32 %v549, 8388607
  %v551 = vor.u32 %v550, 8388608
  %v552 = vsub.s32 0, %v551
  %v553 = vadd.s32 %v548, 1
  %vm554 = vcmp.gt.s32.totalorder %v553, 0
  %v555 = vsel %vm554, %v553, 0
  %v556 = vshrl.u32 %v555, 5
  %v557 = vand.u32 %v555, 31
  %v558 = vsub.s32 32, %v557
  %v559 = vshrl.u32 683565275, %v558
  %v560 = vshll.u32 683565275, %v557
  %v561 = vshrl.u32 2475754826, %v558
  %v562 = vor.u32 %v560, %v561
  %v563 = vshll.u32 2475754826, %v557
  %v564 = vshrl.u32 2131351028, %v558
  %v565 = vor.u32 %v563, %v564
  %v566 = vshll.u32 2131351028, %v557
  %v567 = vshrl.u32 2102212464, %v558
  %v568 = vor.u32 %v566, %v567
  %v569 = vshll.u32 2102212464, %v557
  %v570 = vshrl.u32 920167782, %v558
  %v571 = vor.u32 %v569, %v570
  %v572 = vshll.u32 920167782, %v557
  %v573 = vshrl.u32 1326507024, %v558
  %v574 = vor.u32 %v572, %v573
  %vm575 = vcmp.lt.s32.totalorder %v556, 1
  %vm576 = vcmp.lt.s32.totalorder %v556, 2
  %vm577 = vcmp.lt.s32.totalorder %v556, 3
  %vm578 = vcmp.lt.s32.totalorder %v556, 4
  %v579 = vsel %vm575, %v559, %v562
  %v580 = vsel %vm578, %v568, 2102212464
  %v581 = vsel %vm577, %v565, %v580
  %v582 = vsel %vm576, %v579, %v581
  %v583 = vsel %vm575, %v562, %v565
  %v584 = vsel %vm578, %v571, 920167782
  %v585 = vsel %vm577, %v568, %v584
  %v586 = vsel %vm576, %v583, %v585
  %v587 = vsel %vm575, %v565, %v568
  %v588 = vsel %vm578, %v574, 1326507024
  %v589 = vsel %vm577, %v571, %v588
  %v590 = vsel %vm576, %v587, %v589
  %v591 = vshll.u32 %v551, 8
  %v592 = vmul.u32.u64.compose %v591, %v590
  %v593 = vextract.low.u32 %v592
  %v594 = vextract.high.u32 %v592
  %v595 = vmul.u32.u64.compose %v591, %v586
  %v596 = vextract.low.u32 %v595
  %v597 = vextract.high.u32 %v595
  %v598 = vmul.u32 %v591, %v582
  %v599 = vadd.s32 %v594, %v596
  %vm600 = vc.u32 %v594, %v596
  %v601 = vadd.s32 %v597, 1
  %v602 = vsel %vm600, %v601, %v597
  %v603 = vadd.s32 %v598, %v602
  %v604 = vadd.s32 %v603, 536870912
  %v605 = vshrl.u32 %v604, 30
  %v606 = vshll.u32 %v605, 30
  %v607 = vsub.s32 %v603, %v606
  %vm608 = vcmp.lt.s32.totalorder %v607, 0
  %v609 = vsub.s32 0, %v607
  %v610 = vsel %vm608, %v609, %v607
  %v611 = vclz %v610
  %v612 = vsub.s32 %v611, 2
  %vm613 = vcmp.gt.s32.totalorder 0, %v612
  %v614 = vsel %vm613, 0, %v612
  %v615 = vsub.s32 32, %v614
  %v616 = vshll.u32 %v607, %v614
  %v617 = vshrl.u32 %v599, %v615
  %v618 = vor.u32 %v616, %v617
  %v619 = vsub.s32 4294967266, %v614
  %v620 = vadd.s32 %v619, 127
  %v621 = vshll.u32 %v620, 23
  %v622 = vor.u32 4788187, %v621
  %v623 = vand.u32 2147483647, %v622
  %v625 = vcvt.s32.f32 %v618
  %v626 = vmul.f32 %v625, %v623
  %v627 = vxor.u32 %v626, 2147483648
  %v628 = vsel %vm545, %v627, %v626
  %v629 = vsub.s32 4, %v605
  %v630 = vsel %vm545, %v629, %v605
  %v631 = vsel %vm544, %v126, %v628
  %v632 = vsel %vm544, 0, %v630
  %v633 = vcosq.f32.pop %v631
  %v634 = vsinq.f32.pop %v631
  %vm635 = vweird.f32 %v126
  %v636 = vand.u32 %v632, 3
  %vm637 = vcmp.lt.s32.totalorder %v636, 2
  %vm638 = vcmp.eq.s32.totalorder %v636, 0
  %v639 = vxor.u32 %v634, 2147483648
  %v640 = vsel %vm638, %v633, %v639
  %vm641 = vcmp.eq.s32.totalorder %v636, 2
  %v642 = vxor.u32 %v633, 2147483648
  %v643 = vsel %vm641, %v642, %v634
  %v644 = vsel %vm637, %v640, %v643
  %v645 = vsel %vm635, nan, %v644
  %v646 = vand.u32 2147483647, %v127
  %vm647 = vcmp.le.f32.partialorder %v646, 0.7853982
  %vm648 = vcmp.lt.s32.totalorder %v127, 0
  %v649 = vand.u32 %v127, 2139095040
  %v650 = vshrl.u32 %v649, 23
  %v651 = vsub.s32 %v650, 127
  %v652 = vand.u32 2147483647, %v127
  %v653 = vand.u32 %v652, 8388607
  %v654 = vor.u32 %v653, 8388608
  %v655 = vsub.s32 0, %v654
  %v656 = vadd.s32 %v651, 1
  %vm657 = vcmp.gt.s32.totalorder %v656, 0
  %v658 = vsel %vm657, %v656, 0
  %v659 = vshrl.u32 %v658, 5
  %v660 = vand.u32 %v658, 31
  %v661 = vsub.s32 32, %v660
  %v662 = vshrl.u32 683565275, %v661
  %v663 = vshll.u32 683565275, %v660
  %v664 = vshrl.u32 2475754826, %v661
  %v665 = vor.u32 %v663, %v664
  %v666 = vshll.u32 2475754826, %v660
  %v667 = vshrl.u32 2131351028, %v661
  %v668 = vor.u32 %v666, %v667
  %v669 = vshll.u32 2131351028, %v660
  %v670 = vshrl.u32 2102212464, %v661
  %v671 = vor.u32 %v669, %v670
  %v672 = vshll.u32 2102212464, %v660
  %v673 = vshrl.u32 920167782, %v661
  %v674 = vor.u32 %v672, %v673
  %v675 = vshll.u32 920167782, %v660
  %v676 = vshrl.u32 1326507024, %v661
  %v677 = vor.u32 %v675, %v676
  %vm678 = vcmp.lt.s32.totalorder %v659, 1
  %vm679 = vcmp.lt.s32.totalorder %v659, 2
  %vm680 = vcmp.lt.s32.totalorder %v659, 3
  %vm681 = vcmp.lt.s32.totalorder %v659, 4
  %v682 = vsel %vm678, %v662, %v665
  %v683 = vsel %vm681, %v671, 2102212464
  %v684 = vsel %vm680, %v668, %v683
  %v685 = vsel %vm679, %v682, %v684
  %v686 = vsel %vm678, %v665, %v668
  %v687 = vsel %vm681, %v674, 920167782
  %v688 = vsel %vm680, %v671, %v687
  %v689 = vsel %vm679, %v686, %v688
  %v690 = vsel %vm678, %v668, %v671
  %v691 = vsel %vm681, %v677, 1326507024
  %v692 = vsel %vm680, %v674, %v691
  %v693 = vsel %vm679, %v690, %v692
  %v694 = vshll.u32 %v654, 8
  %v695 = vmul.u32.u64.compose %v694, %v693
  %v696 = vextract.low.u32 %v695
  %v697 = vextract.high.u32 %v695
  %v698 = vmul.u32.u64.compose %v694, %v689
  %v699 = vextract.low.u32 %v698
  %v700 = vextract.high.u32 %v698
  %v701 = vmul.u32 %v694, %v685
  %v702 = vadd.s32 %v697, %v699
  %vm703 = vc.u32 %v697, %v699
  %v704 = vadd.s32 %v700, 1
  %v705 = vsel %vm703, %v704, %v700
  %v706 = vadd.s32 %v701, %v705
  %v707 = vadd.s32 %v706, 536870912
  %v708 = vshrl.u32 %v707, 30
  %v709 = vshll.u32 %v708, 30
  %v710 = vsub.s32 %v706, %v709
  %vm711 = vcmp.lt.s32.totalorder %v710, 0
  %v712 = vsub.s32 0, %v710
  %v713 = vsel %vm711, %v712, %v710
  %v714 = vclz %v713
  %v715 = vsub.s32 %v714, 2
  %vm716 = vcmp.gt.s32.totalorder 0, %v715
  %v717 = vsel %vm716, 0, %v715
  %v718 = vsub.s32 32, %v717
  %v719 = vshll.u32 %v710, %v717
  %v720 = vshrl.u32 %v702, %v718
  %v721 = vor.u32 %v719, %v720
  %v722 = vsub.s32 4294967266, %v717
  %v723 = vadd.s32 %v722, 127
  %v724 = vshll.u32 %v723, 23
  %v725 = vor.u32 4788187, %v724
  %v726 = vand.u32 2147483647, %v725
  %v728 = vcvt.s32.f32 %v721
  %v729 = vmul.f32 %v728, %v726
  %v730 = vxor.u32 %v729, 2147483648
  %v731 = vsel %vm648, %v730, %v729
  %v732 = vsub.s32 4, %v708
  %v733 = vsel %vm648, %v732, %v708
  %v734 = vsel %vm647, %v127, %v731
  %v735 = vsel %vm647, 0, %v733
  %v736 = vcosq.f32.pop %v734
  %v737 = vsinq.f32.pop %v734
  %vm738 = vweird.f32 %v127
  %v739 = vand.u32 %v735, 3
  %vm740 = vcmp.lt.s32.totalorder %v739, 2
  %vm741 = vcmp.eq.s32.totalorder %v739, 0
  %v742 = vxor.u32 %v737, 2147483648
  %v743 = vsel %vm741, %v736, %v742
  %vm744 = vcmp.eq.s32.totalorder %v739, 2
  %v745 = vxor.u32 %v736, 2147483648
  %v746 = vsel %vm744, %v745, %v737
  %v747 = vsel %vm740, %v743, %v746
  %v748 = vsel %vm738, nan, %v747
  %v749 = vand.u32 2147483647, %v128
  %vm750 = vcmp.le.f32.partialorder %v749, 0.7853982
  %vm751 = vcmp.lt.s32.totalorder %v128, 0
  %v752 = vand.u32 %v128, 2139095040
  %v753 = vshrl.u32 %v752, 23
  %v754 = vsub.s32 %v753, 127
  %v755 = vand.u32 2147483647, %v128
  %v756 = vand.u32 %v755, 8388607
  %v757 = vor.u32 %v756, 8388608
  %v758 = vsub.s32 0, %v757
  %v759 = vadd.s32 %v754, 1
  %vm760 = vcmp.gt.s32.totalorder %v759, 0
  %v761 = vsel %vm760, %v759, 0
  %v762 = vshrl.u32 %v761, 5
  %v763 = vand.u32 %v761, 31
  %v764 = vsub.s32 32, %v763
  %v765 = vshrl.u32 683565275, %v764
  %v766 = vshll.u32 683565275, %v763
  %v767 = vshrl.u32 2475754826, %v764
  %v768 = vor.u32 %v766, %v767
  %v769 = vshll.u32 2475754826, %v763
  %v770 = vshrl.u32 2131351028, %v764
  %v771 = vor.u32 %v769, %v770
  %v772 = vshll.u32 2131351028, %v763
  %v773 = vshrl.u32 2102212464, %v764
  %v774 = vor.u32 %v772, %v773
  %v775 = vshll.u32 2102212464, %v763
  %v776 = vshrl.u32 920167782, %v764
  %v777 = vor.u32 %v775, %v776
  %v778 = vshll.u32 920167782, %v763
  %v779 = vshrl.u32 1326507024, %v764
  %v780 = vor.u32 %v778, %v779
  %vm781 = vcmp.lt.s32.totalorder %v762, 1
  %vm782 = vcmp.lt.s32.totalorder %v762, 2
  %vm783 = vcmp.lt.s32.totalorder %v762, 3
  %vm784 = vcmp.lt.s32.totalorder %v762, 4
  %v785 = vsel %vm781, %v765, %v768
  %v786 = vsel %vm784, %v774, 2102212464
  %v787 = vsel %vm783, %v771, %v786
  %v788 = vsel %vm782, %v785, %v787
  %v789 = vsel %vm781, %v768, %v771
  %v790 = vsel %vm784, %v777, 920167782
  %v791 = vsel %vm783, %v774, %v790
  %v792 = vsel %vm782, %v789, %v791
  %v793 = vsel %vm781, %v771, %v774
  %v794 = vsel %vm784, %v780, 1326507024
  %v795 = vsel %vm783, %v777, %v794
  %v796 = vsel %vm782, %v793, %v795
  %v797 = vshll.u32 %v757, 8
  %v798 = vmul.u32.u64.compose %v797, %v796
  %v799 = vextract.low.u32 %v798
  %v800 = vextract.high.u32 %v798
  %v801 = vmul.u32.u64.compose %v797, %v792
  %v802 = vextract.low.u32 %v801
  %v803 = vextract.high.u32 %v801
  %v804 = vmul.u32 %v797, %v788
  %v805 = vadd.s32 %v800, %v802
  %vm806 = vc.u32 %v800, %v802
  %v807 = vadd.s32 %v803, 1
  %v808 = vsel %vm806, %v807, %v803
  %v809 = vadd.s32 %v804, %v808
  %v810 = vadd.s32 %v809, 536870912
  %v811 = vshrl.u32 %v810, 30
  %v812 = vshll.u32 %v811, 30
  %v813 = vsub.s32 %v809, %v812
  %vm814 = vcmp.lt.s32.totalorder %v813, 0
  %v815 = vsub.s32 0, %v813
  %v816 = vsel %vm814, %v815, %v813
  %v817 = vclz %v816
  %v818 = vsub.s32 %v817, 2
  %vm819 = vcmp.gt.s32.totalorder 0, %v818
  %v820 = vsel %vm819, 0, %v818
  %v821 = vsub.s32 32, %v820
  %v822 = vshll.u32 %v813, %v820
  %v823 = vshrl.u32 %v805, %v821
  %v824 = vor.u32 %v822, %v823
  %v825 = vsub.s32 4294967266, %v820
  %v826 = vadd.s32 %v825, 127
  %v827 = vshll.u32 %v826, 23
  %v828 = vor.u32 4788187, %v827
  %v829 = vand.u32 2147483647, %v828
  %v831 = vcvt.s32.f32 %v824
  %v832 = vmul.f32 %v831, %v829
  %v833 = vxor.u32 %v832, 2147483648
  %v834 = vsel %vm751, %v833, %v832
  %v835 = vsub.s32 4, %v811
  %v836 = vsel %vm751, %v835, %v811
  %v837 = vsel %vm750, %v128, %v834
  %v838 = vsel %vm750, 0, %v836
  %v839 = vcosq.f32.pop %v837
  %v840 = vsinq.f32.pop %v837
  %vm841 = vweird.f32 %v128
  %v842 = vand.u32 %v838, 3
  %vm843 = vcmp.lt.s32.totalorder %v842, 2
  %vm844 = vcmp.eq.s32.totalorder %v842, 0
  %v845 = vxor.u32 %v840, 2147483648
  %v846 = vsel %vm844, %v839, %v845
  %vm847 = vcmp.eq.s32.totalorder %v842, 2
  %v848 = vxor.u32 %v839, 2147483648
  %v849 = vsel %vm847, %v848, %v840
  %v850 = vsel %vm843, %v846, %v849
  %v851 = vsel %vm841, nan, %v850
  %v852 = vand.u32 2147483647, %v129
  %vm853 = vcmp.le.f32.partialorder %v852, 0.7853982
  %vm854 = vcmp.lt.s32.totalorder %v129, 0
  %v855 = vand.u32 %v129, 2139095040
  %v856 = vshrl.u32 %v855, 23
  %v857 = vsub.s32 %v856, 127
  %v858 = vand.u32 2147483647, %v129
  %v859 = vand.u32 %v858, 8388607
  %v860 = vor.u32 %v859, 8388608
  %v861 = vsub.s32 0, %v860
  %v862 = vadd.s32 %v857, 1
  %vm863 = vcmp.gt.s32.totalorder %v862, 0
  %v864 = vsel %vm863, %v862, 0
  %v865 = vshrl.u32 %v864, 5
  %v866 = vand.u32 %v864, 31
  %v867 = vsub.s32 32, %v866
  %v868 = vshrl.u32 683565275, %v867
  %v869 = vshll.u32 683565275, %v866
  %v870 = vshrl.u32 2475754826, %v867
  %v871 = vor.u32 %v869, %v870
  %v872 = vshll.u32 2475754826, %v866
  %v873 = vshrl.u32 2131351028, %v867
  %v874 = vor.u32 %v872, %v873
  %v875 = vshll.u32 2131351028, %v866
  %v876 = vshrl.u32 2102212464, %v867
  %v877 = vor.u32 %v875, %v876
  %v878 = vshll.u32 2102212464, %v866
  %v879 = vshrl.u32 920167782, %v867
  %v880 = vor.u32 %v878, %v879
  %v881 = vshll.u32 920167782, %v866
  %v882 = vshrl.u32 1326507024, %v867
  %v883 = vor.u32 %v881, %v882
  %vm884 = vcmp.lt.s32.totalorder %v865, 1
  %vm885 = vcmp.lt.s32.totalorder %v865, 2
  %vm886 = vcmp.lt.s32.totalorder %v865, 3
  %vm887 = vcmp.lt.s32.totalorder %v865, 4
  %v888 = vsel %vm884, %v868, %v871
  %v889 = vsel %vm887, %v877, 2102212464
  %v890 = vsel %vm886, %v874, %v889
  %v891 = vsel %vm885, %v888, %v890
  %v892 = vsel %vm884, %v871, %v874
  %v893 = vsel %vm887, %v880, 920167782
  %v894 = vsel %vm886, %v877, %v893
  %v895 = vsel %vm885, %v892, %v894
  %v896 = vsel %vm884, %v874, %v877
  %v897 = vsel %vm887, %v883, 1326507024
  %v898 = vsel %vm886, %v880, %v897
  %v899 = vsel %vm885, %v896, %v898
  %v900 = vshll.u32 %v860, 8
  %v901 = vmul.u32.u64.compose %v900, %v899
  %v902 = vextract.low.u32 %v901
  %v903 = vextract.high.u32 %v901
  %v904 = vmul.u32.u64.compose %v900, %v895
  %v905 = vextract.low.u32 %v904
  %v906 = vextract.high.u32 %v904
  %v907 = vmul.u32 %v900, %v891
  %v908 = vadd.s32 %v903, %v905
  %vm909 = vc.u32 %v903, %v905
  %v910 = vadd.s32 %v906, 1
  %v911 = vsel %vm909, %v910, %v906
  %v912 = vadd.s32 %v907, %v911
  %v913 = vadd.s32 %v912, 536870912
  %v914 = vshrl.u32 %v913, 30
  %v915 = vshll.u32 %v914, 30
  %v916 = vsub.s32 %v912, %v915
  %vm917 = vcmp.lt.s32.totalorder %v916, 0
  %v918 = vsub.s32 0, %v916
  %v919 = vsel %vm917, %v918, %v916
  %v920 = vclz %v919
  %v921 = vsub.s32 %v920, 2
  %vm922 = vcmp.gt.s32.totalorder 0, %v921
  %v923 = vsel %vm922, 0, %v921
  %v924 = vsub.s32 32, %v923
  %v925 = vshll.u32 %v916, %v923
  %v926 = vshrl.u32 %v908, %v924
  %v927 = vor.u32 %v925, %v926
  %v928 = vsub.s32 4294967266, %v923
  %v929 = vadd.s32 %v928, 127
  %v930 = vshll.u32 %v929, 23
  %v931 = vor.u32 4788187, %v930
  %v932 = vand.u32 2147483647, %v931
  %v934 = vcvt.s32.f32 %v927
  %v935 = vmul.f32 %v934, %v932
  %v936 = vxor.u32 %v935, 2147483648
  %v937 = vsel %vm854, %v936, %v935
  %v938 = vsub.s32 4, %v914
  %v939 = vsel %vm854, %v938, %v914
  %v940 = vsel %vm853, %v129, %v937
  %v941 = vsel %vm853, 0, %v939
  %v942 = vcosq.f32.pop %v940
  %v943 = vsinq.f32.pop %v940
  %vm944 = vweird.f32 %v129
  %v945 = vand.u32 %v941, 3
  %vm946 = vcmp.lt.s32.totalorder %v945, 2
  %vm947 = vcmp.eq.s32.totalorder %v945, 0
  %v948 = vxor.u32 %v943, 2147483648
  %v949 = vsel %vm947, %v942, %v948
  %vm950 = vcmp.eq.s32.totalorder %v945, 2
  %v951 = vxor.u32 %v942, 2147483648
  %v952 = vsel %vm950, %v951, %v943
  %v953 = vsel %vm946, %v949, %v952
  %v954 = vsel %vm944, nan, %v953
  %v955 = vand.u32 2147483647, %v130
  %vm956 = vcmp.le.f32.partialorder %v955, 0.7853982
  %vm957 = vcmp.lt.s32.totalorder %v130, 0
  %v958 = vand.u32 %v130, 2139095040
  %v959 = vshrl.u32 %v958, 23
  %v960 = vsub.s32 %v959, 127
  %v961 = vand.u32 2147483647, %v130
  %v962 = vand.u32 %v961, 8388607
  %v963 = vor.u32 %v962, 8388608
  %v964 = vsub.s32 0, %v963
  %v965 = vadd.s32 %v960, 1
  %vm966 = vcmp.gt.s32.totalorder %v965, 0
  %v967 = vsel %vm966, %v965, 0
  %v968 = vshrl.u32 %v967, 5
  %v969 = vand.u32 %v967, 31
  %v970 = vsub.s32 32, %v969
  %v971 = vshrl.u32 683565275, %v970
  %v972 = vshll.u32 683565275, %v969
  %v973 = vshrl.u32 2475754826, %v970
  %v974 = vor.u32 %v972, %v973
  %v975 = vshll.u32 2475754826, %v969
  %v976 = vshrl.u32 2131351028, %v970
  %v977 = vor.u32 %v975, %v976
  %v978 = vshll.u32 2131351028, %v969
  %v979 = vshrl.u32 2102212464, %v970
  %v980 = vor.u32 %v978, %v979
  %v981 = vshll.u32 2102212464, %v969
  %v982 = vshrl.u32 920167782, %v970
  %v983 = vor.u32 %v981, %v982
  %v984 = vshll.u32 920167782, %v969
  %v985 = vshrl.u32 1326507024, %v970
  %v986 = vor.u32 %v984, %v985
  %vm987 = vcmp.lt.s32.totalorder %v968, 1
  %vm988 = vcmp.lt.s32.totalorder %v968, 2
  %vm989 = vcmp.lt.s32.totalorder %v968, 3
  %vm990 = vcmp.lt.s32.totalorder %v968, 4
  %v991 = vsel %vm987, %v971, %v974
  %v992 = vsel %vm990, %v980, 2102212464
  %v993 = vsel %vm989, %v977, %v992
  %v994 = vsel %vm988, %v991, %v993
  %v995 = vsel %vm987, %v974, %v977
  %v996 = vsel %vm990, %v983, 920167782
  %v997 = vsel %vm989, %v980, %v996
  %v998 = vsel %vm988, %v995, %v997
  %v999 = vsel %vm987, %v977, %v980
  %v1000 = vsel %vm990, %v986, 1326507024
  %v1001 = vsel %vm989, %v983, %v1000
  %v1002 = vsel %vm988, %v999, %v1001
  %v1003 = vshll.u32 %v963, 8
  %v1004 = vmul.u32.u64.compose %v1003, %v1002
  %v1005 = vextract.low.u32 %v1004
  %v1006 = vextract.high.u32 %v1004
  %v1007 = vmul.u32.u64.compose %v1003, %v998
  %v1008 = vextract.low.u32 %v1007
  %v1009 = vextract.high.u32 %v1007
  %v1010 = vmul.u32 %v1003, %v994
  %v1011 = vadd.s32 %v1006, %v1008
  %vm1012 = vc.u32 %v1006, %v1008
  %v1013 = vadd.s32 %v1009, 1
  %v1014 = vsel %vm1012, %v1013, %v1009
  %v1015 = vadd.s32 %v1010, %v1014
  %v1016 = vadd.s32 %v1015, 536870912
  %v1017 = vshrl.u32 %v1016, 30
  %v1018 = vshll.u32 %v1017, 30
  %v1019 = vsub.s32 %v1015, %v1018
  %vm1020 = vcmp.lt.s32.totalorder %v1019, 0
  %v1021 = vsub.s32 0, %v1019
  %v1022 = vsel %vm1020, %v1021, %v1019
  %v1023 = vclz %v1022
  %v1024 = vsub.s32 %v1023, 2
  %vm1025 = vcmp.gt.s32.totalorder 0, %v1024
  %v1026 = vsel %vm1025, 0, %v1024
  %v1027 = vsub.s32 32, %v1026
  %v1028 = vshll.u32 %v1019, %v1026
  %v1029 = vshrl.u32 %v1011, %v1027
  %v1030 = vor.u32 %v1028, %v1029
  %v1031 = vsub.s32 4294967266, %v1026
  %v1032 = vadd.s32 %v1031, 127
  %v1033 = vshll.u32 %v1032, 23
  %v1034 = vor.u32 4788187, %v1033
  %v1035 = vand.u32 2147483647, %v1034
  %v1037 = vcvt.s32.f32 %v1030
  %v1038 = vmul.f32 %v1037, %v1035
  %v1039 = vxor.u32 %v1038, 2147483648
  %v1040 = vsel %vm957, %v1039, %v1038
  %v1041 = vsub.s32 4, %v1017
  %v1042 = vsel %vm957, %v1041, %v1017
  %v1043 = vsel %vm956, %v130, %v1040
  %v1044 = vsel %vm956, 0, %v1042
  %v1045 = vcosq.f32.pop %v1043
  %v1046 = vsinq.f32.pop %v1043
  %vm1047 = vweird.f32 %v130
  %v1048 = vand.u32 %v1044, 3
  %vm1049 = vcmp.lt.s32.totalorder %v1048, 2
  %vm1050 = vcmp.eq.s32.totalorder %v1048, 0
  %v1051 = vxor.u32 %v1046, 2147483648
  %v1052 = vsel %vm1050, %v1045, %v1051
  %vm1053 = vcmp.eq.s32.totalorder %v1048, 2
  %v1054 = vxor.u32 %v1045, 2147483648
  %v1055 = vsel %vm1053, %v1054, %v1046
  %v1056 = vsel %vm1049, %v1052, %v1055
  %v1057 = vsel %vm1047, nan, %v1056
  %v1058 = vld [vmem:[%s0] sm:$0xff]
  %v1059 = vld [vmem:[%s0 + $0x8] sm:$0xff]
  %v1060 = vld [vmem:[%s0 + $0x10] sm:$0xff]
  %v1061 = vld [vmem:[%s0 + $0x18] sm:$0xff]
  %v1062 = vld [vmem:[%s0 + $0x20] sm:$0xff]
  %v1063 = vld [vmem:[%s0 + $0x28] sm:$0xff]
  %v1064 = vld [vmem:[%s0 + $0x30] sm:$0xff]
  %v1065 = vld [vmem:[%s0 + $0x38] sm:$0xff]
  %v1066 = vld [vmem:[%s0 + $0x40] sm:$0xff]
  %v1067 = vld [vmem:[%s3] sm:$0xff]
  %v1068 = vld [vmem:[%s4] sm:$0xff]
  %v1069 = vld [vmem:[%s4 + $0x8] sm:$0xff]
  %vm1070 = vcmask 130048
  %v1072 = vsel %vm1070, %v233, 0
  %v1075 = vsel %vm1070, %v336, 0
  %v1078 = vsel %vm1070, %v439, 0
  %v1081 = vsel %vm1070, %v542, 0
  %v1084 = vsel %vm1070, %v645, 0
  %v1087 = vsel %vm1070, %v748, 0
  %v1090 = vsel %vm1070, %v851, 0
  %v1093 = vsel %vm1070, %v954, 0
  %v1096 = vsel %vm1070, %v1057, 0
  %1098 = vmatprep.subr.mxu0 0.0
  %1099 = vmatpush1.msra.mxu0 %v1068
  %1100 = vmatprep.subr.mxu0 0.0
  %1101 = vmatpush1.msra.mxu0 %v1069
  %1102 = vmatprep.subr.mxu0 0.0
  %1103 = vmatpush1.msra.mxu0 0.0
  %1104 = vmatprep.subr.mxu0 0.0
  %1105 = vmatpush1.msra.mxu0 0.0
  %1106 = vmatprep.subr.mxu0 0.0
  %1107 = vmatpush1.msra.mxu0 0.0
  %1108 = vmatprep.subr.mxu0 0.0
  %1109 = vmatpush1.msra.mxu0 0.0
  %1110 = vmatprep.subr.mxu0 0.0
  %1111 = vmatpush1.msra.mxu0 0.0
  %1112 = vmatprep.subr.mxu0 0.0
  %1113 = vmatpush1.msra.mxu0 0.0
  %1114 = vmatprep.subr.mxu0 0.0
  %1115 = vmatpush1.msra.mxu0 0.0
  %1116 = vmatprep.subr.mxu0 0.0
  %1117 = vmatpush1.msra.mxu0 0.0
  %1118 = vmatprep.subr.mxu0 0.0
  %1119 = vmatpush1.msra.mxu0 0.0
  %1120 = vmatprep.subr.mxu0 0.0
  %1121 = vmatpush1.msra.mxu0 0.0
  %1122 = vmatprep.subr.mxu0 0.0
  %1123 = vmatpush1.msra.mxu0 0.0
  %1124 = vmatprep.subr.mxu0 0.0
  %1125 = vmatpush1.msra.mxu0 0.0
  %1126 = vmatprep.subr.mxu0 0.0
  %1127 = vmatpush1.msra.mxu0 0.0
  %1128 = vmatprep.subr.mxu0 0.0
  %1129 = vmatpush1.msra.mxu0 0.0
  %1130 = vmatprep.subr.mxu0 0.0
  %1131 = vmatpush1.msra.mxu0 0.0
  %1132 = vmatprep.subr.mxu0 0.0
  %1133 = vmatpush1.msra.mxu0 0.0
  %1134 = vmatprep.subr.mxu0 0.0
  %1135 = vmatpush1.msra.mxu0 0.0
  %1136 = vmatprep.subr.mxu0 0.0
  %1137 = vmatpush1.msra.mxu0 0.0
  %1138 = vmatprep.subr.mxu0 0.0
  %1139 = vmatpush1.msra.mxu0 0.0
  %1140 = vmatprep.subr.mxu0 0.0
  %1141 = vmatpush1.msra.mxu0 0.0
  %1142 = vmatprep.subr.mxu0 0.0
  %1143 = vmatpush1.msra.mxu0 0.0
  %1144 = vmatprep.subr.mxu0 0.0
  %1145 = vmatpush1.msra.mxu0 0.0
  %1146 = vmatprep.subr.mxu0 0.0
  %1147 = vmatpush1.msra.mxu0 0.0
  %1148 = vmatprep.subr.mxu0 0.0
  %1149 = vmatpush1.msra.mxu0 0.0
  %1150 = vmatprep.subr.mxu0 0.0
  %1151 = vmatpush1.msra.mxu0 0.0
  %1152 = vmatprep.subr.mxu0 0.0
  %1153 = vmatpush1.msra.mxu0 0.0
  %1154 = vmatprep.subr.mxu0 0.0
  %1155 = vmatpush1.msra.mxu0 0.0
  %1156 = vmatprep.subr.mxu0 0.0
  %1157 = vmatpush1.msra.mxu0 0.0
  %1158 = vmatprep.subr.mxu0 0.0
  %1159 = vmatpush1.msra.mxu0 0.0
  %1160 = vmatprep.subr.mxu0 0.0
  %1161 = vmatpush1.msra.mxu0 0.0
  %1162 = vmatprep.mubr.f32.mxu0 0.0
  %1163 = vmatmul.mubr.f32.gmra.mrb[0].mxu0 %v1072
  %v1164 = vpop.f32.mrb[0].mxu0
  %v1165 = vadd.f32 0.0, %v1164
  %v1166 = vpop.f32.mrb[0].mxu0
  %1167 = vmatprep.mubr.f32.mxu0 0.0
  %1168 = vmatmul.mubr.f32.gmra.mrb[0].mxu0 %v1075
  %v1169 = vpop.f32.mrb[0].mxu0
  %v1170 = vadd.f32 0.0, %v1169
  %v1171 = vpop.f32.mrb[0].mxu0
  %1172 = vmatprep.mubr.f32.mxu0 0.0
  %1173 = vmatmul.mubr.f32.gmra.mrb[0].mxu0 %v1078
  %v1174 = vpop.f32.mrb[0].mxu0
  %v1175 = vadd.f32 0.0, %v1174
  %v1176 = vpop.f32.mrb[0].mxu0
  %1177 = vmatprep.mubr.f32.mxu0 0.0
  %1178 = vmatmul.mubr.f32.gmra.mrb[0].mxu0 %v1081
  %v1179 = vpop.f32.mrb[0].mxu0
  %v1180 = vadd.f32 0.0, %v1179
  %v1181 = vpop.f32.mrb[0].mxu0
  %1182 = vmatprep.mubr.f32.mxu0 0.0
  %1183 = vmatmul.mubr.f32.gmra.mrb[0].mxu0 %v1084
  %v1184 = vpop.f32.mrb[0].mxu0
  %v1185 = vadd.f32 0.0, %v1184
  %v1186 = vpop.f32.mrb[0].mxu0
  %1187 = vmatprep.mubr.f32.mxu0 0.0
  %1188 = vmatmul.mubr.f32.gmra.mrb[0].mxu0 %v1087
  %v1189 = vpop.f32.mrb[0].mxu0
  %v1190 = vadd.f32 0.0, %v1189
  %v1191 = vpop.f32.mrb[0].mxu0
  %1192 = vmatprep.mubr.f32.mxu0 0.0
  %1193 = vmatmul.mubr.f32.gmra.mrb[0].mxu0 %v1090
  %v1194 = vpop.f32.mrb[0].mxu0
  %v1195 = vadd.f32 0.0, %v1194
  %v1196 = vpop.f32.mrb[0].mxu0
  %1197 = vmatprep.mubr.f32.mxu0 0.0
  %1198 = vmatmul.mubr.f32.gmra.mrb[0].mxu0 %v1093
  %v1199 = vpop.f32.mrb[0].mxu0
  %v1200 = vadd.f32 0.0, %v1199
  %v1201 = vpop.f32.mrb[0].mxu0
  %1202 = vmatprep.mubr.f32.mxu0 0.0
  %1203 = vmatmul.mubr.f32.gmra.mrb[0].mxu0 %v1096
  %v1204 = vpop.f32.mrb[0].mxu0
  %v1205 = vadd.f32 0.0, %v1204
  %v1206 = vpop.f32.mrb[0].mxu0
  %1207 = vdwg.mxu0
  %vm1208 = vcmask 64512
  %v1210 = vsel %vm1208, %v1058, 0
  %v1213 = vsel %vm1208, %v1059, 0
  %v1216 = vsel %vm1208, %v1060, 0
  %v1219 = vsel %vm1208, %v1061, 0
  %v1222 = vsel %vm1208, %v1062, 0
  %v1225 = vsel %vm1208, %v1063, 0
  %v1228 = vsel %vm1208, %v1064, 0
  %v1231 = vsel %vm1208, %v1065, 0
  %v1234 = vsel %vm1208, %v1066, 0
  %1236 = vmatprep.subr.mxu0 0.0
  %1237 = vmatpush1.msra.mxu0 %v1067
  %1238 = vmatprep.subr.mxu0 0.0
  %1239 = vmatpush1.msra.mxu0 0.0
  %1240 = vmatprep.subr.mxu0 0.0
  %1241 = vmatpush1.msra.mxu0 0.0
  %1242 = vmatprep.subr.mxu0 0.0
  %1243 = vmatpush1.msra.mxu0 0.0
  %1244 = vmatprep.subr.mxu0 0.0
  %1245 = vmatpush1.msra.mxu0 0.0
  %1246 = vmatprep.subr.mxu0 0.0
  %1247 = vmatpush1.msra.mxu0 0.0
  %1248 = vmatprep.subr.mxu0 0.0
  %1249 = vmatpush1.msra.mxu0 0.0
  %1250 = vmatprep.subr.mxu0 0.0
  %1251 = vmatpush1.msra.mxu0 0.0
  %1252 = vmatprep.subr.mxu0 0.0
  %1253 = vmatpush1.msra.mxu0 0.0
  %1254 = vmatprep.subr.mxu0 0.0
  %1255 = vmatpush1.msra.mxu0 0.0
  %1256 = vmatprep.subr.mxu0 0.0
  %1257 = vmatpush1.msra.mxu0 0.0
  %1258 = vmatprep.subr.mxu0 0.0
  %1259 = vmatpush1.msra.mxu0 0.0
  %1260 = vmatprep.subr.mxu0 0.0
  %1261 = vmatpush1.msra.mxu0 0.0
  %1262 = vmatprep.subr.mxu0 0.0
  %1263 = vmatpush1.msra.mxu0 0.0
  %1264 = vmatprep.subr.mxu0 0.0
  %1265 = vmatpush1.msra.mxu0 0.0
  %1266 = vmatprep.subr.mxu0 0.0
  %1267 = vmatpush1.msra.mxu0 0.0
  %1268 = vmatprep.subr.mxu0 0.0
  %1269 = vmatpush1.msra.mxu0 0.0
  %1270 = vmatprep.subr.mxu0 0.0
  %1271 = vmatpush1.msra.mxu0 0.0
  %1272 = vmatprep.subr.mxu0 0.0
  %1273 = vmatpush1.msra.mxu0 0.0
  %1274 = vmatprep.subr.mxu0 0.0
  %1275 = vmatpush1.msra.mxu0 0.0
  %1276 = vmatprep.subr.mxu0 0.0
  %1277 = vmatpush1.msra.mxu0 0.0
  %1278 = vmatprep.subr.mxu0 0.0
  %1279 = vmatpush1.msra.mxu0 0.0
  %1280 = vmatprep.subr.mxu0 0.0
  %1281 = vmatpush1.msra.mxu0 0.0
  %1282 = vmatprep.subr.mxu0 0.0
  %1283 = vmatpush1.msra.mxu0 0.0
  %1284 = vmatprep.subr.mxu0 0.0
  %1285 = vmatpush1.msra.mxu0 0.0
  %1286 = vmatprep.subr.mxu0 0.0
  %1287 = vmatpush1.msra.mxu0 0.0
  %1288 = vmatprep.subr.mxu0 0.0
  %1289 = vmatpush1.msra.mxu0 0.0
  %1290 = vmatprep.subr.mxu0 0.0
  %1291 = vmatpush1.msra.mxu0 0.0
  %1292 = vmatprep.subr.mxu0 0.0
  %1293 = vmatpush1.msra.mxu0 0.0
  %1294 = vmatprep.subr.mxu0 0.0
  %1295 = vmatpush1.msra.mxu0 0.0
  %1296 = vmatprep.subr.mxu0 0.0
  %1297 = vmatpush1.msra.mxu0 0.0
  %1298 = vmatprep.subr.mxu0 0.0
  %1299 = vmatpush1.msra.mxu0 0.0
  %1300 = vmatprep.mubr.f32.mxu0 0.0
  %1301 = vmatmul.mubr.f32.gmra.mrb[0].mxu0 %v1210
  %v1302 = vpop.f32.mrb[0].mxu0
  %v1303 = vadd.f32 %v1165, %v1302
  %v1304 = vpop.f32.mrb[0].mxu0
  %1305 = vmatprep.mubr.f32.mxu0 0.0
  %1306 = vmatmul.mubr.f32.gmra.mrb[0].mxu0 %v1213
  %v1307 = vpop.f32.mrb[0].mxu0
  %v1308 = vadd.f32 %v1170, %v1307
  %v1309 = vpop.f32.mrb[0].mxu0
  %1310 = vmatprep.mubr.f32.mxu0 0.0
  %1311 = vmatmul.mubr.f32.gmra.mrb[0].mxu0 %v1216
  %v1312 = vpop.f32.mrb[0].mxu0
  %v1313 = vadd.f32 %v1175, %v1312
  %v1314 = vpop.f32.mrb[0].mxu0
  %1315 = vmatprep.mubr.f32.mxu0 0.0
  %1316 = vmatmul.mubr.f32.gmra.mrb[0].mxu0 %v1219
  %v1317 = vpop.f32.mrb[0].mxu0
  %v1318 = vadd.f32 %v1180, %v1317
  %v1319 = vpop.f32.mrb[0].mxu0
  %1320 = vmatprep.mubr.f32.mxu0 0.0
  %1321 = vmatmul.mubr.f32.gmra.mrb[0].mxu0 %v1222
  %v1322 = vpop.f32.mrb[0].mxu0
  %v1323 = vadd.f32 %v1185, %v1322
  %v1324 = vpop.f32.mrb[0].mxu0
  %1325 = vmatprep.mubr.f32.mxu0 0.0
  %1326 = vmatmul.mubr.f32.gmra.mrb[0].mxu0 %v1225
  %v1327 = vpop.f32.mrb[0].mxu0
  %v1328 = vadd.f32 %v1190, %v1327
  %v1329 = vpop.f32.mrb[0].mxu0
  %1330 = vmatprep.mubr.f32.mxu0 0.0
  %1331 = vmatmul.mubr.f32.gmra.mrb[0].mxu0 %v1228
  %v1332 = vpop.f32.mrb[0].mxu0
  %v1333 = vadd.f32 %v1195, %v1332
  %v1334 = vpop.f32.mrb[0].mxu0
  %1335 = vmatprep.mubr.f32.mxu0 0.0
  %1336 = vmatmul.mubr.f32.gmra.mrb[0].mxu0 %v1231
  %v1337 = vpop.f32.mrb[0].mxu0
  %v1338 = vadd.f32 %v1200, %v1337
  %v1339 = vpop.f32.mrb[0].mxu0
  %1340 = vmatprep.mubr.f32.mxu0 0.0
  %1341 = vmatmul.mubr.f32.gmra.mrb[0].mxu0 %v1234
  %v1342 = vpop.f32.mrb[0].mxu0
  %v1343 = vadd.f32 %v1205, %v1342
  %v1344 = vpop.f32.mrb[0].mxu0
  %1345 = vdwg.mxu0
  %v1346 = vld [vmem:[%s5] sm:$0x1]
  %v1348 = vlaneseq
  %v1349 = vshrl.u32 %v1348, 7
  %v1350 = vsub.s32 0, %v1349
  %v1351 = vrot.slane %v1346, %v1350
  %v1353 = vadd.f32 %v1303, %v1351
  %v1354 = vadd.f32 %v1308, %v1351
  %v1355 = vadd.f32 %v1313, %v1351
  %v1356 = vadd.f32 %v1318, %v1351
  %v1357 = vadd.f32 %v1323, %v1351
  %v1358 = vadd.f32 %v1328, %v1351
  %v1359 = vadd.f32 %v1333, %v1351
  %v1360 = vadd.f32 %v1338, %v1351
  %v1361 = vadd.f32 %v1343, %v1351
  %v1362 = vld [vmem:[%s9] sm:$0xff]
  %v1363 = vld [vmem:[%s9 + $0x8] sm:$0xff]
  %v1364 = vld [vmem:[%s9 + $0x10] sm:$0xff]
  %v1365 = vld [vmem:[%s9 + $0x18] sm:$0xff]
  %v1366 = vld [vmem:[%s9 + $0x20] sm:$0xff]
  %v1367 = vld [vmem:[%s9 + $0x28] sm:$0xff]
  %v1368 = vld [vmem:[%s9 + $0x30] sm:$0xff]
  %v1369 = vld [vmem:[%s9 + $0x38] sm:$0xff]
  %v1370 = vld [vmem:[%s9 + $0x40] sm:$0xff]
  %v1371 = vld [vmem:[%s8] sm:$0x1]
  %1372 = vset.pattern.permute.xlu0 0
  %1373 = vperm.xlu0 %1372, %v1362
  %v1374 = vpop.permute.xlu0 %1373
  %1375 = vset.pattern.permute.xlu0 0
  %1376 = vperm.xlu0 %1375, %v1363
  %v1377 = vpop.permute.xlu0 %1376
  %1378 = vset.pattern.permute.xlu0 0
  %1379 = vperm.xlu0 %1378, %v1364
  %v1380 = vpop.permute.xlu0 %1379
  %1381 = vset.pattern.permute.xlu0 0
  %1382 = vperm.xlu0 %1381, %v1365
  %v1383 = vpop.permute.xlu0 %1382
  %1384 = vset.pattern.permute.xlu0 0
  %1385 = vperm.xlu0 %1384, %v1366
  %v1386 = vpop.permute.xlu0 %1385
  %1387 = vset.pattern.permute.xlu0 0
  %1388 = vperm.xlu0 %1387, %v1367
  %v1389 = vpop.permute.xlu0 %1388
  %1390 = vset.pattern.permute.xlu0 0
  %1391 = vperm.xlu0 %1390, %v1368
  %v1392 = vpop.permute.xlu0 %1391
  %1393 = vset.pattern.permute.xlu0 0
  %1394 = vperm.xlu0 %1393, %v1369
  %v1395 = vpop.permute.xlu0 %1394
  %1396 = vset.pattern.permute.xlu0 0
  %1397 = vperm.xlu0 %1396, %v1370
  %v1398 = vpop.permute.xlu0 %1397
  %v1399 = vlaneseq
  %v1400 = vshrl.u32 %v1399, 7
  %v1401 = vsub.s32 0, %v1400
  %v1402 = vrot.slane %v1371, %v1401
  %vm1403 = vcmp.eq.s32.totalorder %v1374, %v1402
  %vm1404 = vcmp.eq.s32.totalorder %v1377, %v1402
  %vm1405 = vcmp.eq.s32.totalorder %v1380, %v1402
  %vm1406 = vcmp.eq.s32.totalorder %v1383, %v1402
  %vm1407 = vcmp.eq.s32.totalorder %v1386, %v1402
  %vm1408 = vcmp.eq.s32.totalorder %v1389, %v1402
  %vm1409 = vcmp.eq.s32.totalorder %v1392, %v1402
  %vm1410 = vcmp.eq.s32.totalorder %v1395, %v1402
  %vm1411 = vcmp.eq.s32.totalorder %v1398, %v1402
  %v1412 = vld [vmem:[%s6] sm:$0xff]
  %v1413 = vld [vmem:[%s6 + $0x8] sm:$0xff]
  %v1414 = vld [vmem:[%s6 + $0x10] sm:$0xff]
  %v1415 = vld [vmem:[%s6 + $0x18] sm:$0xff]
  %v1416 = vld [vmem:[%s7] sm:$0x1]
  %v1418 = vlaneseq
  %v1419 = vshrl.u32 %v1418, 7
  %v1420 = vsub.s32 0, %v1419
  %v1421 = vrot.slane %v1416, %v1420
  %vm1423 = vcmask 261120
  %v1425 = vsel %vm1423, %v1353, 0
  %v1428 = vsel %vm1423, %v1354, 0
  %v1431 = vsel %vm1423, %v1355, 0
  %v1434 = vsel %vm1423, %v1356, 0
  %v1437 = vsel %vm1423, %v1357, 0
  %v1440 = vsel %vm1423, %v1358, 0
  %v1443 = vsel %vm1423, %v1359, 0
  %v1446 = vsel %vm1423, %v1360, 0
  %v1449 = vsel %vm1423, %v1361, 0
  %1451 = vmatprep.subr.mxu0 0.0
  %1452 = vmatpush1.msra.mxu0 %v1412
  %1453 = vmatprep.subr.mxu0 0.0
  %1454 = vmatpush1.msra.mxu0 %v1413
  %1455 = vmatprep.subr.mxu0 0.0
  %1456 = vmatpush1.msra.mxu0 %v1414
  %1457 = vmatprep.subr.mxu0 0.0
  %1458 = vmatpush1.msra.mxu0 %v1415
  %1459 = vmatprep.subr.mxu0 0.0
  %1460 = vmatpush1.msra.mxu0 0.0
  %1461 = vmatprep.subr.mxu0 0.0
  %1462 = vmatpush1.msra.mxu0 0.0
  %1463 = vmatprep.subr.mxu0 0.0
  %1464 = vmatpush1.msra.mxu0 0.0
  %1465 = vmatprep.subr.mxu0 0.0
  %1466 = vmatpush1.msra.mxu0 0.0
  %1467 = vmatprep.subr.mxu0 0.0
  %1468 = vmatpush1.msra.mxu0 0.0
  %1469 = vmatprep.subr.mxu0 0.0
  %1470 = vmatpush1.msra.mxu0 0.0
  %1471 = vmatprep.subr.mxu0 0.0
  %1472 = vmatpush1.msra.mxu0 0.0
  %1473 = vmatprep.subr.mxu0 0.0
  %1474 = vmatpush1.msra.mxu0 0.0
  %1475 = vmatprep.subr.mxu0 0.0
  %1476 = vmatpush1.msra.mxu0 0.0
  %1477 = vmatprep.subr.mxu0 0.0
  %1478 = vmatpush1.msra.mxu0 0.0
  %1479 = vmatprep.subr.mxu0 0.0
  %1480 = vmatpush1.msra.mxu0 0.0
  %1481 = vmatprep.subr.mxu0 0.0
  %1482 = vmatpush1.msra.mxu0 0.0
  %1483 = vmatprep.subr.mxu0 0.0
  %1484 = vmatpush1.msra.mxu0 0.0
  %1485 = vmatprep.subr.mxu0 0.0
  %1486 = vmatpush1.msra.mxu0 0.0
  %1487 = vmatprep.subr.mxu0 0.0
  %1488 = vmatpush1.msra.mxu0 0.0
  %1489 = vmatprep.subr.mxu0 0.0
  %1490 = vmatpush1.msra.mxu0 0.0
  %1491 = vmatprep.subr.mxu0 0.0
  %1492 = vmatpush1.msra.mxu0 0.0
  %1493 = vmatprep.subr.mxu0 0.0
  %1494 = vmatpush1.msra.mxu0 0.0
  %1495 = vmatprep.subr.mxu0 0.0
  %1496 = vmatpush1.msra.mxu0 0.0
  %1497 = vmatprep.subr.mxu0 0.0
  %1498 = vmatpush1.msra.mxu0 0.0
  %1499 = vmatprep.subr.mxu0 0.0
  %1500 = vmatpush1.msra.mxu0 0.0
  %1501 = vmatprep.subr.mxu0 0.0
  %1502 = vmatpush1.msra.mxu0 0.0
  %1503 = vmatprep.subr.mxu0 0.0
  %1504 = vmatpush1.msra.mxu0 0.0
  %1505 = vmatprep.subr.mxu0 0.0
  %1506 = vmatpush1.msra.mxu0 0.0
  %1507 = vmatprep.subr.mxu0 0.0
  %1508 = vmatpush1.msra.mxu0 0.0
  %1509 = vmatprep.subr.mxu0 0.0
  %1510 = vmatpush1.msra.mxu0 0.0
  %1511 = vmatprep.subr.mxu0 0.0
  %1512 = vmatpush1.msra.mxu0 0.0
  %1513 = vmatprep.subr.mxu0 0.0
  %1514 = vmatpush1.msra.mxu0 0.0
  %1515 = vmatprep.mubr.f32.mxu0 0.0
  %1516 = vmatmul.mubr.f32.gmra.mrb[0].mxu0 %v1425
  %v1517 = vpop.f32.mrb[0].mxu0
  %v1518 = vadd.f32 %v1421, %v1517
  %v1519 = vpop.f32.mrb[0].mxu0
  %1520 = vmatprep.mubr.f32.mxu0 0.0
  %1521 = vmatmul.mubr.f32.gmra.mrb[0].mxu0 %v1428
  %v1522 = vpop.f32.mrb[0].mxu0
  %v1523 = vadd.f32 %v1421, %v1522
  %v1524 = vpop.f32.mrb[0].mxu0
  %1525 = vmatprep.mubr.f32.mxu0 0.0
  %1526 = vmatmul.mubr.f32.gmra.mrb[0].mxu0 %v1431
  %v1527 = vpop.f32.mrb[0].mxu0
  %v1528 = vadd.f32 %v1421, %v1527
  %v1529 = vpop.f32.mrb[0].mxu0
  %1530 = vmatprep.mubr.f32.mxu0 0.0
  %1531 = vmatmul.mubr.f32.gmra.mrb[0].mxu0 %v1434
  %v1532 = vpop.f32.mrb[0].mxu0
  %v1533 = vadd.f32 %v1421, %v1532
  %v1534 = vpop.f32.mrb[0].mxu0
  %1535 = vmatprep.mubr.f32.mxu0 0.0
  %1536 = vmatmul.mubr.f32.gmra.mrb[0].mxu0 %v1437
  %v1537 = vpop.f32.mrb[0].mxu0
  %v1538 = vadd.f32 %v1421, %v1537
  %v1539 = vpop.f32.mrb[0].mxu0
  %1540 = vmatprep.mubr.f32.mxu0 0.0
  %1541 = vmatmul.mubr.f32.gmra.mrb[0].mxu0 %v1440
  %v1542 = vpop.f32.mrb[0].mxu0
  %v1543 = vadd.f32 %v1421, %v1542
  %v1544 = vpop.f32.mrb[0].mxu0
  %1545 = vmatprep.mubr.f32.mxu0 0.0
  %1546 = vmatmul.mubr.f32.gmra.mrb[0].mxu0 %v1443
  %v1547 = vpop.f32.mrb[0].mxu0
  %v1548 = vadd.f32 %v1421, %v1547
  %v1549 = vpop.f32.mrb[0].mxu0
  %1550 = vmatprep.mubr.f32.mxu0 0.0
  %1551 = vmatmul.mubr.f32.gmra.mrb[0].mxu0 %v1446
  %v1552 = vpop.f32.mrb[0].mxu0
  %v1553 = vadd.f32 %v1421, %v1552
  %v1554 = vpop.f32.mrb[0].mxu0
  %1555 = vmatprep.mubr.f32.mxu0 0.0
  %1556 = vmatmul.mubr.f32.gmra.mrb[0].mxu0 %v1449
  %v1557 = vpop.f32.mrb[0].mxu0
  %v1558 = vadd.f32 %v1421, %v1557
  %v1559 = vpop.f32.mrb[0].mxu0
  %1560 = vdwg.mxu0
  %v1561 = vmul.f32 %v1518, 0.17677669
  %v1562 = vmul.f32 %v1523, 0.17677669
  %v1563 = vmul.f32 %v1528, 0.17677669
  %v1564 = vmul.f32 %v1533, 0.17677669
  %v1565 = vmul.f32 %v1538, 0.17677669
  %v1566 = vmul.f32 %v1543, 0.17677669
  %v1567 = vmul.f32 %v1548, 0.17677669
  %v1568 = vmul.f32 %v1553, 0.17677669
  %v1569 = vmul.f32 %v1558, 0.17677669
  %1579 = vrot.lane.b32.xlu0 %v1518, 96
  %v1580 = vpop.permute.xlu0 %1579
  %1581 = vrot.lane.b32.xlu0 %v1523, 96
  %v1582 = vpop.permute.xlu0 %1581
  %1583 = vrot.lane.b32.xlu0 %v1528, 96
  %v1584 = vpop.permute.xlu0 %1583
  %1585 = vrot.lane.b32.xlu0 %v1533, 96
  %v1586 = vpop.permute.xlu0 %1585
  %1587 = vrot.lane.b32.xlu0 %v1538, 96
  %v1588 = vpop.permute.xlu0 %1587
  %1589 = vrot.lane.b32.xlu0 %v1543, 96
  %v1590 = vpop.permute.xlu0 %1589
  %1591 = vrot.lane.b32.xlu0 %v1548, 96
  %v1592 = vpop.permute.xlu0 %1591
  %1593 = vrot.lane.b32.xlu0 %v1553, 96
  %v1594 = vpop.permute.xlu0 %1593
  %1595 = vrot.lane.b32.xlu0 %v1558, 96
  %v1596 = vpop.permute.xlu0 %1595
  %v1598 = vsel %vm1423, %v1561, 0
  %v1601 = vsel %vm1423, %v1562, 0
  %v1604 = vsel %vm1423, %v1563, 0
  %v1607 = vsel %vm1423, %v1564, 0
  %v1610 = vsel %vm1423, %v1565, 0
  %v1613 = vsel %vm1423, %v1566, 0
  %v1616 = vsel %vm1423, %v1567, 0
  %v1619 = vsel %vm1423, %v1568, 0
  %v1622 = vsel %vm1423, %v1569, 0
  %v1624 = vsel %vm1423, %v1580, 0
  %v1626 = vsel %vm1423, %v1582, 0
  %v1628 = vsel %vm1423, %v1584, 0
  %v1630 = vsel %vm1423, %v1586, 0
  %v1632 = vsel %vm1423, %v1588, 0
  %v1634 = vsel %vm1423, %v1590, 0
  %v1636 = vsel %vm1423, %v1592, 0
  %v1638 = vsel %vm1423, %v1594, 0
  %v1640 = vsel %vm1423, %v1596, 0
  %1642 = vmatprep.subr.mxu0 0.0
  %1643 = vmatpush1.xpose.msra.mxu0 %v1624
  %1644 = vmatprep.subr.mxu0 0.0
  %1645 = vmatpush1.xpose.msra.mxu0 %v1626
  %1646 = vmatprep.subr.mxu0 0.0
  %1647 = vmatpush1.xpose.msra.mxu0 %v1628
  %1648 = vmatprep.subr.mxu0 0.0
  %1649 = vmatpush1.xpose.msra.mxu0 %v1630
  %1650 = vmatprep.subr.mxu0 0.0
  %1651 = vmatpush1.xpose.msra.mxu0 %v1632
  %1652 = vmatprep.subr.mxu0 0.0
  %1653 = vmatpush1.xpose.msra.mxu0 %v1634
  %1654 = vmatprep.subr.mxu0 0.0
  %1655 = vmatpush1.xpose.msra.mxu0 %v1636
  %1656 = vmatprep.subr.mxu0 0.0
  %1657 = vmatpush1.xpose.msra.mxu0 %v1638
  %1658 = vmatprep.subr.mxu0 0.0
  %1659 = vmatpush1.xpose.msra.mxu0 %v1640
  %1660 = vmatprep.subr.mxu0 0.0
  %1661 = vmatpush1.xpose.msra.mxu0 0.0
  %1662 = vmatprep.subr.mxu0 0.0
  %1663 = vmatpush1.xpose.msra.mxu0 0.0
  %1664 = vmatprep.subr.mxu0 0.0
  %1665 = vmatpush1.xpose.msra.mxu0 0.0
  %1666 = vmatprep.subr.mxu0 0.0
  %1667 = vmatpush1.xpose.msra.mxu0 0.0
  %1668 = vmatprep.subr.mxu0 0.0
  %1669 = vmatpush1.xpose.msra.mxu0 0.0
  %1670 = vmatprep.subr.mxu0 0.0
  %1671 = vmatpush1.xpose.msra.mxu0 0.0
  %1672 = vmatprep.subr.mxu0 0.0
  %1673 = vmatpush1.xpose.msra.mxu0 0.0
  %1674 = vmatprep.subr.mxu0 0.0
  %1675 = vmatpush1.xpose.msra.mxu0 0.0
  %1676 = vmatprep.subr.mxu0 0.0
  %1677 = vmatpush1.xpose.msra.mxu0 0.0
  %1678 = vmatprep.subr.mxu0 0.0
  %1679 = vmatpush1.xpose.msra.mxu0 0.0
  %1680 = vmatprep.subr.mxu0 0.0
  %1681 = vmatpush1.xpose.msra.mxu0 0.0
  %1682 = vmatprep.subr.mxu0 0.0
  %1683 = vmatpush1.xpose.msra.mxu0 0.0
  %1684 = vmatprep.subr.mxu0 0.0
  %1685 = vmatpush1.xpose.msra.mxu0 0.0
  %1686 = vmatprep.subr.mxu0 0.0
  %1687 = vmatpush1.xpose.msra.mxu0 0.0
  %1688 = vmatprep.subr.mxu0 0.0
  %1689 = vmatpush1.xpose.msra.mxu0 0.0
  %1690 = vmatprep.subr.mxu0 0.0
  %1691 = vmatpush1.xpose.msra.mxu0 0.0
  %1692 = vmatprep.subr.mxu0 0.0
  %1693 = vmatpush1.xpose.msra.mxu0 0.0
  %1694 = vmatprep.subr.mxu0 0.0
  %1695 = vmatpush1.xpose.msra.mxu0 0.0
  %1696 = vmatprep.subr.mxu0 0.0
  %1697 = vmatpush1.xpose.msra.mxu0 0.0
  %1698 = vmatprep.subr.mxu0 0.0
  %1699 = vmatpush1.xpose.msra.mxu0 0.0
  %1700 = vmatprep.subr.mxu0 0.0
  %1701 = vmatpush1.xpose.msra.mxu0 0.0
  %1702 = vmatprep.subr.mxu0 0.0
  %1703 = vmatpush1.xpose.msra.mxu0 0.0
  %1704 = vmatprep.subr.mxu0 0.0
  %1705 = vmatpush1.xpose.msra.mxu0 0.0
  %1706 = vmatprep.mubr.f32.mxu0 0.0
  %1707 = vmatmul.mubr.f32.gmra.mrb[0].mxu0 %v1598
  %v1708 = vpop.f32.mrb[0].mxu0
  %v1709 = vadd.f32 0.0, %v1708
  %v1710 = vpop.f32.mrb[0].mxu0
  %1711 = vmatprep.mubr.f32.mxu0 0.0
  %1712 = vmatmul.mubr.f32.gmra.mrb[0].mxu0 %v1601
  %v1713 = vpop.f32.mrb[0].mxu0
  %v1714 = vadd.f32 0.0, %v1713
  %v1715 = vpop.f32.mrb[0].mxu0
  %1716 = vmatprep.mubr.f32.mxu0 0.0
  %1717 = vmatmul.mubr.f32.gmra.mrb[0].mxu0 %v1604
  %v1718 = vpop.f32.mrb[0].mxu0
  %v1719 = vadd.f32 0.0, %v1718
  %v1720 = vpop.f32.mrb[0].mxu0
  %1721 = vmatprep.mubr.f32.mxu0 0.0
  %1722 = vmatmul.mubr.f32.gmra.mrb[0].mxu0 %v1607
  %v1723 = vpop.f32.mrb[0].mxu0
  %v1724 = vadd.f32 0.0, %v1723
  %v1725 = vpop.f32.mrb[0].mxu0
  %1726 = vmatprep.mubr.f32.mxu0 0.0
  %1727 = vmatmul.mubr.f32.gmra.mrb[0].mxu0 %v1610
  %v1728 = vpop.f32.mrb[0].mxu0
  %v1729 = vadd.f32 0.0, %v1728
  %v1730 = vpop.f32.mrb[0].mxu0
  %1731 = vmatprep.mubr.f32.mxu0 0.0
  %1732 = vmatmul.mubr.f32.gmra.mrb[0].mxu0 %v1613
  %v1733 = vpop.f32.mrb[0].mxu0
  %v1734 = vadd.f32 0.0, %v1733
  %v1735 = vpop.f32.mrb[0].mxu0
  %1736 = vmatprep.mubr.f32.mxu0 0.0
  %1737 = vmatmul.mubr.f32.gmra.mrb[0].mxu0 %v1616
  %v1738 = vpop.f32.mrb[0].mxu0
  %v1739 = vadd.f32 0.0, %v1738
  %v1740 = vpop.f32.mrb[0].mxu0
  %1741 = vmatprep.mubr.f32.mxu0 0.0
  %1742 = vmatmul.mubr.f32.gmra.mrb[0].mxu0 %v1619
  %v1743 = vpop.f32.mrb[0].mxu0
  %v1744 = vadd.f32 0.0, %v1743
  %v1745 = vpop.f32.mrb[0].mxu0
  %1746 = vmatprep.mubr.f32.mxu0 0.0
  %1747 = vmatmul.mubr.f32.gmra.mrb[0].mxu0 %v1622
  %v1748 = vpop.f32.mrb[0].mxu0
  %v1749 = vadd.f32 0.0, %v1748
  %v1750 = vpop.f32.mrb[0].mxu0
  %1751 = vdwg.mxu0
  %v1752 = vsel %vm1403, %v1709, -1e+30
  %v1753 = vsel %vm1404, %v1714, -1e+30
  %v1754 = vsel %vm1405, %v1719, -1e+30
  %v1755 = vsel %vm1406, %v1724, -1e+30
  %v1756 = vsel %vm1407, %v1729, -1e+30
  %v1757 = vsel %vm1408, %v1734, -1e+30
  %v1758 = vsel %vm1409, %v1739, -1e+30
  %v1759 = vsel %vm1410, %v1744, -1e+30
  %v1760 = vsel %vm1411, %v1749, -1e+30
  %vm1761 = vcmask 588800
  %v1762 = vsel %vm1761, %v1752, -inf
  %1763 = vmax.xlane.f32.xlu0 %v1762
  %v1764 = vpop.xlane.xlu0 %1763
  %v1765 = vsel %vm1761, %v1753, -inf
  %1766 = vmax.xlane.f32.xlu0 %v1765
  %v1767 = vpop.xlane.xlu0 %1766
  %v1768 = vsel %vm1761, %v1754, -inf
  %1769 = vmax.xlane.f32.xlu0 %v1768
  %v1770 = vpop.xlane.xlu0 %1769
  %v1771 = vsel %vm1761, %v1755, -inf
  %1772 = vmax.xlane.f32.xlu0 %v1771
  %v1773 = vpop.xlane.xlu0 %1772
  %v1774 = vsel %vm1761, %v1756, -inf
  %1775 = vmax.xlane.f32.xlu0 %v1774
  %v1776 = vpop.xlane.xlu0 %1775
  %v1777 = vsel %vm1761, %v1757, -inf
  %1778 = vmax.xlane.f32.xlu0 %v1777
  %v1779 = vpop.xlane.xlu0 %1778
  %v1780 = vsel %vm1761, %v1758, -inf
  %1781 = vmax.xlane.f32.xlu0 %v1780
  %v1782 = vpop.xlane.xlu0 %1781
  %v1783 = vsel %vm1761, %v1759, -inf
  %1784 = vmax.xlane.f32.xlu0 %v1783
  %v1785 = vpop.xlane.xlu0 %1784
  %v1786 = vsel %vm1761, %v1760, -inf
  %1787 = vmax.xlane.f32.xlu0 %v1786
  %v1788 = vpop.xlane.xlu0 %1787
  %v1789 = vsub.f32 %v1752, %v1764
  %v1790 = vsub.f32 %v1753, %v1767
  %v1791 = vsub.f32 %v1754, %v1770
  %v1792 = vsub.f32 %v1755, %v1773
  %v1793 = vsub.f32 %v1756, %v1776
  %v1794 = vsub.f32 %v1757, %v1779
  %v1795 = vsub.f32 %v1758, %v1782
  %v1796 = vsub.f32 %v1759, %v1785
  %v1797 = vsub.f32 %v1760, %v1788
  %v1798 = vmul.f32 %v1789, 1.442695
  %v1799 = vpow.pop %v1798
  %v1800 = vmul.f32 %v1790, 1.442695
  %v1801 = vpow.pop %v1800
  %v1802 = vmul.f32 %v1791, 1.442695
  %v1803 = vpow.pop %v1802
  %v1804 = vmul.f32 %v1792, 1.442695
  %v1805 = vpow.pop %v1804
  %v1806 = vmul.f32 %v1793, 1.442695
  %v1807 = vpow.pop %v1806
  %v1808 = vmul.f32 %v1794, 1.442695
  %v1809 = vpow.pop %v1808
  %v1810 = vmul.f32 %v1795, 1.442695
  %v1811 = vpow.pop %v1810
  %v1812 = vmul.f32 %v1796, 1.442695
  %v1813 = vpow.pop %v1812
  %v1814 = vmul.f32 %v1797, 1.442695
  %v1815 = vpow.pop %v1814
  %v1816 = vsel %vm1761, %v1799, 0.0
  %1817 = vadd.xlane.f32.xlu0 %v1816
  %v1818 = vpop.xlane.xlu0 %1817
  %v1819 = vsel %vm1761, %v1801, 0.0
  %1820 = vadd.xlane.f32.xlu0 %v1819
  %v1821 = vpop.xlane.xlu0 %1820
  %v1822 = vsel %vm1761, %v1803, 0.0
  %1823 = vadd.xlane.f32.xlu0 %v1822
  %v1824 = vpop.xlane.xlu0 %1823
  %v1825 = vsel %vm1761, %v1805, 0.0
  %1826 = vadd.xlane.f32.xlu0 %v1825
  %v1827 = vpop.xlane.xlu0 %1826
  %v1828 = vsel %vm1761, %v1807, 0.0
  %1829 = vadd.xlane.f32.xlu0 %v1828
  %v1830 = vpop.xlane.xlu0 %1829
  %v1831 = vsel %vm1761, %v1809, 0.0
  %1832 = vadd.xlane.f32.xlu0 %v1831
  %v1833 = vpop.xlane.xlu0 %1832
  %v1834 = vsel %vm1761, %v1811, 0.0
  %1835 = vadd.xlane.f32.xlu0 %v1834
  %v1836 = vpop.xlane.xlu0 %1835
  %v1837 = vsel %vm1761, %v1813, 0.0
  %1838 = vadd.xlane.f32.xlu0 %v1837
  %v1839 = vpop.xlane.xlu0 %1838
  %v1840 = vsel %vm1761, %v1815, 0.0
  %1841 = vadd.xlane.f32.xlu0 %v1840
  %v1842 = vpop.xlane.xlu0 %1841
  %v1843 = vrcp.pop %v1818
  %v1844 = vrcp.pop %v1821
  %v1845 = vrcp.pop %v1824
  %v1846 = vrcp.pop %v1827
  %v1847 = vrcp.pop %v1830
  %v1848 = vrcp.pop %v1833
  %v1849 = vrcp.pop %v1836
  %v1850 = vrcp.pop %v1839
  %v1851 = vrcp.pop %v1842
  %v1852 = vmul.f32 %v1799, %v1843
  %v1853 = vmul.f32 %v1801, %v1844
  %v1854 = vmul.f32 %v1803, %v1845
  %v1855 = vmul.f32 %v1805, %v1846
  %v1856 = vmul.f32 %v1807, %v1847
  %v1857 = vmul.f32 %v1809, %v1848
  %v1858 = vmul.f32 %v1811, %v1849
  %v1859 = vmul.f32 %v1813, %v1850
  %v1860 = vmul.f32 %v1815, %v1851
  %1861 = vrot.lane.b32.xlu0 %v1518, 64
  %v1862 = vpop.permute.xlu0 %1861
  %1863 = vrot.lane.b32.xlu0 %v1523, 64
  %v1864 = vpop.permute.xlu0 %1863
  %1865 = vrot.lane.b32.xlu0 %v1528, 64
  %v1866 = vpop.permute.xlu0 %1865
  %1867 = vrot.lane.b32.xlu0 %v1533, 64
  %v1868 = vpop.permute.xlu0 %1867
  %1869 = vrot.lane.b32.xlu0 %v1538, 64
  %v1870 = vpop.permute.xlu0 %1869
  %1871 = vrot.lane.b32.xlu0 %v1543, 64
  %v1872 = vpop.permute.xlu0 %1871
  %1873 = vrot.lane.b32.xlu0 %v1548, 64
  %v1874 = vpop.permute.xlu0 %1873
  %1875 = vrot.lane.b32.xlu0 %v1553, 64
  %v1876 = vpop.permute.xlu0 %1875
  %1877 = vrot.lane.b32.xlu0 %v1558, 64
  %v1878 = vpop.permute.xlu0 %1877
  %v1889 = vsel %vm1761, %v1852, 0
  %v1892 = vsel %vm1761, %v1853, 0
  %v1895 = vsel %vm1761, %v1854, 0
  %v1898 = vsel %vm1761, %v1855, 0
  %v1901 = vsel %vm1761, %v1856, 0
  %v1904 = vsel %vm1761, %v1857, 0
  %v1907 = vsel %vm1761, %v1858, 0
  %v1910 = vsel %vm1761, %v1859, 0
  %v1913 = vsel %vm1761, %v1860, 0
  %1915 = vmatprep.subr.mxu0 0.0
  %1916 = vmatpush1.msra.mxu0 %v1862
  %1917 = vmatprep.subr.mxu0 0.0
  %1918 = vmatpush1.msra.mxu0 %v1864
  %1919 = vmatprep.subr.mxu0 0.0
  %1920 = vmatpush1.msra.mxu0 %v1866
  %1921 = vmatprep.subr.mxu0 0.0
  %1922 = vmatpush1.msra.mxu0 %v1868
  %1923 = vmatprep.subr.mxu0 0.0
  %1924 = vmatpush1.msra.mxu0 %v1870
  %1925 = vmatprep.subr.mxu0 0.0
  %1926 = vmatpush1.msra.mxu0 %v1872
  %1927 = vmatprep.subr.mxu0 0.0
  %1928 = vmatpush1.msra.mxu0 %v1874
  %1929 = vmatprep.subr.mxu0 0.0
  %1930 = vmatpush1.msra.mxu0 %v1876
  %1931 = vmatprep.subr.mxu0 0.0
  %1932 = vmatpush1.msra.mxu0 %v1878
  %1933 = vmatprep.subr.mxu0 0.0
  %1934 = vmatpush1.msra.mxu0 0.0
  %1935 = vmatprep.subr.mxu0 0.0
  %1936 = vmatpush1.msra.mxu0 0.0
  %1937 = vmatprep.subr.mxu0 0.0
  %1938 = vmatpush1.msra.mxu0 0.0
  %1939 = vmatprep.subr.mxu0 0.0
  %1940 = vmatpush1.msra.mxu0 0.0
  %1941 = vmatprep.subr.mxu0 0.0
  %1942 = vmatpush1.msra.mxu0 0.0
  %1943 = vmatprep.subr.mxu0 0.0
  %1944 = vmatpush1.msra.mxu0 0.0
  %1945 = vmatprep.subr.mxu0 0.0
  %1946 = vmatpush1.msra.mxu0 0.0
  %1947 = vmatprep.subr.mxu0 0.0
  %1948 = vmatpush1.msra.mxu0 0.0
  %1949 = vmatprep.subr.mxu0 0.0
  %1950 = vmatpush1.msra.mxu0 0.0
  %1951 = vmatprep.subr.mxu0 0.0
  %1952 = vmatpush1.msra.mxu0 0.0
  %1953 = vmatprep.subr.mxu0 0.0
  %1954 = vmatpush1.msra.mxu0 0.0
  %1955 = vmatprep.subr.mxu0 0.0
  %1956 = vmatpush1.msra.mxu0 0.0
  %1957 = vmatprep.subr.mxu0 0.0
  %1958 = vmatpush1.msra.mxu0 0.0
  %1959 = vmatprep.subr.mxu0 0.0
  %1960 = vmatpush1.msra.mxu0 0.0
  %1961 = vmatprep.subr.mxu0 0.0
  %1962 = vmatpush1.msra.mxu0 0.0
  %1963 = vmatprep.subr.mxu0 0.0
  %1964 = vmatpush1.msra.mxu0 0.0
  %1965 = vmatprep.subr.mxu0 0.0
  %1966 = vmatpush1.msra.mxu0 0.0
  %1967 = vmatprep.subr.mxu0 0.0
  %1968 = vmatpush1.msra.mxu0 0.0
  %1969 = vmatprep.subr.mxu0 0.0
  %1970 = vmatpush1.msra.mxu0 0.0
  %1971 = vmatprep.subr.mxu0 0.0
  %1972 = vmatpush1.msra.mxu0 0.0
  %1973 = vmatprep.subr.mxu0 0.0
  %1974 = vmatpush1.msra.mxu0 0.0
  %1975 = vmatprep.subr.mxu0 0.0
  %1976 = vmatpush1.msra.mxu0 0.0
  %1977 = vmatprep.subr.mxu0 0.0
  %1978 = vmatpush1.msra.mxu0 0.0
  %1979 = vmatprep.mubr.f32.mxu0 0.0
  %1980 = vmatmul.mubr.f32.gmra.mrb[0].mxu0 %v1889
  %v1981 = vpop.f32.mrb[0].mxu0
  %v1982 = vadd.f32 0.0, %v1981
  %v1983 = vpop.f32.mrb[0].mxu0
  %1984 = vmatprep.mubr.f32.mxu0 0.0
  %1985 = vmatmul.mubr.f32.gmra.mrb[0].mxu0 %v1892
  %v1986 = vpop.f32.mrb[0].mxu0
  %v1987 = vadd.f32 0.0, %v1986
  %v1988 = vpop.f32.mrb[0].mxu0
  %1989 = vmatprep.mubr.f32.mxu0 0.0
  %1990 = vmatmul.mubr.f32.gmra.mrb[0].mxu0 %v1895
  %v1991 = vpop.f32.mrb[0].mxu0
  %v1992 = vadd.f32 0.0, %v1991
  %v1993 = vpop.f32.mrb[0].mxu0
  %1994 = vmatprep.mubr.f32.mxu0 0.0
  %1995 = vmatmul.mubr.f32.gmra.mrb[0].mxu0 %v1898
  %v1996 = vpop.f32.mrb[0].mxu0
  %v1997 = vadd.f32 0.0, %v1996
  %v1998 = vpop.f32.mrb[0].mxu0
  %1999 = vmatprep.mubr.f32.mxu0 0.0
  %2000 = vmatmul.mubr.f32.gmra.mrb[0].mxu0 %v1901
  %v2001 = vpop.f32.mrb[0].mxu0
  %v2002 = vadd.f32 0.0, %v2001
  %v2003 = vpop.f32.mrb[0].mxu0
  %2004 = vmatprep.mubr.f32.mxu0 0.0
  %2005 = vmatmul.mubr.f32.gmra.mrb[0].mxu0 %v1904
  %v2006 = vpop.f32.mrb[0].mxu0
  %v2007 = vadd.f32 0.0, %v2006
  %v2008 = vpop.f32.mrb[0].mxu0
  %2009 = vmatprep.mubr.f32.mxu0 0.0
  %2010 = vmatmul.mubr.f32.gmra.mrb[0].mxu0 %v1907
  %v2011 = vpop.f32.mrb[0].mxu0
  %v2012 = vadd.f32 0.0, %v2011
  %v2013 = vpop.f32.mrb[0].mxu0
  %2014 = vmatprep.mubr.f32.mxu0 0.0
  %2015 = vmatmul.mubr.f32.gmra.mrb[0].mxu0 %v1910
  %v2016 = vpop.f32.mrb[0].mxu0
  %v2017 = vadd.f32 0.0, %v2016
  %v2018 = vpop.f32.mrb[0].mxu0
  %2019 = vmatprep.mubr.f32.mxu0 0.0
  %2020 = vmatmul.mubr.f32.gmra.mrb[0].mxu0 %v1913
  %v2021 = vpop.f32.mrb[0].mxu0
  %v2022 = vadd.f32 0.0, %v2021
  %v2023 = vpop.f32.mrb[0].mxu0
  %2024 = vdwg.mxu0
  %v2025 = vadd.f32 %v1353, %v1982
  %v2026 = vadd.f32 %v1354, %v1987
  %v2027 = vadd.f32 %v1355, %v1992
  %v2028 = vadd.f32 %v1356, %v1997
  %v2029 = vadd.f32 %v1357, %v2002
  %v2030 = vadd.f32 %v1358, %v2007
  %v2031 = vadd.f32 %v1359, %v2012
  %v2032 = vadd.f32 %v1360, %v2017
  %v2033 = vadd.f32 %v1361, %v2022
  %2034 = vrot.lane.b32.xlu0 %v1518, 32
  %v2035 = vpop.permute.xlu0 %2034
  %2036 = vrot.lane.b32.xlu0 %v1523, 32
  %v2037 = vpop.permute.xlu0 %2036
  %2038 = vrot.lane.b32.xlu0 %v1528, 32
  %v2039 = vpop.permute.xlu0 %2038
  %2040 = vrot.lane.b32.xlu0 %v1533, 32
  %v2041 = vpop.permute.xlu0 %2040
  %2042 = vrot.lane.b32.xlu0 %v1538, 32
  %v2043 = vpop.permute.xlu0 %2042
  %2044 = vrot.lane.b32.xlu0 %v1543, 32
  %v2045 = vpop.permute.xlu0 %2044
  %2046 = vrot.lane.b32.xlu0 %v1548, 32
  %v2047 = vpop.permute.xlu0 %2046
  %2048 = vrot.lane.b32.xlu0 %v1553, 32
  %v2049 = vpop.permute.xlu0 %2048
  %2050 = vrot.lane.b32.xlu0 %v1558, 32
  %v2051 = vpop.permute.xlu0 %2050
  %v2061 = vadd.f32 %v2025, %v2035
  %v2062 = vadd.f32 %v2026, %v2037
  %v2063 = vadd.f32 %v2027, %v2039
  %v2064 = vadd.f32 %v2028, %v2041
  %v2065 = vadd.f32 %v2029, %v2043
  %v2066 = vadd.f32 %v2030, %v2045
  %v2067 = vadd.f32 %v2031, %v2047
  %v2068 = vadd.f32 %v2032, %v2049
  %v2069 = vadd.f32 %v2033, %v2051
  %s2070 = scalar_lea.vmem %s6, 32
  %v2071 = vld [vmem:[%s2070] sm:$0xff]
  %v2072 = vld [vmem:[%s2070 + $0x8] sm:$0xff]
  %v2073 = vld [vmem:[%s2070 + $0x10] sm:$0xff]
  %v2074 = vld [vmem:[%s2070 + $0x18] sm:$0xff]
  %s2075 = scalar_lea.vmem %s7, 1
  %v2076 = vld [vmem:[%s2075] sm:$0x1]
  %v2078 = vlaneseq
  %v2079 = vshrl.u32 %v2078, 7
  %v2080 = vsub.s32 0, %v2079
  %v2081 = vrot.slane %v2076, %v2080
  %v2084 = vsel %vm1423, %v2061, 0
  %v2087 = vsel %vm1423, %v2062, 0
  %v2090 = vsel %vm1423, %v2063, 0
  %v2093 = vsel %vm1423, %v2064, 0
  %v2096 = vsel %vm1423, %v2065, 0
  %v2099 = vsel %vm1423, %v2066, 0
  %v2102 = vsel %vm1423, %v2067, 0
  %v2105 = vsel %vm1423, %v2068, 0
  %v2108 = vsel %vm1423, %v2069, 0
  %2110 = vmatprep.subr.mxu0 0.0
  %2111 = vmatpush1.msra.mxu0 %v2071
  %2112 = vmatprep.subr.mxu0 0.0
  %2113 = vmatpush1.msra.mxu0 %v2072
  %2114 = vmatprep.subr.mxu0 0.0
  %2115 = vmatpush1.msra.mxu0 %v2073
  %2116 = vmatprep.subr.mxu0 0.0
  %2117 = vmatpush1.msra.mxu0 %v2074
  %2118 = vmatprep.subr.mxu0 0.0
  %2119 = vmatpush1.msra.mxu0 0.0
  %2120 = vmatprep.subr.mxu0 0.0
  %2121 = vmatpush1.msra.mxu0 0.0
  %2122 = vmatprep.subr.mxu0 0.0
  %2123 = vmatpush1.msra.mxu0 0.0
  %2124 = vmatprep.subr.mxu0 0.0
  %2125 = vmatpush1.msra.mxu0 0.0
  %2126 = vmatprep.subr.mxu0 0.0
  %2127 = vmatpush1.msra.mxu0 0.0
  %2128 = vmatprep.subr.mxu0 0.0
  %2129 = vmatpush1.msra.mxu0 0.0
  %2130 = vmatprep.subr.mxu0 0.0
  %2131 = vmatpush1.msra.mxu0 0.0
  %2132 = vmatprep.subr.mxu0 0.0
  %2133 = vmatpush1.msra.mxu0 0.0
  %2134 = vmatprep.subr.mxu0 0.0
  %2135 = vmatpush1.msra.mxu0 0.0
  %2136 = vmatprep.subr.mxu0 0.0
  %2137 = vmatpush1.msra.mxu0 0.0
  %2138 = vmatprep.subr.mxu0 0.0
  %2139 = vmatpush1.msra.mxu0 0.0
  %2140 = vmatprep.subr.mxu0 0.0
  %2141 = vmatpush1.msra.mxu0 0.0
  %2142 = vmatprep.subr.mxu0 0.0
  %2143 = vmatpush1.msra.mxu0 0.0
  %2144 = vmatprep.subr.mxu0 0.0
  %2145 = vmatpush1.msra.mxu0 0.0
  %2146 = vmatprep.subr.mxu0 0.0
  %2147 = vmatpush1.msra.mxu0 0.0
  %2148 = vmatprep.subr.mxu0 0.0
  %2149 = vmatpush1.msra.mxu0 0.0
  %2150 = vmatprep.subr.mxu0 0.0
  %2151 = vmatpush1.msra.mxu0 0.0
  %2152 = vmatprep.subr.mxu0 0.0
  %2153 = vmatpush1.msra.mxu0 0.0
  %2154 = vmatprep.subr.mxu0 0.0
  %2155 = vmatpush1.msra.mxu0 0.0
  %2156 = vmatprep.subr.mxu0 0.0
  %2157 = vmatpush1.msra.mxu0 0.0
  %2158 = vmatprep.subr.mxu0 0.0
  %2159 = vmatpush1.msra.mxu0 0.0
  %2160 = vmatprep.subr.mxu0 0.0
  %2161 = vmatpush1.msra.mxu0 0.0
  %2162 = vmatprep.subr.mxu0 0.0
  %2163 = vmatpush1.msra.mxu0 0.0
  %2164 = vmatprep.subr.mxu0 0.0
  %2165 = vmatpush1.msra.mxu0 0.0
  %2166 = vmatprep.subr.mxu0 0.0
  %2167 = vmatpush1.msra.mxu0 0.0
  %2168 = vmatprep.subr.mxu0 0.0
  %2169 = vmatpush1.msra.mxu0 0.0
  %2170 = vmatprep.subr.mxu0 0.0
  %2171 = vmatpush1.msra.mxu0 0.0
  %2172 = vmatprep.subr.mxu0 0.0
  %2173 = vmatpush1.msra.mxu0 0.0
  %2174 = vmatprep.mubr.f32.mxu0 0.0
  %2175 = vmatmul.mubr.f32.gmra.mrb[0].mxu0 %v2084
  %v2176 = vpop.f32.mrb[0].mxu0
  %v2177 = vadd.f32 %v2081, %v2176
  %v2178 = vpop.f32.mrb[0].mxu0
  %2179 = vmatprep.mubr.f32.mxu0 0.0
  %2180 = vmatmul.mubr.f32.gmra.mrb[0].mxu0 %v2087
  %v2181 = vpop.f32.mrb[0].mxu0
  %v2182 = vadd.f32 %v2081, %v2181
  %v2183 = vpop.f32.mrb[0].mxu0
  %2184 = vmatprep.mubr.f32.mxu0 0.0
  %2185 = vmatmul.mubr.f32.gmra.mrb[0].mxu0 %v2090
  %v2186 = vpop.f32.mrb[0].mxu0
  %v2187 = vadd.f32 %v2081, %v2186
  %v2188 = vpop.f32.mrb[0].mxu0
  %2189 = vmatprep.mubr.f32.mxu0 0.0
  %2190 = vmatmul.mubr.f32.gmra.mrb[0].mxu0 %v2093
  %v2191 = vpop.f32.mrb[0].mxu0
  %v2192 = vadd.f32 %v2081, %v2191
  %v2193 = vpop.f32.mrb[0].mxu0
  %2194 = vmatprep.mubr.f32.mxu0 0.0
  %2195 = vmatmul.mubr.f32.gmra.mrb[0].mxu0 %v2096
  %v2196 = vpop.f32.mrb[0].mxu0
  %v2197 = vadd.f32 %v2081, %v2196
  %v2198 = vpop.f32.mrb[0].mxu0
  %2199 = vmatprep.mubr.f32.mxu0 0.0
  %2200 = vmatmul.mubr.f32.gmra.mrb[0].mxu0 %v2099
  %v2201 = vpop.f32.mrb[0].mxu0
  %v2202 = vadd.f32 %v2081, %v2201
  %v2203 = vpop.f32.mrb[0].mxu0
  %2204 = vmatprep.mubr.f32.mxu0 0.0
  %2205 = vmatmul.mubr.f32.gmra.mrb[0].mxu0 %v2102
  %v2206 = vpop.f32.mrb[0].mxu0
  %v2207 = vadd.f32 %v2081, %v2206
  %v2208 = vpop.f32.mrb[0].mxu0
  %2209 = vmatprep.mubr.f32.mxu0 0.0
  %2210 = vmatmul.mubr.f32.gmra.mrb[0].mxu0 %v2105
  %v2211 = vpop.f32.mrb[0].mxu0
  %v2212 = vadd.f32 %v2081, %v2211
  %v2213 = vpop.f32.mrb[0].mxu0
  %2214 = vmatprep.mubr.f32.mxu0 0.0
  %2215 = vmatmul.mubr.f32.gmra.mrb[0].mxu0 %v2108
  %v2216 = vpop.f32.mrb[0].mxu0
  %v2217 = vadd.f32 %v2081, %v2216
  %v2218 = vpop.f32.mrb[0].mxu0
  %2219 = vdwg.mxu0
  %v2220 = vmul.f32 %v2177, 0.17677669
  %v2221 = vmul.f32 %v2182, 0.17677669
  %v2222 = vmul.f32 %v2187, 0.17677669
  %v2223 = vmul.f32 %v2192, 0.17677669
  %v2224 = vmul.f32 %v2197, 0.17677669
  %v2225 = vmul.f32 %v2202, 0.17677669
  %v2226 = vmul.f32 %v2207, 0.17677669
  %v2227 = vmul.f32 %v2212, 0.17677669
  %v2228 = vmul.f32 %v2217, 0.17677669
  %2238 = vrot.lane.b32.xlu0 %v2177, 96
  %v2239 = vpop.permute.xlu0 %2238
  %2240 = vrot.lane.b32.xlu0 %v2182, 96
  %v2241 = vpop.permute.xlu0 %2240
  %2242 = vrot.lane.b32.xlu0 %v2187, 96
  %v2243 = vpop.permute.xlu0 %2242
  %2244 = vrot.lane.b32.xlu0 %v2192, 96
  %v2245 = vpop.permute.xlu0 %2244
  %2246 = vrot.lane.b32.xlu0 %v2197, 96
  %v2247 = vpop.permute.xlu0 %2246
  %2248 = vrot.lane.b32.xlu0 %v2202, 96
  %v2249 = vpop.permute.xlu0 %2248
  %2250 = vrot.lane.b32.xlu0 %v2207, 96
  %v2251 = vpop.permute.xlu0 %2250
  %2252 = vrot.lane.b32.xlu0 %v2212, 96
  %v2253 = vpop.permute.xlu0 %2252
  %2254 = vrot.lane.b32.xlu0 %v2217, 96
  %v2255 = vpop.permute.xlu0 %2254
  %v2257 = vsel %vm1423, %v2220, 0
  %v2260 = vsel %vm1423, %v2221, 0
  %v2263 = vsel %vm1423, %v2222, 0
  %v2266 = vsel %vm1423, %v2223, 0
  %v2269 = vsel %vm1423, %v2224, 0
  %v2272 = vsel %vm1423, %v2225, 0
  %v2275 = vsel %vm1423, %v2226, 0
  %v2278 = vsel %vm1423, %v2227, 0
  %v2281 = vsel %vm1423, %v2228, 0
  %v2283 = vsel %vm1423, %v2239, 0
  %v2285 = vsel %vm1423, %v2241, 0
  %v2287 = vsel %vm1423, %v2243, 0
  %v2289 = vsel %vm1423, %v2245, 0
  %v2291 = vsel %vm1423, %v2247, 0
  %v2293 = vsel %vm1423, %v2249, 0
  %v2295 = vsel %vm1423, %v2251, 0
  %v2297 = vsel %vm1423, %v2253, 0
  %v2299 = vsel %vm1423, %v2255, 0
  %2301 = vmatprep.subr.mxu0 0.0
  %2302 = vmatpush1.xpose.msra.mxu0 %v2283
  %2303 = vmatprep.subr.mxu0 0.0
  %2304 = vmatpush1.xpose.msra.mxu0 %v2285
  %2305 = vmatprep.subr.mxu0 0.0
  %2306 = vmatpush1.xpose.msra.mxu0 %v2287
  %2307 = vmatprep.subr.mxu0 0.0
  %2308 = vmatpush1.xpose.msra.mxu0 %v2289
  %2309 = vmatprep.subr.mxu0 0.0
  %2310 = vmatpush1.xpose.msra.mxu0 %v2291
  %2311 = vmatprep.subr.mxu0 0.0
  %2312 = vmatpush1.xpose.msra.mxu0 %v2293
  %2313 = vmatprep.subr.mxu0 0.0
  %2314 = vmatpush1.xpose.msra.mxu0 %v2295
  %2315 = vmatprep.subr.mxu0 0.0
  %2316 = vmatpush1.xpose.msra.mxu0 %v2297
  %2317 = vmatprep.subr.mxu0 0.0
  %2318 = vmatpush1.xpose.msra.mxu0 %v2299
  %2319 = vmatprep.subr.mxu0 0.0
  %2320 = vmatpush1.xpose.msra.mxu0 0.0
  %2321 = vmatprep.subr.mxu0 0.0
  %2322 = vmatpush1.xpose.msra.mxu0 0.0
  %2323 = vmatprep.subr.mxu0 0.0
  %2324 = vmatpush1.xpose.msra.mxu0 0.0
  %2325 = vmatprep.subr.mxu0 0.0
  %2326 = vmatpush1.xpose.msra.mxu0 0.0
  %2327 = vmatprep.subr.mxu0 0.0
  %2328 = vmatpush1.xpose.msra.mxu0 0.0
  %2329 = vmatprep.subr.mxu0 0.0
  %2330 = vmatpush1.xpose.msra.mxu0 0.0
  %2331 = vmatprep.subr.mxu0 0.0
  %2332 = vmatpush1.xpose.msra.mxu0 0.0
  %2333 = vmatprep.subr.mxu0 0.0
  %2334 = vmatpush1.xpose.msra.mxu0 0.0
  %2335 = vmatprep.subr.mxu0 0.0
  %2336 = vmatpush1.xpose.msra.mxu0 0.0
  %2337 = vmatprep.subr.mxu0 0.0
  %2338 = vmatpush1.xpose.msra.mxu0 0.0
  %2339 = vmatprep.subr.mxu0 0.0
  %2340 = vmatpush1.xpose.msra.mxu0 0.0
  %2341 = vmatprep.subr.mxu0 0.0
  %2342 = vmatpush1.xpose.msra.mxu0 0.0
  %2343 = vmatprep.subr.mxu0 0.0
  %2344 = vmatpush1.xpose.msra.mxu0 0.0
  %2345 = vmatprep.subr.mxu0 0.0
  %2346 = vmatpush1.xpose.msra.mxu0 0.0
  %2347 = vmatprep.subr.mxu0 0.0
  %2348 = vmatpush1.xpose.msra.mxu0 0.0
  %2349 = vmatprep.subr.mxu0 0.0
  %2350 = vmatpush1.xpose.msra.mxu0 0.0
  %2351 = vmatprep.subr.mxu0 0.0
  %2352 = vmatpush1.xpose.msra.mxu0 0.0
  %2353 = vmatprep.subr.mxu0 0.0
  %2354 = vmatpush1.xpose.msra.mxu0 0.0
  %2355 = vmatprep.subr.mxu0 0.0
  %2356 = vmatpush1.xpose.msra.mxu0 0.0
  %2357 = vmatprep.subr.mxu0 0.0
  %2358 = vmatpush1.xpose.msra.mxu0 0.0
  %2359 = vmatprep.subr.mxu0 0.0
  %2360 = vmatpush1.xpose.msra.mxu0 0.0
  %2361 = vmatprep.subr.mxu0 0.0
  %2362 = vmatpush1.xpose.msra.mxu0 0.0
  %2363 = vmatprep.subr.mxu0 0.0
  %2364 = vmatpush1.xpose.msra.mxu0 0.0
  %2365 = vmatprep.mubr.f32.mxu0 0.0
  %2366 = vmatmul.mubr.f32.gmra.mrb[0].mxu0 %v2257
  %v2367 = vpop.f32.mrb[0].mxu0
  %v2368 = vadd.f32 0.0, %v2367
  %v2369 = vpop.f32.mrb[0].mxu0
  %2370 = vmatprep.mubr.f32.mxu0 0.0
  %2371 = vmatmul.mubr.f32.gmra.mrb[0].mxu0 %v2260
  %v2372 = vpop.f32.mrb[0].mxu0
  %v2373 = vadd.f32 0.0, %v2372
  %v2374 = vpop.f32.mrb[0].mxu0
  %2375 = vmatprep.mubr.f32.mxu0 0.0
  %2376 = vmatmul.mubr.f32.gmra.mrb[0].mxu0 %v2263
  %v2377 = vpop.f32.mrb[0].mxu0
  %v2378 = vadd.f32 0.0, %v2377
  %v2379 = vpop.f32.mrb[0].mxu0
  %2380 = vmatprep.mubr.f32.mxu0 0.0
  %2381 = vmatmul.mubr.f32.gmra.mrb[0].mxu0 %v2266
  %v2382 = vpop.f32.mrb[0].mxu0
  %v2383 = vadd.f32 0.0, %v2382
  %v2384 = vpop.f32.mrb[0].mxu0
  %2385 = vmatprep.mubr.f32.mxu0 0.0
  %2386 = vmatmul.mubr.f32.gmra.mrb[0].mxu0 %v2269
  %v2387 = vpop.f32.mrb[0].mxu0
  %v2388 = vadd.f32 0.0, %v2387
  %v2389 = vpop.f32.mrb[0].mxu0
  %2390 = vmatprep.mubr.f32.mxu0 0.0
  %2391 = vmatmul.mubr.f32.gmra.mrb[0].mxu0 %v2272
  %v2392 = vpop.f32.mrb[0].mxu0
  %v2393 = vadd.f32 0.0, %v2392
  %v2394 = vpop.f32.mrb[0].mxu0
  %2395 = vmatprep.mubr.f32.mxu0 0.0
  %2396 = vmatmul.mubr.f32.gmra.mrb[0].mxu0 %v2275
  %v2397 = vpop.f32.mrb[0].mxu0
  %v2398 = vadd.f32 0.0, %v2397
  %v2399 = vpop.f32.mrb[0].mxu0
  %2400 = vmatprep.mubr.f32.mxu0 0.0
  %2401 = vmatmul.mubr.f32.gmra.mrb[0].mxu0 %v2278
  %v2402 = vpop.f32.mrb[0].mxu0
  %v2403 = vadd.f32 0.0, %v2402
  %v2404 = vpop.f32.mrb[0].mxu0
  %2405 = vmatprep.mubr.f32.mxu0 0.0
  %2406 = vmatmul.mubr.f32.gmra.mrb[0].mxu0 %v2281
  %v2407 = vpop.f32.mrb[0].mxu0
  %v2408 = vadd.f32 0.0, %v2407
  %v2409 = vpop.f32.mrb[0].mxu0
  %2410 = vdwg.mxu0
  %v2411 = vsel %vm1403, %v2368, -1e+30
  %v2412 = vsel %vm1404, %v2373, -1e+30
  %v2413 = vsel %vm1405, %v2378, -1e+30
  %v2414 = vsel %vm1406, %v2383, -1e+30
  %v2415 = vsel %vm1407, %v2388, -1e+30
  %v2416 = vsel %vm1408, %v2393, -1e+30
  %v2417 = vsel %vm1409, %v2398, -1e+30
  %v2418 = vsel %vm1410, %v2403, -1e+30
  %v2419 = vsel %vm1411, %v2408, -1e+30
  %v2420 = vsel %vm1761, %v2411, -inf
  %2421 = vmax.xlane.f32.xlu0 %v2420
  %v2422 = vpop.xlane.xlu0 %2421
  %v2423 = vsel %vm1761, %v2412, -inf
  %2424 = vmax.xlane.f32.xlu0 %v2423
  %v2425 = vpop.xlane.xlu0 %2424
  %v2426 = vsel %vm1761, %v2413, -inf
  %2427 = vmax.xlane.f32.xlu0 %v2426
  %v2428 = vpop.xlane.xlu0 %2427
  %v2429 = vsel %vm1761, %v2414, -inf
  %2430 = vmax.xlane.f32.xlu0 %v2429
  %v2431 = vpop.xlane.xlu0 %2430
  %v2432 = vsel %vm1761, %v2415, -inf
  %2433 = vmax.xlane.f32.xlu0 %v2432
  %v2434 = vpop.xlane.xlu0 %2433
  %v2435 = vsel %vm1761, %v2416, -inf
  %2436 = vmax.xlane.f32.xlu0 %v2435
  %v2437 = vpop.xlane.xlu0 %2436
  %v2438 = vsel %vm1761, %v2417, -inf
  %2439 = vmax.xlane.f32.xlu0 %v2438
  %v2440 = vpop.xlane.xlu0 %2439
  %v2441 = vsel %vm1761, %v2418, -inf
  %2442 = vmax.xlane.f32.xlu0 %v2441
  %v2443 = vpop.xlane.xlu0 %2442
  %v2444 = vsel %vm1761, %v2419, -inf
  %2445 = vmax.xlane.f32.xlu0 %v2444
  %v2446 = vpop.xlane.xlu0 %2445
  %v2447 = vsub.f32 %v2411, %v2422
  %v2448 = vsub.f32 %v2412, %v2425
  %v2449 = vsub.f32 %v2413, %v2428
  %v2450 = vsub.f32 %v2414, %v2431
  %v2451 = vsub.f32 %v2415, %v2434
  %v2452 = vsub.f32 %v2416, %v2437
  %v2453 = vsub.f32 %v2417, %v2440
  %v2454 = vsub.f32 %v2418, %v2443
  %v2455 = vsub.f32 %v2419, %v2446
  %v2456 = vmul.f32 %v2447, 1.442695
  %v2457 = vpow.pop %v2456
  %v2458 = vmul.f32 %v2448, 1.442695
  %v2459 = vpow.pop %v2458
  %v2460 = vmul.f32 %v2449, 1.442695
  %v2461 = vpow.pop %v2460
  %v2462 = vmul.f32 %v2450, 1.442695
  %v2463 = vpow.pop %v2462
  %v2464 = vmul.f32 %v2451, 1.442695
  %v2465 = vpow.pop %v2464
  %v2466 = vmul.f32 %v2452, 1.442695
  %v2467 = vpow.pop %v2466
  %v2468 = vmul.f32 %v2453, 1.442695
  %v2469 = vpow.pop %v2468
  %v2470 = vmul.f32 %v2454, 1.442695
  %v2471 = vpow.pop %v2470
  %v2472 = vmul.f32 %v2455, 1.442695
  %v2473 = vpow.pop %v2472
  %v2474 = vsel %vm1761, %v2457, 0.0
  %2475 = vadd.xlane.f32.xlu0 %v2474
  %v2476 = vpop.xlane.xlu0 %2475
  %v2477 = vsel %vm1761, %v2459, 0.0
  %2478 = vadd.xlane.f32.xlu0 %v2477
  %v2479 = vpop.xlane.xlu0 %2478
  %v2480 = vsel %vm1761, %v2461, 0.0
  %2481 = vadd.xlane.f32.xlu0 %v2480
  %v2482 = vpop.xlane.xlu0 %2481
  %v2483 = vsel %vm1761, %v2463, 0.0
  %2484 = vadd.xlane.f32.xlu0 %v2483
  %v2485 = vpop.xlane.xlu0 %2484
  %v2486 = vsel %vm1761, %v2465, 0.0
  %2487 = vadd.xlane.f32.xlu0 %v2486
  %v2488 = vpop.xlane.xlu0 %2487
  %v2489 = vsel %vm1761, %v2467, 0.0
  %2490 = vadd.xlane.f32.xlu0 %v2489
  %v2491 = vpop.xlane.xlu0 %2490
  %v2492 = vsel %vm1761, %v2469, 0.0
  %2493 = vadd.xlane.f32.xlu0 %v2492
  %v2494 = vpop.xlane.xlu0 %2493
  %v2495 = vsel %vm1761, %v2471, 0.0
  %2496 = vadd.xlane.f32.xlu0 %v2495
  %v2497 = vpop.xlane.xlu0 %2496
  %v2498 = vsel %vm1761, %v2473, 0.0
  %2499 = vadd.xlane.f32.xlu0 %v2498
  %v2500 = vpop.xlane.xlu0 %2499
  %v2501 = vrcp.pop %v2476
  %v2502 = vrcp.pop %v2479
  %v2503 = vrcp.pop %v2482
  %v2504 = vrcp.pop %v2485
  %v2505 = vrcp.pop %v2488
  %v2506 = vrcp.pop %v2491
  %v2507 = vrcp.pop %v2494
  %v2508 = vrcp.pop %v2497
  %v2509 = vrcp.pop %v2500
  %v2510 = vmul.f32 %v2457, %v2501
  %v2511 = vmul.f32 %v2459, %v2502
  %v2512 = vmul.f32 %v2461, %v2503
  %v2513 = vmul.f32 %v2463, %v2504
  %v2514 = vmul.f32 %v2465, %v2505
  %v2515 = vmul.f32 %v2467, %v2506
  %v2516 = vmul.f32 %v2469, %v2507
  %v2517 = vmul.f32 %v2471, %v2508
  %v2518 = vmul.f32 %v2473, %v2509
  %2519 = vrot.lane.b32.xlu0 %v2177, 64
  %v2520 = vpop.permute.xlu0 %2519
  %2521 = vrot.lane.b32.xlu0 %v2182, 64
  %v2522 = vpop.permute.xlu0 %2521
  %2523 = vrot.lane.b32.xlu0 %v2187, 64
  %v2524 = vpop.permute.xlu0 %2523
  %2525 = vrot.lane.b32.xlu0 %v2192, 64
  %v2526 = vpop.permute.xlu0 %2525
  %2527 = vrot.lane.b32.xlu0 %v2197, 64
  %v2528 = vpop.permute.xlu0 %2527
  %2529 = vrot.lane.b32.xlu0 %v2202, 64
  %v2530 = vpop.permute.xlu0 %2529
  %2531 = vrot.lane.b32.xlu0 %v2207, 64
  %v2532 = vpop.permute.xlu0 %2531
  %2533 = vrot.lane.b32.xlu0 %v2212, 64
  %v2534 = vpop.permute.xlu0 %2533
  %2535 = vrot.lane.b32.xlu0 %v2217, 64
  %v2536 = vpop.permute.xlu0 %2535
  %v2547 = vsel %vm1761, %v2510, 0
  %v2550 = vsel %vm1761, %v2511, 0
  %v2553 = vsel %vm1761, %v2512, 0
  %v2556 = vsel %vm1761, %v2513, 0
  %v2559 = vsel %vm1761, %v2514, 0
  %v2562 = vsel %vm1761, %v2515, 0
  %v2565 = vsel %vm1761, %v2516, 0
  %v2568 = vsel %vm1761, %v2517, 0
  %v2571 = vsel %vm1761, %v2518, 0
  %2573 = vmatprep.subr.mxu0 0.0
  %2574 = vmatpush1.msra.mxu0 %v2520
  %2575 = vmatprep.subr.mxu0 0.0
  %2576 = vmatpush1.msra.mxu0 %v2522
  %2577 = vmatprep.subr.mxu0 0.0
  %2578 = vmatpush1.msra.mxu0 %v2524
  %2579 = vmatprep.subr.mxu0 0.0
  %2580 = vmatpush1.msra.mxu0 %v2526
  %2581 = vmatprep.subr.mxu0 0.0
  %2582 = vmatpush1.msra.mxu0 %v2528
  %2583 = vmatprep.subr.mxu0 0.0
  %2584 = vmatpush1.msra.mxu0 %v2530
  %2585 = vmatprep.subr.mxu0 0.0
  %2586 = vmatpush1.msra.mxu0 %v2532
  %2587 = vmatprep.subr.mxu0 0.0
  %2588 = vmatpush1.msra.mxu0 %v2534
  %2589 = vmatprep.subr.mxu0 0.0
  %2590 = vmatpush1.msra.mxu0 %v2536
  %2591 = vmatprep.subr.mxu0 0.0
  %2592 = vmatpush1.msra.mxu0 0.0
  %2593 = vmatprep.subr.mxu0 0.0
  %2594 = vmatpush1.msra.mxu0 0.0
  %2595 = vmatprep.subr.mxu0 0.0
  %2596 = vmatpush1.msra.mxu0 0.0
  %2597 = vmatprep.subr.mxu0 0.0
  %2598 = vmatpush1.msra.mxu0 0.0
  %2599 = vmatprep.subr.mxu0 0.0
  %2600 = vmatpush1.msra.mxu0 0.0
  %2601 = vmatprep.subr.mxu0 0.0
  %2602 = vmatpush1.msra.mxu0 0.0
  %2603 = vmatprep.subr.mxu0 0.0
  %2604 = vmatpush1.msra.mxu0 0.0
  %2605 = vmatprep.subr.mxu0 0.0
  %2606 = vmatpush1.msra.mxu0 0.0
  %2607 = vmatprep.subr.mxu0 0.0
  %2608 = vmatpush1.msra.mxu0 0.0
  %2609 = vmatprep.subr.mxu0 0.0
  %2610 = vmatpush1.msra.mxu0 0.0
  %2611 = vmatprep.subr.mxu0 0.0
  %2612 = vmatpush1.msra.mxu0 0.0
  %2613 = vmatprep.subr.mxu0 0.0
  %2614 = vmatpush1.msra.mxu0 0.0
  %2615 = vmatprep.subr.mxu0 0.0
  %2616 = vmatpush1.msra.mxu0 0.0
  %2617 = vmatprep.subr.mxu0 0.0
  %2618 = vmatpush1.msra.mxu0 0.0
  %2619 = vmatprep.subr.mxu0 0.0
  %2620 = vmatpush1.msra.mxu0 0.0
  %2621 = vmatprep.subr.mxu0 0.0
  %2622 = vmatpush1.msra.mxu0 0.0
  %2623 = vmatprep.subr.mxu0 0.0
  %2624 = vmatpush1.msra.mxu0 0.0
  %2625 = vmatprep.subr.mxu0 0.0
  %2626 = vmatpush1.msra.mxu0 0.0
  %2627 = vmatprep.subr.mxu0 0.0
  %2628 = vmatpush1.msra.mxu0 0.0
  %2629 = vmatprep.subr.mxu0 0.0
  %2630 = vmatpush1.msra.mxu0 0.0
  %2631 = vmatprep.subr.mxu0 0.0
  %2632 = vmatpush1.msra.mxu0 0.0
  %2633 = vmatprep.subr.mxu0 0.0
  %2634 = vmatpush1.msra.mxu0 0.0
  %2635 = vmatprep.subr.mxu0 0.0
  %2636 = vmatpush1.msra.mxu0 0.0
  %2637 = vmatprep.mubr.f32.mxu0 0.0
  %2638 = vmatmul.mubr.f32.gmra.mrb[0].mxu0 %v2547
  %v2639 = vpop.f32.mrb[0].mxu0
  %v2640 = vadd.f32 0.0, %v2639
  %v2641 = vpop.f32.mrb[0].mxu0
  %2642 = vmatprep.mubr.f32.mxu0 0.0
  %2643 = vmatmul.mubr.f32.gmra.mrb[0].mxu0 %v2550
  %v2644 = vpop.f32.mrb[0].mxu0
  %v2645 = vadd.f32 0.0, %v2644
  %v2646 = vpop.f32.mrb[0].mxu0
  %2647 = vmatprep.mubr.f32.mxu0 0.0
  %2648 = vmatmul.mubr.f32.gmra.mrb[0].mxu0 %v2553
  %v2649 = vpop.f32.mrb[0].mxu0
  %v2650 = vadd.f32 0.0, %v2649
  %v2651 = vpop.f32.mrb[0].mxu0
  %2652 = vmatprep.mubr.f32.mxu0 0.0
  %2653 = vmatmul.mubr.f32.gmra.mrb[0].mxu0 %v2556
  %v2654 = vpop.f32.mrb[0].mxu0
  %v2655 = vadd.f32 0.0, %v2654
  %v2656 = vpop.f32.mrb[0].mxu0
  %2657 = vmatprep.mubr.f32.mxu0 0.0
  %2658 = vmatmul.mubr.f32.gmra.mrb[0].mxu0 %v2559
  %v2659 = vpop.f32.mrb[0].mxu0
  %v2660 = vadd.f32 0.0, %v2659
  %v2661 = vpop.f32.mrb[0].mxu0
  %2662 = vmatprep.mubr.f32.mxu0 0.0
  %2663 = vmatmul.mubr.f32.gmra.mrb[0].mxu0 %v2562
  %v2664 = vpop.f32.mrb[0].mxu0
  %v2665 = vadd.f32 0.0, %v2664
  %v2666 = vpop.f32.mrb[0].mxu0
  %2667 = vmatprep.mubr.f32.mxu0 0.0
  %2668 = vmatmul.mubr.f32.gmra.mrb[0].mxu0 %v2565
  %v2669 = vpop.f32.mrb[0].mxu0
  %v2670 = vadd.f32 0.0, %v2669
  %v2671 = vpop.f32.mrb[0].mxu0
  %2672 = vmatprep.mubr.f32.mxu0 0.0
  %2673 = vmatmul.mubr.f32.gmra.mrb[0].mxu0 %v2568
  %v2674 = vpop.f32.mrb[0].mxu0
  %v2675 = vadd.f32 0.0, %v2674
  %v2676 = vpop.f32.mrb[0].mxu0
  %2677 = vmatprep.mubr.f32.mxu0 0.0
  %2678 = vmatmul.mubr.f32.gmra.mrb[0].mxu0 %v2571
  %v2679 = vpop.f32.mrb[0].mxu0
  %v2680 = vadd.f32 0.0, %v2679
  %v2681 = vpop.f32.mrb[0].mxu0
  %2682 = vdwg.mxu0
  %v2683 = vadd.f32 %v2061, %v2640
  %v2684 = vadd.f32 %v2062, %v2645
  %v2685 = vadd.f32 %v2063, %v2650
  %v2686 = vadd.f32 %v2064, %v2655
  %v2687 = vadd.f32 %v2065, %v2660
  %v2688 = vadd.f32 %v2066, %v2665
  %v2689 = vadd.f32 %v2067, %v2670
  %v2690 = vadd.f32 %v2068, %v2675
  %v2691 = vadd.f32 %v2069, %v2680
  %2692 = vrot.lane.b32.xlu0 %v2177, 32
  %v2693 = vpop.permute.xlu0 %2692
  %2694 = vrot.lane.b32.xlu0 %v2182, 32
  %v2695 = vpop.permute.xlu0 %2694
  %2696 = vrot.lane.b32.xlu0 %v2187, 32
  %v2697 = vpop.permute.xlu0 %2696
  %2698 = vrot.lane.b32.xlu0 %v2192, 32
  %v2699 = vpop.permute.xlu0 %2698
  %2700 = vrot.lane.b32.xlu0 %v2197, 32
  %v2701 = vpop.permute.xlu0 %2700
  %2702 = vrot.lane.b32.xlu0 %v2202, 32
  %v2703 = vpop.permute.xlu0 %2702
  %2704 = vrot.lane.b32.xlu0 %v2207, 32
  %v2705 = vpop.permute.xlu0 %2704
  %2706 = vrot.lane.b32.xlu0 %v2212, 32
  %v2707 = vpop.permute.xlu0 %2706
  %2708 = vrot.lane.b32.xlu0 %v2217, 32
  %v2709 = vpop.permute.xlu0 %2708
  %v2719 = vadd.f32 %v2683, %v2693
  %v2720 = vadd.f32 %v2684, %v2695
  %v2721 = vadd.f32 %v2685, %v2697
  %v2722 = vadd.f32 %v2686, %v2699
  %v2723 = vadd.f32 %v2687, %v2701
  %v2724 = vadd.f32 %v2688, %v2703
  %v2725 = vadd.f32 %v2689, %v2705
  %v2726 = vadd.f32 %v2690, %v2707
  %v2727 = vadd.f32 %v2691, %v2709
  %v2728 = vsel %vm1423, %v2719, 0.0
  %2729 = vadd.xlane.f32.xlu0 %v2728
  %v2730 = vpop.xlane.xlu0 %2729
  %v2731 = vsel %vm1423, %v2720, 0.0
  %2732 = vadd.xlane.f32.xlu0 %v2731
  %v2733 = vpop.xlane.xlu0 %2732
  %v2734 = vsel %vm1423, %v2721, 0.0
  %2735 = vadd.xlane.f32.xlu0 %v2734
  %v2736 = vpop.xlane.xlu0 %2735
  %v2737 = vsel %vm1423, %v2722, 0.0
  %2738 = vadd.xlane.f32.xlu0 %v2737
  %v2739 = vpop.xlane.xlu0 %2738
  %v2740 = vsel %vm1423, %v2723, 0.0
  %2741 = vadd.xlane.f32.xlu0 %v2740
  %v2742 = vpop.xlane.xlu0 %2741
  %v2743 = vsel %vm1423, %v2724, 0.0
  %2744 = vadd.xlane.f32.xlu0 %v2743
  %v2745 = vpop.xlane.xlu0 %2744
  %v2746 = vsel %vm1423, %v2725, 0.0
  %2747 = vadd.xlane.f32.xlu0 %v2746
  %v2748 = vpop.xlane.xlu0 %2747
  %v2749 = vsel %vm1423, %v2726, 0.0
  %2750 = vadd.xlane.f32.xlu0 %v2749
  %v2751 = vpop.xlane.xlu0 %2750
  %v2752 = vsel %vm1423, %v2727, 0.0
  %2753 = vadd.xlane.f32.xlu0 %v2752
  %v2754 = vpop.xlane.xlu0 %2753
  %v2755 = vrcp.pop 32.0
  %v2756 = vmul.f32 %v2730, %v2755
  %v2757 = vmul.f32 %v2733, %v2755
  %v2758 = vmul.f32 %v2736, %v2755
  %v2759 = vmul.f32 %v2739, %v2755
  %v2760 = vmul.f32 %v2742, %v2755
  %v2761 = vmul.f32 %v2745, %v2755
  %v2762 = vmul.f32 %v2748, %v2755
  %v2763 = vmul.f32 %v2751, %v2755
  %v2764 = vmul.f32 %v2754, %v2755
  %v2765 = vsub.f32 %v2719, %v2756
  %v2766 = vsub.f32 %v2720, %v2757
  %v2767 = vsub.f32 %v2721, %v2758
  %v2768 = vsub.f32 %v2722, %v2759
  %v2769 = vsub.f32 %v2723, %v2760
  %v2770 = vsub.f32 %v2724, %v2761
  %v2771 = vsub.f32 %v2725, %v2762
  %v2772 = vsub.f32 %v2726, %v2763
  %v2773 = vsub.f32 %v2727, %v2764
  %v2774 = vmul.f32 %v2765, %v2765
  %v2775 = vmul.f32 %v2766, %v2766
  %v2776 = vmul.f32 %v2767, %v2767
  %v2777 = vmul.f32 %v2768, %v2768
  %v2778 = vmul.f32 %v2769, %v2769
  %v2779 = vmul.f32 %v2770, %v2770
  %v2780 = vmul.f32 %v2771, %v2771
  %v2781 = vmul.f32 %v2772, %v2772
  %v2782 = vmul.f32 %v2773, %v2773
  %v2783 = vsel %vm1423, %v2774, 0.0
  %2784 = vadd.xlane.f32.xlu0 %v2783
  %v2785 = vpop.xlane.xlu0 %2784
  %v2786 = vsel %vm1423, %v2775, 0.0
  %2787 = vadd.xlane.f32.xlu0 %v2786
  %v2788 = vpop.xlane.xlu0 %2787
  %v2789 = vsel %vm1423, %v2776, 0.0
  %2790 = vadd.xlane.f32.xlu0 %v2789
  %v2791 = vpop.xlane.xlu0 %2790
  %v2792 = vsel %vm1423, %v2777, 0.0
  %2793 = vadd.xlane.f32.xlu0 %v2792
  %v2794 = vpop.xlane.xlu0 %2793
  %v2795 = vsel %vm1423, %v2778, 0.0
  %2796 = vadd.xlane.f32.xlu0 %v2795
  %v2797 = vpop.xlane.xlu0 %2796
  %v2798 = vsel %vm1423, %v2779, 0.0
  %2799 = vadd.xlane.f32.xlu0 %v2798
  %v2800 = vpop.xlane.xlu0 %2799
  %v2801 = vsel %vm1423, %v2780, 0.0
  %2802 = vadd.xlane.f32.xlu0 %v2801
  %v2803 = vpop.xlane.xlu0 %2802
  %v2804 = vsel %vm1423, %v2781, 0.0
  %2805 = vadd.xlane.f32.xlu0 %v2804
  %v2806 = vpop.xlane.xlu0 %2805
  %v2807 = vsel %vm1423, %v2782, 0.0
  %2808 = vadd.xlane.f32.xlu0 %v2807
  %v2809 = vpop.xlane.xlu0 %2808
  %v2810 = vmul.f32 %v2785, %v2755
  %v2811 = vmul.f32 %v2788, %v2755
  %v2812 = vmul.f32 %v2791, %v2755
  %v2813 = vmul.f32 %v2794, %v2755
  %v2814 = vmul.f32 %v2797, %v2755
  %v2815 = vmul.f32 %v2800, %v2755
  %v2816 = vmul.f32 %v2803, %v2755
  %v2817 = vmul.f32 %v2806, %v2755
  %v2818 = vmul.f32 %v2809, %v2755
  %v2819 = vadd.f32 %v2810, 1e-05
  %v2820 = vadd.f32 %v2811, 1e-05
  %v2821 = vadd.f32 %v2812, 1e-05
  %v2822 = vadd.f32 %v2813, 1e-05
  %v2823 = vadd.f32 %v2814, 1e-05
  %v2824 = vadd.f32 %v2815, 1e-05
  %v2825 = vadd.f32 %v2816, 1e-05
  %v2826 = vadd.f32 %v2817, 1e-05
  %v2827 = vadd.f32 %v2818, 1e-05
  %v2828 = vrsqrt.pop %v2819
  %v2829 = vrsqrt.pop %v2820
  %v2830 = vrsqrt.pop %v2821
  %v2831 = vrsqrt.pop %v2822
  %v2832 = vrsqrt.pop %v2823
  %v2833 = vrsqrt.pop %v2824
  %v2834 = vrsqrt.pop %v2825
  %v2835 = vrsqrt.pop %v2826
  %v2836 = vrsqrt.pop %v2827
  %v2837 = vmul.f32 %v2765, %v2828
  %v2838 = vmul.f32 %v2766, %v2829
  %v2839 = vmul.f32 %v2767, %v2830
  %v2840 = vmul.f32 %v2768, %v2831
  %v2841 = vmul.f32 %v2769, %v2832
  %v2842 = vmul.f32 %v2770, %v2833
  %v2843 = vmul.f32 %v2771, %v2834
  %v2844 = vmul.f32 %v2772, %v2835
  %v2845 = vmul.f32 %v2773, %v2836
  %v2846 = vld [vmem:[%s10] sm:$0x1]
  %v2848 = vlaneseq
  %v2849 = vshrl.u32 %v2848, 7
  %v2850 = vsub.s32 0, %v2849
  %v2851 = vrot.slane %v2846, %v2850
  %v2853 = vmul.f32 %v2837, %v2851
  %v2854 = vmul.f32 %v2838, %v2851
  %v2855 = vmul.f32 %v2839, %v2851
  %v2856 = vmul.f32 %v2840, %v2851
  %v2857 = vmul.f32 %v2841, %v2851
  %v2858 = vmul.f32 %v2842, %v2851
  %v2859 = vmul.f32 %v2843, %v2851
  %v2860 = vmul.f32 %v2844, %v2851
  %v2861 = vmul.f32 %v2845, %v2851
  %v2862 = vld [vmem:[%s11] sm:$0x1]
  %v2864 = vlaneseq
  %v2865 = vshrl.u32 %v2864, 7
  %v2866 = vsub.s32 0, %v2865
  %v2867 = vrot.slane %v2862, %v2866
  %v2869 = vadd.f32 %v2853, %v2867
  %v2870 = vadd.f32 %v2854, %v2867
  %v2871 = vadd.f32 %v2855, %v2867
  %v2872 = vadd.f32 %v2856, %v2867
  %v2873 = vadd.f32 %v2857, %v2867
  %v2874 = vadd.f32 %v2858, %v2867
  %v2875 = vadd.f32 %v2859, %v2867
  %v2876 = vadd.f32 %v2860, %v2867
  %v2877 = vadd.f32 %v2861, %v2867
  %v2878 = vlaneseq
  %v2879 = vshrl.u32 %v2878, 7
  %v2880 = vadd.s32 %v2879, 8
  %vm2881 = vcmp.eq.s32.totalorder %v2879, %v1402
  %vm2882 = vcmp.eq.s32.totalorder %v2880, %v1402
  %v2883 = vsel %vm2881, 1, 0
  %v2884 = vsel %vm2882, 1, 0
  %v2885 = vcvt.s32.f32 %v2883
  %v2886 = vcvt.s32.f32 %v2884
  %v2887 = vsel %vm1761, %v2885, 0.0
  %2888 = vadd.xlane.f32.xlu0 %v2887
  %v2889 = vpop.xlane.xlu0 %2888
  %vm2890 = vcmask 584704
  %v2891 = vsel %vm2890, %v2886, 0.0
  %2892 = vadd.xlane.f32.xlu0 %v2891
  %v2893 = vpop.xlane.xlu0 %2892
  %v2895 = vsel %vm1761, %v2885, 0
  %v2898 = vsel %vm1761, %v2886, 0
  %2900 = vmatprep.subr.mxu0 0.0
  %2901 = vmatpush1.msra.mxu0 %v2869
  %2902 = vmatprep.subr.mxu0 0.0
  %2903 = vmatpush1.msra.mxu0 %v2870
  %2904 = vmatprep.subr.mxu0 0.0
  %2905 = vmatpush1.msra.mxu0 %v2871
  %2906 = vmatprep.subr.mxu0 0.0
  %2907 = vmatpush1.msra.mxu0 %v2872
  %2908 = vmatprep.subr.mxu0 0.0
  %2909 = vmatpush1.msra.mxu0 %v2873
  %2910 = vmatprep.subr.mxu0 0.0
  %2911 = vmatpush1.msra.mxu0 %v2874
  %2912 = vmatprep.subr.mxu0 0.0
  %2913 = vmatpush1.msra.mxu0 %v2875
  %2914 = vmatprep.subr.mxu0 0.0
  %2915 = vmatpush1.msra.mxu0 %v2876
  %2916 = vmatprep.subr.mxu0 0.0
  %2917 = vmatpush1.msra.mxu0 %v2877
  %2918 = vmatprep.subr.mxu0 0.0
  %2919 = vmatpush1.msra.mxu0 0.0
  %2920 = vmatprep.subr.mxu0 0.0
  %2921 = vmatpush1.msra.mxu0 0.0
  %2922 = vmatprep.subr.mxu0 0.0
  %2923 = vmatpush1.msra.mxu0 0.0
  %2924 = vmatprep.subr.mxu0 0.0
  %2925 = vmatpush1.msra.mxu0 0.0
  %2926 = vmatprep.subr.mxu0 0.0
  %2927 = vmatpush1.msra.mxu0 0.0
  %2928 = vmatprep.subr.mxu0 0.0
  %2929 = vmatpush1.msra.mxu0 0.0
  %2930 = vmatprep.subr.mxu0 0.0
  %2931 = vmatpush1.msra.mxu0 0.0
  %2932 = vmatprep.subr.mxu0 0.0
  %2933 = vmatpush1.msra.mxu0 0.0
  %2934 = vmatprep.subr.mxu0 0.0
  %2935 = vmatpush1.msra.mxu0 0.0
  %2936 = vmatprep.subr.mxu0 0.0
  %2937 = vmatpush1.msra.mxu0 0.0
  %2938 = vmatprep.subr.mxu0 0.0
  %2939 = vmatpush1.msra.mxu0 0.0
  %2940 = vmatprep.subr.mxu0 0.0
  %2941 = vmatpush1.msra.mxu0 0.0
  %2942 = vmatprep.subr.mxu0 0.0
  %2943 = vmatpush1.msra.mxu0 0.0
  %2944 = vmatprep.subr.mxu0 0.0
  %2945 = vmatpush1.msra.mxu0 0.0
  %2946 = vmatprep.subr.mxu0 0.0
  %2947 = vmatpush1.msra.mxu0 0.0
  %2948 = vmatprep.subr.mxu0 0.0
  %2949 = vmatpush1.msra.mxu0 0.0
  %2950 = vmatprep.subr.mxu0 0.0
  %2951 = vmatpush1.msra.mxu0 0.0
  %2952 = vmatprep.subr.mxu0 0.0
  %2953 = vmatpush1.msra.mxu0 0.0
  %2954 = vmatprep.subr.mxu0 0.0
  %2955 = vmatpush1.msra.mxu0 0.0
  %2956 = vmatprep.subr.mxu0 0.0
  %2957 = vmatpush1.msra.mxu0 0.0
  %2958 = vmatprep.subr.mxu0 0.0
  %2959 = vmatpush1.msra.mxu0 0.0
  %2960 = vmatprep.subr.mxu0 0.0
  %2961 = vmatpush1.msra.mxu0 0.0
  %2962 = vmatprep.subr.mxu0 0.0
  %2963 = vmatpush1.msra.mxu0 0.0
  %2964 = vmatprep.mubr.f32.mxu0 0.0
  %2965 = vmatmul.mubr.f32.gmra.mrb[0].mxu0 %v2895
  %v2966 = vpop.f32.mrb[0].mxu0
  %v2967 = vadd.f32 0.0, %v2966
  %v2968 = vpop.f32.mrb[0].mxu0
  %2969 = vmatprep.mubr.f32.mxu0 0.0
  %2970 = vmatmul.mubr.f32.gmra.mrb[0].mxu0 %v2898
  %v2971 = vpop.f32.mrb[0].mxu0
  %v2972 = vadd.f32 0.0, %v2971
  %v2973 = vpop.f32.mrb[0].mxu0
  %2974 = vdwg.mxu0
  %v2975 = vmax.f32 %v2889, 1.0
  %v2976 = vmax.f32 %v2893, 1.0
  %v2977 = vrcp.pop %v2975
  %v2978 = vrcp.pop %v2976
  %v2979 = vmul.f32 %v2967, %v2977
  %v2980 = vmul.f32 %v2972, %v2978
  %v2981 = vld [vmem:[%s12] sm:$0xff]
  %v2982 = vld [vmem:[%s12 + $0x8] sm:$0xff]
  %v2983 = vld [vmem:[%s12 + $0x10] sm:$0xff]
  %v2984 = vld [vmem:[%s12 + $0x18] sm:$0xff]
  %v2985 = vld [vmem:[%s13] sm:$0x1]
  %v2987 = vlaneseq
  %v2988 = vshrl.u32 %v2987, 7
  %v2989 = vsub.s32 0, %v2988
  %v2990 = vrot.slane %v2985, %v2989
  %v2993 = vsel %vm1423, %v2979, 0
  %v2996 = vsel %vm1423, %v2980, 0
  %2998 = vmatprep.subr.mxu0 0.0
  %2999 = vmatpush1.msra.mxu0 %v2981
  %3000 = vmatprep.subr.mxu0 0.0
  %3001 = vmatpush1.msra.mxu0 %v2982
  %3002 = vmatprep.subr.mxu0 0.0
  %3003 = vmatpush1.msra.mxu0 %v2983
  %3004 = vmatprep.subr.mxu0 0.0
  %3005 = vmatpush1.msra.mxu0 %v2984
  %3006 = vmatprep.subr.mxu0 0.0
  %3007 = vmatpush1.msra.mxu0 0.0
  %3008 = vmatprep.subr.mxu0 0.0
  %3009 = vmatpush1.msra.mxu0 0.0
  %3010 = vmatprep.subr.mxu0 0.0
  %3011 = vmatpush1.msra.mxu0 0.0
  %3012 = vmatprep.subr.mxu0 0.0
  %3013 = vmatpush1.msra.mxu0 0.0
  %3014 = vmatprep.subr.mxu0 0.0
  %3015 = vmatpush1.msra.mxu0 0.0
  %3016 = vmatprep.subr.mxu0 0.0
  %3017 = vmatpush1.msra.mxu0 0.0
  %3018 = vmatprep.subr.mxu0 0.0
  %3019 = vmatpush1.msra.mxu0 0.0
  %3020 = vmatprep.subr.mxu0 0.0
  %3021 = vmatpush1.msra.mxu0 0.0
  %3022 = vmatprep.subr.mxu0 0.0
  %3023 = vmatpush1.msra.mxu0 0.0
  %3024 = vmatprep.subr.mxu0 0.0
  %3025 = vmatpush1.msra.mxu0 0.0
  %3026 = vmatprep.subr.mxu0 0.0
  %3027 = vmatpush1.msra.mxu0 0.0
  %3028 = vmatprep.subr.mxu0 0.0
  %3029 = vmatpush1.msra.mxu0 0.0
  %3030 = vmatprep.subr.mxu0 0.0
  %3031 = vmatpush1.msra.mxu0 0.0
  %3032 = vmatprep.subr.mxu0 0.0
  %3033 = vmatpush1.msra.mxu0 0.0
  %3034 = vmatprep.subr.mxu0 0.0
  %3035 = vmatpush1.msra.mxu0 0.0
  %3036 = vmatprep.subr.mxu0 0.0
  %3037 = vmatpush1.msra.mxu0 0.0
  %3038 = vmatprep.subr.mxu0 0.0
  %3039 = vmatpush1.msra.mxu0 0.0
  %3040 = vmatprep.subr.mxu0 0.0
  %3041 = vmatpush1.msra.mxu0 0.0
  %3042 = vmatprep.subr.mxu0 0.0
  %3043 = vmatpush1.msra.mxu0 0.0
  %3044 = vmatprep.subr.mxu0 0.0
  %3045 = vmatpush1.msra.mxu0 0.0
  %3046 = vmatprep.subr.mxu0 0.0
  %3047 = vmatpush1.msra.mxu0 0.0
  %3048 = vmatprep.subr.mxu0 0.0
  %3049 = vmatpush1.msra.mxu0 0.0
  %3050 = vmatprep.subr.mxu0 0.0
  %3051 = vmatpush1.msra.mxu0 0.0
  %3052 = vmatprep.subr.mxu0 0.0
  %3053 = vmatpush1.msra.mxu0 0.0
  %3054 = vmatprep.subr.mxu0 0.0
  %3055 = vmatpush1.msra.mxu0 0.0
  %3056 = vmatprep.subr.mxu0 0.0
  %3057 = vmatpush1.msra.mxu0 0.0
  %3058 = vmatprep.subr.mxu0 0.0
  %3059 = vmatpush1.msra.mxu0 0.0
  %3060 = vmatprep.subr.mxu0 0.0
  %3061 = vmatpush1.msra.mxu0 0.0
  %3062 = vmatprep.mubr.f32.mxu0 0.0
  %3063 = vmatmul.mubr.f32.gmra.mrb[0].mxu0 %v2993
  %v3064 = vpop.f32.mrb[0].mxu0
  %v3065 = vadd.f32 %v2990, %v3064
  %v3066 = vpop.f32.mrb[0].mxu0
  %3067 = vmatprep.mubr.f32.mxu0 0.0
  %3068 = vmatmul.mubr.f32.gmra.mrb[0].mxu0 %v2996
  %v3069 = vpop.f32.mrb[0].mxu0
  %v3070 = vadd.f32 %v2990, %v3069
  %v3071 = vpop.f32.mrb[0].mxu0
  %3072 = vdwg.mxu0
  %vm3073 = vcmp.gt.f32.partialorder %v2889, 0.0
  %vm3074 = vcmp.gt.f32.partialorder %v2893, 0.0
  %v3075 = vsel %vm3073, 1, 0
  %v3076 = vsel %vm3074, 1, 0
  %vm3077 = vcmp.eq.s32.totalorder %v3075, 1
  %vm3078 = vcmp.eq.s32.totalorder %v3076, 1
  %v3079 = vsel %vm3077, %v3065, 0.0
  %v3080 = vsel %vm3078, %v3070, 0.0
  %v3081 = vld [vmem:[%s14] sm:$0xff]
  %v3082 = vld [vmem:[%s14 + $0x8] sm:$0xff]
  %v3083 = vld [vmem:[%s14 + $0x10] sm:$0xff]
  %v3084 = vld [vmem:[%s14 + $0x18] sm:$0xff]
  %v3085 = vld [vmem:[%s14 + $0x20] sm:$0xff]
  %v3086 = vld [vmem:[%s14 + $0x28] sm:$0xff]
  %v3087 = vld [vmem:[%s15] sm:$0x3]
  %v3089 = vlaneseq
  %v3090 = vshrl.u32 %v3089, 7
  %v3091 = vsub.s32 0, %v3090
  %v3092 = vrot.slane %v3087, %v3091
  %v3093 = vlaneseq
  %v3094 = vshrl.u32 %v3093, 7
  %v3095 = vsub.s32 1, %v3094
  %v3096 = vrot.slane %v3087, %v3095
  %vm3099 = vcmask 195584
  %v3101 = vsel %vm3099, %v3079, 0
  %v3104 = vsel %vm3099, %v3080, 0
  %3106 = vmatprep.subr.mxu0 %v3082
  %3107 = vmatpush1.msra.mxu0 %v3081
  %3108 = vmatprep.subr.mxu0 %v3084
  %3109 = vmatpush1.msra.mxu0 %v3083
  %3110 = vmatprep.subr.mxu0 %v3086
  %3111 = vmatpush1.msra.mxu0 %v3085
  %3112 = vmatprep.subr.mxu0 0.0
  %3113 = vmatpush1.msra.mxu0 0.0
  %3114 = vmatprep.subr.mxu0 0.0
  %3115 = vmatpush1.msra.mxu0 0.0
  %3116 = vmatprep.subr.mxu0 0.0
  %3117 = vmatpush1.msra.mxu0 0.0
  %3118 = vmatprep.subr.mxu0 0.0
  %3119 = vmatpush1.msra.mxu0 0.0
  %3120 = vmatprep.subr.mxu0 0.0
  %3121 = vmatpush1.msra.mxu0 0.0
  %3122 = vmatprep.subr.mxu0 0.0
  %3123 = vmatpush1.msra.mxu0 0.0
  %3124 = vmatprep.subr.mxu0 0.0
  %3125 = vmatpush1.msra.mxu0 0.0
  %3126 = vmatprep.subr.mxu0 0.0
  %3127 = vmatpush1.msra.mxu0 0.0
  %3128 = vmatprep.subr.mxu0 0.0
  %3129 = vmatpush1.msra.mxu0 0.0
  %3130 = vmatprep.subr.mxu0 0.0
  %3131 = vmatpush1.msra.mxu0 0.0
  %3132 = vmatprep.subr.mxu0 0.0
  %3133 = vmatpush1.msra.mxu0 0.0
  %3134 = vmatprep.subr.mxu0 0.0
  %3135 = vmatpush1.msra.mxu0 0.0
  %3136 = vmatprep.subr.mxu0 0.0
  %3137 = vmatpush1.msra.mxu0 0.0
  %3138 = vmatprep.subr.mxu0 0.0
  %3139 = vmatpush1.msra.mxu0 0.0
  %3140 = vmatprep.subr.mxu0 0.0
  %3141 = vmatpush1.msra.mxu0 0.0
  %3142 = vmatprep.subr.mxu0 0.0
  %3143 = vmatpush1.msra.mxu0 0.0
  %3144 = vmatprep.subr.mxu0 0.0
  %3145 = vmatpush1.msra.mxu0 0.0
  %3146 = vmatprep.subr.mxu0 0.0
  %3147 = vmatpush1.msra.mxu0 0.0
  %3148 = vmatprep.subr.mxu0 0.0
  %3149 = vmatpush1.msra.mxu0 0.0
  %3150 = vmatprep.subr.mxu0 0.0
  %3151 = vmatpush1.msra.mxu0 0.0
  %3152 = vmatprep.subr.mxu0 0.0
  %3153 = vmatpush1.msra.mxu0 0.0
  %3154 = vmatprep.subr.mxu0 0.0
  %3155 = vmatpush1.msra.mxu0 0.0
  %3156 = vmatprep.subr.mxu0 0.0
  %3157 = vmatpush1.msra.mxu0 0.0
  %3158 = vmatprep.subr.mxu0 0.0
  %3159 = vmatpush1.msra.mxu0 0.0
  %3160 = vmatprep.subr.mxu0 0.0
  %3161 = vmatpush1.msra.mxu0 0.0
  %3162 = vmatprep.subr.mxu0 0.0
  %3163 = vmatpush1.msra.mxu0 0.0
  %3164 = vmatprep.subr.mxu0 0.0
  %3165 = vmatpush1.msra.mxu0 0.0
  %3166 = vmatprep.subr.mxu0 0.0
  %3167 = vmatpush1.msra.mxu0 0.0
  %3168 = vmatprep.subr.mxu0 0.0
  %3169 = vmatpush1.msra.mxu0 0.0
  %3170 = vmatprep.mubr.f32.mxu0 0.0
  %3171 = vmatmul.mubr.f32.gmra.mrb[0].mxu0 %v3101
  %v3172 = vpop.f32.mrb[0].mxu0
  %v3173 = vadd.f32 %v3092, %v3172
  %v3174 = vpop.f32.mrb[0].mxu0
  %v3175 = vadd.f32 %v3096, %v3174
  %3176 = vmatprep.mubr.f32.mxu0 0.0
  %3177 = vmatmul.mubr.f32.gmra.mrb[0].mxu0 %v3104
  %v3178 = vpop.f32.mrb[0].mxu0
  %v3179 = vpop.f32.mrb[0].mxu0
  %v3180 = vadd.f32 %v3096, %v3179
  %3181 = vdwg.mxu0
  %v3183 = vrot.slane %v3175, 4
  %v3185 = vadd.f32 %v3173, %v3183
  %v3186 = vmax.f32 %v3185, 0.0
  %v3187 = vadd.f32 %v3173, %v3180
  %v3188 = vmax.f32 %v3187, 0.0
  %v3190 = vrot.slane %v3188, 4
  %vm3192 = vcmask 1043456
  %v3193 = vsel %vm3192, %v3186, %v3190
  %v3194 = vld [vmem:[%s16] sm:$0xff]
  %v3195 = vld [vmem:[%s16 + $0x8] sm:$0xff]
  %v3196 = vld [vmem:[%s16 + $0x10] sm:$0xff]
  %v3197 = vld [vmem:[%s16 + $0x18] sm:$0xff]
  %v3198 = vld [vmem:[%s16 + $0x20] sm:$0xff]
  %v3199 = vld [vmem:[%s16 + $0x28] sm:$0xff]
  %v3200 = vld [vmem:[%s16 + $0x30] sm:$0xff]
  %v3201 = vld [vmem:[%s16 + $0x38] sm:$0xff]
  %v3202 = vld [vmem:[%s16 + $0x40] sm:$0xff]
  %v3203 = vld [vmem:[%s16 + $0x48] sm:$0xff]
  %v3204 = vld [vmem:[%s16 + $0x50] sm:$0xff]
  %v3205 = vld [vmem:[%s16 + $0x58] sm:$0xff]
  %v3206 = vld [vmem:[%s16 + $0x60] sm:$0xff]
  %v3207 = vld [vmem:[%s16 + $0x68] sm:$0xff]
  %v3208 = vld [vmem:[%s16 + $0x70] sm:$0xff]
  %v3209 = vld [vmem:[%s16 + $0x78] sm:$0xff]
  %v3210 = vld [vmem:[#allocation2] sm:$0x1]
  %v3212 = vlaneseq
  %v3213 = vshrl.u32 %v3212, 7
  %v3214 = vsub.s32 0, %v3213
  %v3215 = vrot.slane %v3210, %v3214
  %3217 = vmatprep.subr.mxu0 0.0
  %3218 = vmatpush1.msra.mxu0 %v3194
  %3219 = vmatprep.subr.mxu0 0.0
  %3220 = vmatpush1.msra.mxu0 %v3195
  %3221 = vmatprep.subr.mxu0 0.0
  %3222 = vmatpush1.msra.mxu0 %v3196
  %3223 = vmatprep.subr.mxu0 0.0
  %3224 = vmatpush1.msra.mxu0 %v3197
  %3225 = vmatprep.subr.mxu0 0.0
  %3226 = vmatpush1.msra.mxu0 %v3198
  %3227 = vmatprep.subr.mxu0 0.0
  %3228 = vmatpush1.msra.mxu0 %v3199
  %3229 = vmatprep.subr.mxu0 0.0
  %3230 = vmatpush1.msra.mxu0 %v3200
  %3231 = vmatprep.subr.mxu0 0.0
  %3232 = vmatpush1.msra.mxu0 %v3201
  %3233 = vmatprep.subr.mxu0 0.0
  %3234 = vmatpush1.msra.mxu0 %v3202
  %3235 = vmatprep.subr.mxu0 0.0
  %3236 = vmatpush1.msra.mxu0 %v3203
  %3237 = vmatprep.subr.mxu0 0.0
  %3238 = vmatpush1.msra.mxu0 %v3204
  %3239 = vmatprep.subr.mxu0 0.0
  %3240 = vmatpush1.msra.mxu0 %v3205
  %3241 = vmatprep.subr.mxu0 0.0
  %3242 = vmatpush1.msra.mxu0 %v3206
  %3243 = vmatprep.subr.mxu0 0.0
  %3244 = vmatpush1.msra.mxu0 %v3207
  %3245 = vmatprep.subr.mxu0 0.0
  %3246 = vmatpush1.msra.mxu0 %v3208
  %3247 = vmatprep.subr.mxu0 0.0
  %3248 = vmatpush1.msra.mxu0 %v3209
  %3249 = vmatprep.subr.mxu0 0.0
  %3250 = vmatpush1.msra.mxu0 0.0
  %3251 = vmatprep.subr.mxu0 0.0
  %3252 = vmatpush1.msra.mxu0 0.0
  %3253 = vmatprep.subr.mxu0 0.0
  %3254 = vmatpush1.msra.mxu0 0.0
  %3255 = vmatprep.subr.mxu0 0.0
  %3256 = vmatpush1.msra.mxu0 0.0
  %3257 = vmatprep.subr.mxu0 0.0
  %3258 = vmatpush1.msra.mxu0 0.0
  %3259 = vmatprep.subr.mxu0 0.0
  %3260 = vmatpush1.msra.mxu0 0.0
  %3261 = vmatprep.subr.mxu0 0.0
  %3262 = vmatpush1.msra.mxu0 0.0
  %3263 = vmatprep.subr.mxu0 0.0
  %3264 = vmatpush1.msra.mxu0 0.0
  %3265 = vmatprep.subr.mxu0 0.0
  %3266 = vmatpush1.msra.mxu0 0.0
  %3267 = vmatprep.subr.mxu0 0.0
  %3268 = vmatpush1.msra.mxu0 0.0
  %3269 = vmatprep.subr.mxu0 0.0
  %3270 = vmatpush1.msra.mxu0 0.0
  %3271 = vmatprep.subr.mxu0 0.0
  %3272 = vmatpush1.msra.mxu0 0.0
  %3273 = vmatprep.subr.mxu0 0.0
  %3274 = vmatpush1.msra.mxu0 0.0
  %3275 = vmatprep.subr.mxu0 0.0
  %3276 = vmatpush1.msra.mxu0 0.0
  %3277 = vmatprep.subr.mxu0 0.0
  %3278 = vmatpush1.msra.mxu0 0.0
  %3279 = vmatprep.subr.mxu0 0.0
  %3280 = vmatpush1.msra.mxu0 0.0
  %3281 = vmatprep.mubr.f32.mxu0 0.0
  %3282 = vmatmul.mubr.f32.gmra.mrb[0].mxu0 %v3193
  %v3283 = vpop.f32.mrb[0].mxu0
  %v3284 = vadd.f32 %v3215, %v3283
  %v3285 = vpop.f32.mrb[0].mxu0
  %3286 = vdwg.mxu0
  %vm3287 = vcmask 7168
  %3288 = vst.msk [vmem:[%s18] sm:$0xff] %vm3287, %v3284
  // Predicated region
  $region74: #{device_step.1} parent=0 // pred_check
    _
  $region75: #{device_step.1} parent=0 // pred_check_branch
    %3290 = sbr.rel (0) target = $region77
  $region76: #{device_step.1} parent=0 // pred_region
    _
  $region77: #{device_step.1} parent=0 // pred_fallthru
    _
  // Predicated region
  $region78: #{device_step.1} parent=0 // pred_check
    _
  $region79: #{device_step.1} parent=0 // pred_check_branch
    %3292 = sbr.rel (0) target = $region81
  $region80: #{device_step.1} parent=0 // pred_region
    _
  $region81: #{device_step.1} parent=0 // pred_fallthru
    _

</llo_original>
